<compile_context>
chip_gen: v5e
topology: v5e:2x2
jax: 0.10.0
libtpu: 0.0.40
codegen_flags: <defaults>
</compile_context>

<pallas_src>
import math
from functools import partial

import jax
import jax.numpy as jnp
from jax.experimental import pallas as pl
from jax.experimental.pallas import tpu as pltpu

LANES = 128

# row indices inside the packed "vector" slab (biases / LN params / cls token)
(V_PE_B, V_CLS, V_LN1G, V_LN1B, V_QKVB, V_OB, V_LN2G, V_LN2B,
 V_F1B, V_F2B, V_LNHG, V_LNHB, V_HDB, _N_VEC) = range(14)
VEC_ROWS = 16  # padded to a multiple of 8


# ----------------------------------------------------------------------------
# shared numerics (used both inside the kernel and in the pure-JAX reference)
# ----------------------------------------------------------------------------
def _layernorm(x, g, b, eps=1e-5):
    mu = jnp.mean(x, axis=-1, keepdims=True)
    var = jnp.mean((x - mu) ** 2, axis=-1, keepdims=True)
    return (x - mu) * jax.lax.rsqrt(var + eps) * g + b


# Abramowitz & Stegun 7.1.26 erf approximation (max abs err ~1.5e-7), built
# only from exp/abs/where (+ a reciprocal) so it lowers cleanly in Mosaic.
_A1, _A2, _A3, _A4, _A5 = 0.254829592, -0.284496736, 1.421413741, -1.453152027, 1.061405429
_PC = 0.3275911


def _erf(x, recip=lambda d: 1.0 / d):
    ax = jnp.abs(x)
    t = recip(1.0 + _PC * ax)
    poly = ((((_A5 * t + _A4) * t + _A3) * t + _A2) * t + _A1) * t
    y = 1.0 - poly * jnp.exp(-ax * ax)
    return jnp.where(x >= 0, y, -y)


def _gelu(x, recip=lambda d: 1.0 / d):
    return 0.5 * x * (1.0 + _erf(x * (1.0 / math.sqrt(2.0)), recip))


# ----------------------------------------------------------------------------
# Pallas kernel: full ViT forward for BB batch elements per grid step
# ----------------------------------------------------------------------------
def vit_kernel(patches_ref, wmat_ref, wvec_ref, out_ref, x_sc, av_sc, *,
               BB, L, S, S_pad, Pd, hid, inner, dim_head, heads, mlp,
               out_pad, off):
    f32 = jnp.float32
    recip = lambda d: pl.reciprocal(d, approx=True)   # EUP, own VLIW slot

    # ---- unpack the packed weight slabs (static slices) ----
    pe_w  = wmat_ref[off['pe_w']:off['pe_w'] + Pd, :hid]
    pos   = wmat_ref[off['pos']:off['pos'] + S_pad, :hid]
    qkv_w = wmat_ref[off['qkv_w']:off['qkv_w'] + hid, :3 * inner]
    o_w   = wmat_ref[off['o_w']:off['o_w'] + inner, :hid]
    f1_w  = wmat_ref[off['f1_w']:off['f1_w'] + hid, :mlp]
    f2_w  = wmat_ref[off['f2_w']:off['f2_w'] + mlp, :hid]
    hd_w  = wmat_ref[off['hd_w']:off['hd_w'] + hid, :out_pad]

    pe_b  = wvec_ref[V_PE_B:V_PE_B + 1, :hid]
    cls_t = wvec_ref[V_CLS:V_CLS + 1, :hid]
    ln1_g = wvec_ref[V_LN1G:V_LN1G + 1, :hid]
    ln1_b = wvec_ref[V_LN1B:V_LN1B + 1, :hid]
    qkv_b = wvec_ref[V_QKVB:V_QKVB + 1, :3 * inner]
    o_b   = wvec_ref[V_OB:V_OB + 1, :hid]
    ln2_g = wvec_ref[V_LN2G:V_LN2G + 1, :hid]
    ln2_b = wvec_ref[V_LN2B:V_LN2B + 1, :hid]
    f1_b  = wvec_ref[V_F1B:V_F1B + 1, :mlp]
    f2_b  = wvec_ref[V_F2B:V_F2B + 1, :hid]
    lnh_g = wvec_ref[V_LNHG:V_LNHG + 1, :hid]
    lnh_b = wvec_ref[V_LNHB:V_LNHB + 1, :hid]
    hd_b  = wvec_ref[V_HDB:V_HDB + 1, :out_pad]

    # ---- patch embedding for ALL BB images at once: (BB*L, Pd) @ (Pd, hid) ----
    pemb = jnp.dot(patches_ref[...], pe_w, preferred_element_type=f32) + pe_b

    # tail block = [cls-token row, then zero pad rows], with pos-embed folded in
    # (cls token is appended at the END of the sequence, matching the module)
    rid = jax.lax.broadcasted_iota(jnp.int32, (S_pad - L, hid), 0)
    tail = jnp.where(rid == 0, cls_t, 0.0) + pos[L:S_pad, :]

    for b in range(BB):                          # static unroll; BB is small
        r0 = b * S_pad
        x_sc[r0:r0 + L, :] = pemb[b * L:(b + 1) * L, :] + pos[:L, :]
        x_sc[r0 + L:r0 + S_pad, :] = tail        # 8-aligned full-width writes

    # =============== transformer block (depth = 1) ===============
    # --- PreNorm + Attention (fused QKV; scale already folded into Q) ---
    x = x_sc[...]                                # (BB*S_pad, hid)
    h = _layernorm(x, ln1_g, ln1_b)
    qkv = jnp.dot(h, qkv_w, preferred_element_type=f32) + qkv_b

    col = jax.lax.broadcasted_iota(jnp.int32, (S_pad, S_pad), 1)
    key_valid = col < S                          # mask padded key columns

    for b in range(BB):                          # small per-batch inner loop
        r0 = b * S_pad
        q_b = qkv[r0:r0 + S_pad, 0 * inner:1 * inner]
        k_b = qkv[r0:r0 + S_pad, 1 * inner:2 * inner]
        v_b = qkv[r0:r0 + S_pad, 2 * inner:3 * inner]
        for hh in range(heads):                  # static unroll (heads=1 default)
            sl = slice(hh * dim_head, (hh + 1) * dim_head)
            s = jax.lax.dot_general(q_b[:, sl], k_b[:, sl],
                                    (((1,), (1,)), ((), ())),
                                    preferred_element_type=f32)   # (S_pad, S_pad)
            s = jnp.where(key_valid, s, -1e30)
            s = s - jnp.max(s, axis=-1, keepdims=True)
            p = jnp.exp(s)
            p = p * recip(jnp.sum(p, axis=-1, keepdims=True))      # softmax
            av_sc[:, sl] = jnp.dot(p, v_b[:, sl], preferred_element_type=f32)
        o_out = jnp.dot(av_sc[...], o_w, preferred_element_type=f32) + o_b
        x_sc[r0:r0 + S_pad, :] = x[r0:r0 + S_pad, :] + o_out       # residual

    # --- PreNorm + FeedForward (GELU) + residual ---
    x = x_sc[...]
    h2 = _layernorm(x, ln2_g, ln2_b)
    f = jnp.dot(h2, f1_w, preferred_element_type=f32) + f1_b
    f = _gelu(f, recip=recip)
    x = x + jnp.dot(f, f2_w, preferred_element_type=f32) + f2_b

    # =============== pool (token 0, as in the module) + mlp head ===============
    for b in range(BB):
        pooled = x[b * S_pad:b * S_pad + 1, :]                     # (1, hid)
        ph = _layernorm(pooled, lnh_g, lnh_b)
        out_ref[b:b + 1, :] = (jnp.dot(ph, hd_w, preferred_element_type=f32)
                               + hd_b)                             # lane-dense (128)


# ----------------------------------------------------------------------------
# wrapper: pack params into lane-dense slabs + pallas_call
# ----------------------------------------------------------------------------
def _pack_params(params, *, dim_head, heads, S, S_pad, out_channels, out_pad):
    f32 = jnp.float32
    hid = params['pe_w'].shape[1]
    mlp = params['f1_w'].shape[1]
    scale = 1.0 / math.sqrt(dim_head)

    # fused QKV with the attention scale folded into Q
    qkv_w = jnp.concatenate([params['q_w'] * scale, params['k_w'],
                             params['v_w']], axis=1)
    qkv_b = jnp.concatenate([params['q_b'] * scale, params['k_b'],
                             params['v_b']], axis=1)

    pos = jnp.zeros((S_pad, hid), f32).at[:S, :].set(params['pos_e'][:S])
    hd_w = jnp.zeros((hid, out_pad), f32).at[:, :out_channels].set(params['hd_w'])
    hd_b = jnp.zeros((1, out_pad), f32).at[:, :out_channels].set(params['hd_b'])

    mats = [('pe_w', params['pe_w']), ('pos', pos), ('qkv_w', qkv_w),
            ('o_w', params['o_w']), ('f1_w', params['f1_w']),
            ('f2_w', params['f2_w']), ('hd_w', hd_w)]
    off, blocks, r = {}, [], 0
    for name, m in mats:
        m = m.astype(f32)
        nr = -(-m.shape[0] // 8) * 8                     # 8-aligned row block
        blk = jnp.zeros((nr, LANES), f32).at[:m.shape[0], :m.shape[1]].set(m)
        off[name] = r
        blocks.append(blk)
        r += nr
    wmat = jnp.concatenate(blocks, axis=0)               # one lane-dense slab

    vec_rows = [jnp.zeros((LANES,), f32)] * VEC_ROWS

    def setv(i, v):
        v = jnp.asarray(v, f32).reshape(-1)
        vec_rows[i] = jnp.zeros((LANES,), f32).at[:v.shape[0]].set(v)

    setv(V_PE_B, params['pe_b']);   setv(V_CLS, params['cls_t'])
    setv(V_LN1G, params['ln1_g']);  setv(V_LN1B, params['ln1_b'])
    setv(V_QKVB, qkv_b);            setv(V_OB, params['o_b'])
    setv(V_LN2G, params['ln2_g']);  setv(V_LN2B, params['ln2_b'])
    setv(V_F1B, params['f1_b']);    setv(V_F2B, params['f2_b'])
    setv(V_LNHG, params['lnh_g']);  setv(V_LNHB, params['lnh_b'])
    setv(V_HDB, hd_b)
    wvec = jnp.stack(vec_rows, axis=0)                   # (16, 128)
    return wmat, wvec, off, hid, mlp


def vit_forward_pallas(patches, params, *, dim_head, heads, out_channels,
                       block_batch=None):
    B, L, Pd = patches.shape
    S = L + 1
    S_pad = -(-S // 128) * 128            # lane/sublane friendly token count
    out_pad = -(-out_channels // 128) * 128
    inner = dim_head * heads
    BB = B if block_batch is None else block_batch   # batch elems per grid step
    assert B % BB == 0

    wmat, wvec, off, hid, mlp = _pack_params(
        params, dim_head=dim_head, heads=heads, S=S, S_pad=S_pad,
        out_channels=out_channels, out_pad=out_pad)

    patches2d = patches.reshape(B * L, Pd).astype(jnp.float32)

    kernel = partial(vit_kernel, BB=BB, L=L, S=S, S_pad=S_pad, Pd=Pd,
                     hid=hid, inner=inner, dim_head=dim_head, heads=heads,
                     mlp=mlp, out_pad=out_pad, off=off)

    out = pl.pallas_call(
        kernel,
        out_shape=jax.ShapeDtypeStruct((B, out_pad), jnp.float32),
        grid_spec=pltpu.PrefetchScalarGridSpec(
            num_scalar_prefetch=0,
            grid=(B // BB,),
            in_specs=[
                pl.BlockSpec((BB * L, Pd), lambda g: (g, 0)),
                pl.BlockSpec(wmat.shape, lambda g: (0, 0)),
                pl.BlockSpec(wvec.shape, lambda g: (0, 0)),
            ],
            out_specs=pl.BlockSpec((BB, out_pad), lambda g: (g, 0)),
            scratch_shapes=[
                pltpu.VMEM((BB * S_pad, hid), jnp.float32),   # residual stream
                pltpu.VMEM((S_pad, inner), jnp.float32),      # per-batch attn out
            ],
        ),
        compiler_params=pltpu.CompilerParams(
            dimension_semantics=("parallel",)),     # batch steps independent
    )(patches2d, wmat, wvec)
    return out[:, :out_channels]


# ----------------------------------------------------------------------------
# plain-JAX glue: Padder + einops rearrange, parameter init, reference check
# ----------------------------------------------------------------------------
def images_to_patches(x, p1, p2):
    """Padder (zero-pad H,W to multiples of p1,p2) + rearrange
    'b c (h p1) (w p2) -> b (h w) (p1 p2 c)'."""
    B, C, H, W = x.shape
    ph, pw = (-H) % p1, (-W) % p2
    x = jnp.pad(x, ((0, 0), (0, 0), (0, ph), (0, pw)))
    H2, W2 = H + ph, W + pw
    h, w = H2 // p1, W2 // p2
    x = x.reshape(B, C, h, p1, w, p2)
    x = jnp.transpose(x, (0, 2, 4, 3, 5, 1))        # b h w p1 p2 c
    return x.reshape(B, h * w, p1 * p2 * C)


def init_params(key, *, in_channels, patch_size, hid_dim, mlp_dim, dim_head,
                heads, out_channels, pos_len):
    patch_dim = patch_size * patch_size * in_channels
    inner = dim_head * heads

    def lin(k, fi, fo):
        k1, k2 = jax.random.split(k)
        return (jax.random.normal(k1, (fi, fo), jnp.float32) * 0.05,
                jax.random.normal(k2, (1, fo), jnp.float32) * 0.05)

    ks = jax.random.split(key, 12)
    p = {}
    p['pe_w'], p['pe_b'] = lin(ks[0], patch_dim, hid_dim)
    p['cls_t'] = jax.random.normal(ks[1], (1, hid_dim), jnp.float32) * 0.05
    p['pos_full'] = jax.random.normal(ks[2], (pos_len + 1, hid_dim), jnp.float32) * 0.05
    p['ln1_g'] = jnp.ones((1, hid_dim), jnp.float32)
    p['ln1_b'] = jnp.zeros((1, hid_dim), jnp.float32)
    p['q_w'], p['q_b'] = lin(ks[3], hid_dim, inner)
    p['k_w'], p['k_b'] = lin(ks[4], hid_dim, inner)
    p['v_w'], p['v_b'] = lin(ks[5], hid_dim, inner)
    p['o_w'], p['o_b'] = lin(ks[6], inner, hid_dim)
    p['ln2_g'] = jnp.ones((1, hid_dim), jnp.float32)
    p['ln2_b'] = jnp.zeros((1, hid_dim), jnp.float32)
    p['f1_w'], p['f1_b'] = lin(ks[7], hid_dim, mlp_dim)
    p['f2_w'], p['f2_b'] = lin(ks[8], mlp_dim, hid_dim)
    p['lnh_g'] = jnp.ones((1, hid_dim), jnp.float32)
    p['lnh_b'] = jnp.zeros((1, hid_dim), jnp.float32)
    p['hd_w'], p['hd_b'] = lin(ks[9], hid_dim, out_channels)
    return p


def vit_forward_ref(patches, params, *, dim_head, heads):
    """Pure-JAX reference mirroring the PyTorch forward (eval mode)."""
    x = patches @ params['pe_w'] + params['pe_b']                  # (B, L, hid)
    B = x.shape[0]
    cls = jnp.broadcast_to(params['cls_t'][None], (B, 1, x.shape[-1]))
    x = jnp.concatenate([x, cls], axis=1)                          # cls appended last
    S = x.shape[1]
    x = x + params['pos_e'][None, :S]

    h = _layernorm(x, params['ln1_g'], params['ln1_b'])
    q = h @ params['q_w'] + params['q_b']
    k = h @ params['k_w'] + params['k_b']
    v = h @ params['v_w'] + params['v_b']
    outs = []
    for hh in range(heads):
        sl = slice(hh * dim_head, (hh + 1) * dim_head)
        a = jnp.einsum('bld,bmd->blm', q[..., sl], k[..., sl]) / math.sqrt(dim_head)
        a = a - jnp.max(a, axis=-1, keepdims=True)
        a = jnp.exp(a)
        a = a / jnp.sum(a, axis=-1, keepdims=True)
        outs.append(jnp.einsum('blm,bmd->bld', a, v[..., sl]))
    av = outs[0] if heads == 1 else jnp.concatenate(outs, axis=-1)
    x = x + (av @ params['o_w'] + params['o_b'])

    h2 = _layernorm(x, params['ln2_g'], params['ln2_b'])
    f = _gelu(h2 @ params['f1_w'] + params['f1_b'])
    x = x + (f @ params['f2_w'] + params['f2_b'])

    pooled = x[:, 0]                                               # pool == 'cls'
    ph = _layernorm(pooled, params['lnh_g'], params['lnh_b'])
    return ph @ params['hd_w'] + params['hd_b']


# ----------------------------------------------------------------------------
if __name__ == "__main__":
    # ViT(in_channels=4, out_channels=10, hid_dim=32, mlp_dim=64,
    #     dim_head=32, patch_size=2, depth=1, heads=1, pos_len=128, pool='cls')
    B, C, H, W = 2, 4, 16, 16
    PATCH = 2
    HID, MLP = 32, 64
    DIM_HEAD, HEADS = 32, 1        # module defaults: heads=1, depth=1
    OUT = 10
    POS_LEN = 128

    key = jax.random.PRNGKey(0)
    kx, kp = jax.random.split(key)
    x = jax.random.normal(kx, (B, C, H, W), jnp.float32)

    patches = images_to_patches(x, PATCH, PATCH)                   # (B, L, patch_dim)
    L = patches.shape[1]
    S = L + 1

    params = init_params(kp, in_channels=C, patch_size=PATCH, hid_dim=HID,
                         mlp_dim=MLP, dim_head=DIM_HEAD, heads=HEADS,
                         out_channels=OUT, pos_len=POS_LEN)
    # pos_embed[:, :x.size(1)]
    params['pos_e'] = params.pop('pos_full')[:S]

    out = vit_forward_pallas(patches, params, dim_head=DIM_HEAD, heads=HEADS,
                             out_channels=OUT)
    out = jax.block_until_ready(out)

    ref = vit_forward_ref(patches, params, dim_head=DIM_HEAD, heads=HEADS)
    ref = jax.block_until_ready(ref)

    assert out.shape == (B, OUT), out.shape
    assert jnp.allclose(out, ref, atol=1e-2, rtol=1e-2), (out, ref)
    print("KERNEL_OK")
</pallas_src>

<mosaic_0001>
module attributes {stable_mosaic.version = 11 : i64} {
  func.func @vit_kernel(%arg0: i32, %arg1: memref<128x16xf32, #tpu.memory_space<vmem>>, %arg2: memref<336x128xf32, #tpu.memory_space<vmem>>, %arg3: memref<16x128xf32, #tpu.memory_space<vmem>>, %arg4: memref<2x128xf32, #tpu.memory_space<vmem>>, %arg5: memref<256x32xf32, #tpu.memory_space<vmem>>, %arg6: memref<128x32xf32, #tpu.memory_space<vmem>>) attributes {dimension_semantics = [#tpu.dimension_semantics<parallel>], iteration_bounds = array<i64: 1>, scalar_prefetch = 0 : i64, scratch_operands = 2 : i64, tpu.core_type = #tpu.core_type<tc>, window_params = [{transform_indices = @transform_0, window_bounds = array<i64: 128, 16>}, {pipeline_mode = #tpu.pipeline_mode<synchronous>, transform_indices = @transform_1, window_bounds = array<i64: 336, 128>}, {pipeline_mode = #tpu.pipeline_mode<synchronous>, transform_indices = @transform_2, window_bounds = array<i64: 16, 128>}, {transform_indices = @transform_3, window_bounds = array<i64: 2, 128>}]} {
    %c0 = arith.constant 0 : index
    %c0_0 = arith.constant 0 : index
    %0 = vector.load %arg2[%c0, %c0_0] : memref<336x128xf32, #tpu.memory_space<vmem>>, vector<16x32xf32>
    %c16 = arith.constant 16 : index
    %c0_1 = arith.constant 0 : index
    %1 = vector.load %arg2[%c16, %c0_1] : memref<336x128xf32, #tpu.memory_space<vmem>>, vector<128x32xf32>
    %c144 = arith.constant 144 : index
    %c0_2 = arith.constant 0 : index
    %2 = vector.load %arg2[%c144, %c0_2] : memref<336x128xf32, #tpu.memory_space<vmem>>, vector<32x96xf32>
    %c176 = arith.constant 176 : index
    %c0_3 = arith.constant 0 : index
    %3 = vector.load %arg2[%c176, %c0_3] : memref<336x128xf32, #tpu.memory_space<vmem>>, vector<32x32xf32>
    %c208 = arith.constant 208 : index
    %c0_4 = arith.constant 0 : index
    %4 = vector.load %arg2[%c208, %c0_4] : memref<336x128xf32, #tpu.memory_space<vmem>>, vector<32x64xf32>
    %c240 = arith.constant 240 : index
    %c0_5 = arith.constant 0 : index
    %5 = vector.load %arg2[%c240, %c0_5] : memref<336x128xf32, #tpu.memory_space<vmem>>, vector<64x32xf32>
    %c304 = arith.constant 304 : index
    %c0_6 = arith.constant 0 : index
    %6 = vector.load %arg2[%c304, %c0_6] : memref<336x128xf32, #tpu.memory_space<vmem>>, vector<32x128xf32>
    %c0_7 = arith.constant 0 : index
    %c0_8 = arith.constant 0 : index
    %7 = vector.load %arg3[%c0_7, %c0_8] : memref<16x128xf32, #tpu.memory_space<vmem>>, vector<1x32xf32>
    %c1 = arith.constant 1 : index
    %c0_9 = arith.constant 0 : index
    %8 = vector.load %arg3[%c1, %c0_9] : memref<16x128xf32, #tpu.memory_space<vmem>>, vector<1x32xf32>
    %c2 = arith.constant 2 : index
    %c0_10 = arith.constant 0 : index
    %9 = vector.load %arg3[%c2, %c0_10] : memref<16x128xf32, #tpu.memory_space<vmem>>, vector<1x32xf32>
    %c3 = arith.constant 3 : index
    %c0_11 = arith.constant 0 : index
    %10 = vector.load %arg3[%c3, %c0_11] : memref<16x128xf32, #tpu.memory_space<vmem>>, vector<1x32xf32>
    %c4 = arith.constant 4 : index
    %c0_12 = arith.constant 0 : index
    %11 = vector.load %arg3[%c4, %c0_12] : memref<16x128xf32, #tpu.memory_space<vmem>>, vector<1x96xf32>
    %c5 = arith.constant 5 : index
    %c0_13 = arith.constant 0 : index
    %12 = vector.load %arg3[%c5, %c0_13] : memref<16x128xf32, #tpu.memory_space<vmem>>, vector<1x32xf32>
    %c6 = arith.constant 6 : index
    %c0_14 = arith.constant 0 : index
    %13 = vector.load %arg3[%c6, %c0_14] : memref<16x128xf32, #tpu.memory_space<vmem>>, vector<1x32xf32>
    %c7 = arith.constant 7 : index
    %c0_15 = arith.constant 0 : index
    %14 = vector.load %arg3[%c7, %c0_15] : memref<16x128xf32, #tpu.memory_space<vmem>>, vector<1x32xf32>
    %c8 = arith.constant 8 : index
    %c0_16 = arith.constant 0 : index
    %15 = vector.load %arg3[%c8, %c0_16] : memref<16x128xf32, #tpu.memory_space<vmem>>, vector<1x64xf32>
    %c9 = arith.constant 9 : index
    %c0_17 = arith.constant 0 : index
    %16 = vector.load %arg3[%c9, %c0_17] : memref<16x128xf32, #tpu.memory_space<vmem>>, vector<1x32xf32>
    %c10 = arith.constant 10 : index
    %c0_18 = arith.constant 0 : index
    %17 = vector.load %arg3[%c10, %c0_18] : memref<16x128xf32, #tpu.memory_space<vmem>>, vector<1x32xf32>
    %c11 = arith.constant 11 : index
    %c0_19 = arith.constant 0 : index
    %18 = vector.load %arg3[%c11, %c0_19] : memref<16x128xf32, #tpu.memory_space<vmem>>, vector<1x32xf32>
    %c12 = arith.constant 12 : index
    %c0_20 = arith.constant 0 : index
    %19 = vector.load %arg3[%c12, %c0_20] : memref<16x128xf32, #tpu.memory_space<vmem>>, vector<1x128xf32>
    %c0_21 = arith.constant 0 : index
    %c0_22 = arith.constant 0 : index
    %20 = vector.load %arg1[%c0_21, %c0_22] : memref<128x16xf32, #tpu.memory_space<vmem>>, vector<128x16xf32>
    %cst = arith.constant dense<0.000000e+00> : vector<128x32xf32>
    %21 = tpu.matmul %20, %0, %cst {dimension_numbers = #tpu.dot_dimension_numbers<[1], [0], [0], [1], [0, 0, 1, 1], [], []>} : vector<128x16xf32>, vector<16x32xf32>, vector<128x32xf32> -> vector<128x32xf32>
    %22 = vector.broadcast %7 : vector<1x32xf32> to vector<128x32xf32>
    %23 = arith.addf %21, %22 : vector<128x32xf32>
    %24 = tpu.iota {dimensions = array<i32: 0>} : vector<64x32xi32>
    %c0_i32 = arith.constant 0 : i32
    %25 = vector.broadcast %c0_i32 : i32 to vector<64x32xi32>
    %26 = arith.cmpi eq, %24, %25 : vector<64x32xi32>
    %cst_23 = arith.constant 0.000000e+00 : f32
    %27 = vector.shape_cast %8 : vector<1x32xf32> to vector<1x32xf32>
    %28 = vector.broadcast %27 : vector<1x32xf32> to vector<64x32xf32>
    %29 = vector.broadcast %cst_23 : f32 to vector<64x32xf32>
    %30 = arith.select %26, %28, %29 : vector<64x32xi1>, vector<64x32xf32>
    %31 = vector.extract_strided_slice %1 {offsets = [64, 0], sizes = [64, 32], strides = [1, 1]} : vector<128x32xf32> to vector<64x32xf32>
    %32 = arith.addf %30, %31 : vector<64x32xf32>
    %33 = vector.extract_strided_slice %23 {offsets = [0, 0], sizes = [64, 32], strides = [1, 1]} : vector<128x32xf32> to vector<64x32xf32>
    %34 = vector.extract_strided_slice %1 {offsets = [0, 0], sizes = [64, 32], strides = [1, 1]} : vector<128x32xf32> to vector<64x32xf32>
    %35 = arith.addf %33, %34 : vector<64x32xf32>
    %c0_24 = arith.constant 0 : index
    %c0_25 = arith.constant 0 : index
    %36 = vector.load %arg5[%c0_24, %c0_25] : memref<256x32xf32, #tpu.memory_space<vmem>>, vector<64x32xf32>
    tpu.vector_store %arg5[%c0_24, %c0_25], %35 {strides = array<i32>} : memref<256x32xf32, #tpu.memory_space<vmem>>, vector<64x32xf32>,
    %c64 = arith.constant 64 : index
    %c0_26 = arith.constant 0 : index
    %37 = vector.load %arg5[%c64, %c0_26] : memref<256x32xf32, #tpu.memory_space<vmem>>, vector<64x32xf32>
    tpu.vector_store %arg5[%c64, %c0_26], %32 {strides = array<i32>} : memref<256x32xf32, #tpu.memory_space<vmem>>, vector<64x32xf32>,
    %38 = vector.extract_strided_slice %23 {offsets = [64, 0], sizes = [64, 32], strides = [1, 1]} : vector<128x32xf32> to vector<64x32xf32>
    %39 = vector.extract_strided_slice %1 {offsets = [0, 0], sizes = [64, 32], strides = [1, 1]} : vector<128x32xf32> to vector<64x32xf32>
    %40 = arith.addf %38, %39 : vector<64x32xf32>
    %c128 = arith.constant 128 : index
    %c0_27 = arith.constant 0 : index
    %41 = vector.load %arg5[%c128, %c0_27] : memref<256x32xf32, #tpu.memory_space<vmem>>, vector<64x32xf32>
    tpu.vector_store %arg5[%c128, %c0_27], %40 {strides = array<i32>} : memref<256x32xf32, #tpu.memory_space<vmem>>, vector<64x32xf32>,
    %c192 = arith.constant 192 : index
    %c0_28 = arith.constant 0 : index
    %42 = vector.load %arg5[%c192, %c0_28] : memref<256x32xf32, #tpu.memory_space<vmem>>, vector<64x32xf32>
    tpu.vector_store %arg5[%c192, %c0_28], %32 {strides = array<i32>} : memref<256x32xf32, #tpu.memory_space<vmem>>, vector<64x32xf32>,
    %c0_29 = arith.constant 0 : index
    %c0_30 = arith.constant 0 : index
    %43 = vector.load %arg5[%c0_29, %c0_30] : memref<256x32xf32, #tpu.memory_space<vmem>>, vector<256x32xf32>
    %cst_31 = arith.constant dense<0.000000e+00> : vector<256xf32>
    %44 = vector.multi_reduction <add>, %43, %cst_31 [1] : vector<256x32xf32> to vector<256xf32>
    %45 = vector.shape_cast %44 : vector<256xf32> to vector<256x1xf32>
    %cst_32 = arith.constant 3.200000e+01 : f32
    %46 = vector.broadcast %cst_32 : f32 to vector<256x1xf32>
    %47 = arith.divf %45, %46 : vector<256x1xf32>
    %48 = vector.broadcast %47 : vector<256x1xf32> to vector<256x32xf32>
    %49 = arith.subf %43, %48 : vector<256x32xf32>
    %50 = arith.mulf %49, %49 : vector<256x32xf32>
    %cst_33 = arith.constant dense<0.000000e+00> : vector<256xf32>
    %51 = vector.multi_reduction <add>, %50, %cst_33 [1] : vector<256x32xf32> to vector<256xf32>
    %52 = vector.shape_cast %51 : vector<256xf32> to vector<256x1xf32>
    %cst_34 = arith.constant 3.200000e+01 : f32
    %53 = vector.broadcast %cst_34 : f32 to vector<256x1xf32>
    %54 = arith.divf %52, %53 : vector<256x1xf32>
    %55 = vector.broadcast %47 : vector<256x1xf32> to vector<256x32xf32>
    %56 = arith.subf %43, %55 : vector<256x32xf32>
    %cst_35 = arith.constant 9.99999974E-6 : f32
    %57 = vector.broadcast %cst_35 : f32 to vector<256x1xf32>
    %58 = arith.addf %54, %57 : vector<256x1xf32>
    %59 = math.rsqrt %58 : vector<256x1xf32>
    %60 = vector.broadcast %59 : vector<256x1xf32> to vector<256x32xf32>
    %61 = arith.mulf %56, %60 : vector<256x32xf32>
    %62 = vector.broadcast %9 : vector<1x32xf32> to vector<256x32xf32>
    %63 = arith.mulf %61, %62 : vector<256x32xf32>
    %64 = vector.broadcast %10 : vector<1x32xf32> to vector<256x32xf32>
    %65 = arith.addf %63, %64 : vector<256x32xf32>
    %cst_36 = arith.constant dense<0.000000e+00> : vector<256x96xf32>
    %66 = tpu.matmul %65, %2, %cst_36 {dimension_numbers = #tpu.dot_dimension_numbers<[1], [0], [0], [1], [0, 0, 1, 1], [], []>} : vector<256x32xf32>, vector<32x96xf32>, vector<256x96xf32> -> vector<256x96xf32>
    %67 = vector.broadcast %11 : vector<1x96xf32> to vector<256x96xf32>
    %68 = arith.addf %66, %67 : vector<256x96xf32>
    %69 = tpu.iota {dimensions = array<i32: 1>} : vector<128x128xi32>
    %c65_i32 = arith.constant 65 : i32
    %70 = vector.broadcast %c65_i32 : i32 to vector<128x128xi32>
    %71 = arith.cmpi slt, %69, %70 : vector<128x128xi32>
    %72 = vector.extract_strided_slice %68 {offsets = [0, 0], sizes = [128, 32], strides = [1, 1]} : vector<256x96xf32> to vector<128x32xf32>
    %73 = vector.extract_strided_slice %68 {offsets = [0, 32], sizes = [128, 32], strides = [1, 1]} : vector<256x96xf32> to vector<128x32xf32>
    %74 = vector.extract_strided_slice %68 {offsets = [0, 64], sizes = [128, 32], strides = [1, 1]} : vector<256x96xf32> to vector<128x32xf32>
    %cst_37 = arith.constant dense<0.000000e+00> : vector<128x128xf32>
    %75 = tpu.matmul %72, %73, %cst_37 {dimension_numbers = #tpu.dot_dimension_numbers<[1], [1], [0], [0], [0, 0, 1, 0], [], []>} : vector<128x32xf32>, vector<128x32xf32>, vector<128x128xf32> -> vector<128x128xf32>
    %cst_38 = arith.constant -1.000000e+30 : f32
    %76 = vector.broadcast %cst_38 : f32 to vector<128x128xf32>
    %77 = arith.select %71, %75, %76 : vector<128x128xi1>, vector<128x128xf32>
    %cst_39 = arith.constant dense<0xFF800000> : vector<128xf32>
    %78 = vector.multi_reduction <maximumf>, %77, %cst_39 [1] : vector<128x128xf32> to vector<128xf32>
    %79 = vector.shape_cast %78 : vector<128xf32> to vector<128x1xf32>
    %80 = vector.broadcast %79 : vector<128x1xf32> to vector<128x128xf32>
    %81 = arith.subf %77, %80 : vector<128x128xf32>
    %82 = math.exp %81 : vector<128x128xf32>
    %cst_40 = arith.constant dense<0.000000e+00> : vector<128xf32>
    %83 = vector.multi_reduction <add>, %82, %cst_40 [1] : vector<128x128xf32> to vector<128xf32>
    %84 = vector.shape_cast %83 : vector<128xf32> to vector<128x1xf32>
    %85 = tpu.reciprocal %84 {approx = true} : vector<128x1xf32> -> vector<128x1xf32>
    %86 = vector.broadcast %85 : vector<128x1xf32> to vector<128x128xf32>
    %87 = arith.mulf %82, %86 : vector<128x128xf32>
    %cst_41 = arith.constant dense<0.000000e+00> : vector<128x32xf32>
    %88 = tpu.matmul %87, %74, %cst_41 {dimension_numbers = #tpu.dot_dimension_numbers<[1], [0], [0], [1], [0, 0, 1, 1], [], []>} : vector<128x128xf32>, vector<128x32xf32>, vector<128x32xf32> -> vector<128x32xf32>
    %c0_42 = arith.constant 0 : index
    %c0_43 = arith.constant 0 : index
    %89 = vector.load %arg6[%c0_42, %c0_43] : memref<128x32xf32, #tpu.memory_space<vmem>>, vector<128x32xf32>
    tpu.vector_store %arg6[%c0_42, %c0_43], %88 {strides = array<i32>} : memref<128x32xf32, #tpu.memory_space<vmem>>, vector<128x32xf32>,
    %c0_44 = arith.constant 0 : index
    %c0_45 = arith.constant 0 : index
    %90 = vector.load %arg6[%c0_44, %c0_45] : memref<128x32xf32, #tpu.memory_space<vmem>>, vector<128x32xf32>
    %cst_46 = arith.constant dense<0.000000e+00> : vector<128x32xf32>
    %91 = tpu.matmul %90, %3, %cst_46 {dimension_numbers = #tpu.dot_dimension_numbers<[1], [0], [0], [1], [0, 0, 1, 1], [], []>} : vector<128x32xf32>, vector<32x32xf32>, vector<128x32xf32> -> vector<128x32xf32>
    %92 = vector.broadcast %12 : vector<1x32xf32> to vector<128x32xf32>
    %93 = arith.addf %91, %92 : vector<128x32xf32>
    %94 = vector.extract_strided_slice %43 {offsets = [0, 0], sizes = [128, 32], strides = [1, 1]} : vector<256x32xf32> to vector<128x32xf32>
    %95 = arith.addf %94, %93 : vector<128x32xf32>
    %c0_47 = arith.constant 0 : index
    %c0_48 = arith.constant 0 : index
    %96 = vector.load %arg5[%c0_47, %c0_48] : memref<256x32xf32, #tpu.memory_space<vmem>>, vector<128x32xf32>
    tpu.vector_store %arg5[%c0_47, %c0_48], %95 {strides = array<i32>} : memref<256x32xf32, #tpu.memory_space<vmem>>, vector<128x32xf32>,
    %97 = vector.extract_strided_slice %68 {offsets = [128, 0], sizes = [128, 32], strides = [1, 1]} : vector<256x96xf32> to vector<128x32xf32>
    %98 = vector.extract_strided_slice %68 {offsets = [128, 32], sizes = [128, 32], strides = [1, 1]} : vector<256x96xf32> to vector<128x32xf32>
    %99 = vector.extract_strided_slice %68 {offsets = [128, 64], sizes = [128, 32], strides = [1, 1]} : vector<256x96xf32> to vector<128x32xf32>
    %cst_49 = arith.constant dense<0.000000e+00> : vector<128x128xf32>
    %100 = tpu.matmul %97, %98, %cst_49 {dimension_numbers = #tpu.dot_dimension_numbers<[1], [1], [0], [0], [0, 0, 1, 0], [], []>} : vector<128x32xf32>, vector<128x32xf32>, vector<128x128xf32> -> vector<128x128xf32>
    %cst_50 = arith.constant -1.000000e+30 : f32
    %101 = vector.broadcast %cst_50 : f32 to vector<128x128xf32>
    %102 = arith.select %71, %100, %101 : vector<128x128xi1>, vector<128x128xf32>
    %cst_51 = arith.constant dense<0xFF800000> : vector<128xf32>
    %103 = vector.multi_reduction <maximumf>, %102, %cst_51 [1] : vector<128x128xf32> to vector<128xf32>
    %104 = vector.shape_cast %103 : vector<128xf32> to vector<128x1xf32>
    %105 = vector.broadcast %104 : vector<128x1xf32> to vector<128x128xf32>
    %106 = arith.subf %102, %105 : vector<128x128xf32>
    %107 = math.exp %106 : vector<128x128xf32>
    %cst_52 = arith.constant dense<0.000000e+00> : vector<128xf32>
    %108 = vector.multi_reduction <add>, %107, %cst_52 [1] : vector<128x128xf32> to vector<128xf32>
    %109 = vector.shape_cast %108 : vector<128xf32> to vector<128x1xf32>
    %110 = tpu.reciprocal %109 {approx = true} : vector<128x1xf32> -> vector<128x1xf32>
    %111 = vector.broadcast %110 : vector<128x1xf32> to vector<128x128xf32>
    %112 = arith.mulf %107, %111 : vector<128x128xf32>
    %cst_53 = arith.constant dense<0.000000e+00> : vector<128x32xf32>
    %113 = tpu.matmul %112, %99, %cst_53 {dimension_numbers = #tpu.dot_dimension_numbers<[1], [0], [0], [1], [0, 0, 1, 1], [], []>} : vector<128x128xf32>, vector<128x32xf32>, vector<128x32xf32> -> vector<128x32xf32>
    %c0_54 = arith.constant 0 : index
    %c0_55 = arith.constant 0 : index
    %114 = vector.load %arg6[%c0_54, %c0_55] : memref<128x32xf32, #tpu.memory_space<vmem>>, vector<128x32xf32>
    tpu.vector_store %arg6[%c0_54, %c0_55], %113 {strides = array<i32>} : memref<128x32xf32, #tpu.memory_space<vmem>>, vector<128x32xf32>,
    %c0_56 = arith.constant 0 : index
    %c0_57 = arith.constant 0 : index
    %115 = vector.load %arg6[%c0_56, %c0_57] : memref<128x32xf32, #tpu.memory_space<vmem>>, vector<128x32xf32>
    %cst_58 = arith.constant dense<0.000000e+00> : vector<128x32xf32>
    %116 = tpu.matmul %115, %3, %cst_58 {dimension_numbers = #tpu.dot_dimension_numbers<[1], [0], [0], [1], [0, 0, 1, 1], [], []>} : vector<128x32xf32>, vector<32x32xf32>, vector<128x32xf32> -> vector<128x32xf32>
    %117 = vector.broadcast %12 : vector<1x32xf32> to vector<128x32xf32>
    %118 = arith.addf %116, %117 : vector<128x32xf32>
    %119 = vector.extract_strided_slice %43 {offsets = [128, 0], sizes = [128, 32], strides = [1, 1]} : vector<256x32xf32> to vector<128x32xf32>
    %120 = arith.addf %119, %118 : vector<128x32xf32>
    %c128_59 = arith.constant 128 : index
    %c0_60 = arith.constant 0 : index
    %121 = vector.load %arg5[%c128_59, %c0_60] : memref<256x32xf32, #tpu.memory_space<vmem>>, vector<128x32xf32>
    tpu.vector_store %arg5[%c128_59, %c0_60], %120 {strides = array<i32>} : memref<256x32xf32, #tpu.memory_space<vmem>>, vector<128x32xf32>,
    %c0_61 = arith.constant 0 : index
    %c0_62 = arith.constant 0 : index
    %122 = vector.load %arg5[%c0_61, %c0_62] : memref<256x32xf32, #tpu.memory_space<vmem>>, vector<256x32xf32>
    %cst_63 = arith.constant dense<0.000000e+00> : vector<256xf32>
    %123 = vector.multi_reduction <add>, %122, %cst_63 [1] : vector<256x32xf32> to vector<256xf32>
    %124 = vector.shape_cast %123 : vector<256xf32> to vector<256x1xf32>
    %cst_64 = arith.constant 3.200000e+01 : f32
    %125 = vector.broadcast %cst_64 : f32 to vector<256x1xf32>
    %126 = arith.divf %124, %125 : vector<256x1xf32>
    %127 = vector.broadcast %126 : vector<256x1xf32> to vector<256x32xf32>
    %128 = arith.subf %122, %127 : vector<256x32xf32>
    %129 = arith.mulf %128, %128 : vector<256x32xf32>
    %cst_65 = arith.constant dense<0.000000e+00> : vector<256xf32>
    %130 = vector.multi_reduction <add>, %129, %cst_65 [1] : vector<256x32xf32> to vector<256xf32>
    %131 = vector.shape_cast %130 : vector<256xf32> to vector<256x1xf32>
    %cst_66 = arith.constant 3.200000e+01 : f32
    %132 = vector.broadcast %cst_66 : f32 to vector<256x1xf32>
    %133 = arith.divf %131, %132 : vector<256x1xf32>
    %134 = vector.broadcast %126 : vector<256x1xf32> to vector<256x32xf32>
    %135 = arith.subf %122, %134 : vector<256x32xf32>
    %cst_67 = arith.constant 9.99999974E-6 : f32
    %136 = vector.broadcast %cst_67 : f32 to vector<256x1xf32>
    %137 = arith.addf %133, %136 : vector<256x1xf32>
    %138 = math.rsqrt %137 : vector<256x1xf32>
    %139 = vector.broadcast %138 : vector<256x1xf32> to vector<256x32xf32>
    %140 = arith.mulf %135, %139 : vector<256x32xf32>
    %141 = vector.broadcast %13 : vector<1x32xf32> to vector<256x32xf32>
    %142 = arith.mulf %140, %141 : vector<256x32xf32>
    %143 = vector.broadcast %14 : vector<1x32xf32> to vector<256x32xf32>
    %144 = arith.addf %142, %143 : vector<256x32xf32>
    %cst_68 = arith.constant dense<0.000000e+00> : vector<256x64xf32>
    %145 = tpu.matmul %144, %4, %cst_68 {dimension_numbers = #tpu.dot_dimension_numbers<[1], [0], [0], [1], [0, 0, 1, 1], [], []>} : vector<256x32xf32>, vector<32x64xf32>, vector<256x64xf32> -> vector<256x64xf32>
    %146 = vector.broadcast %15 : vector<1x64xf32> to vector<256x64xf32>
    %147 = arith.addf %145, %146 : vector<256x64xf32>
    %cst_69 = arith.constant 5.000000e-01 : f32
    %148 = vector.broadcast %cst_69 : f32 to vector<256x64xf32>
    %149 = arith.mulf %148, %147 : vector<256x64xf32>
    %cst_70 = arith.constant 0.707106769 : f32
    %150 = vector.broadcast %cst_70 : f32 to vector<256x64xf32>
    %151 = arith.mulf %147, %150 : vector<256x64xf32>
    %152 = math.absf %151 : vector<256x64xf32>
    %cst_71 = arith.constant 0.327591091 : f32
    %153 = vector.broadcast %cst_71 : f32 to vector<256x64xf32>
    %154 = arith.mulf %153, %152 : vector<256x64xf32>
    %cst_72 = arith.constant 1.000000e+00 : f32
    %155 = vector.broadcast %cst_72 : f32 to vector<256x64xf32>
    %156 = arith.addf %155, %154 : vector<256x64xf32>
    %157 = tpu.reciprocal %156 {approx = true} : vector<256x64xf32> -> vector<256x64xf32>
    %cst_73 = arith.constant 1.06140542 : f32
    %158 = vector.broadcast %cst_73 : f32 to vector<256x64xf32>
    %159 = arith.mulf %158, %157 : vector<256x64xf32>
    %cst_74 = arith.constant -1.45315206 : f32
    %160 = vector.broadcast %cst_74 : f32 to vector<256x64xf32>
    %161 = arith.addf %159, %160 : vector<256x64xf32>
    %162 = arith.mulf %161, %157 : vector<256x64xf32>
    %cst_75 = arith.constant 1.42141378 : f32
    %163 = vector.broadcast %cst_75 : f32 to vector<256x64xf32>
    %164 = arith.addf %162, %163 : vector<256x64xf32>
    %165 = arith.mulf %164, %157 : vector<256x64xf32>
    %cst_76 = arith.constant -0.284496725 : f32
    %166 = vector.broadcast %cst_76 : f32 to vector<256x64xf32>
    %167 = arith.addf %165, %166 : vector<256x64xf32>
    %168 = arith.mulf %167, %157 : vector<256x64xf32>
    %cst_77 = arith.constant 0.254829586 : f32
    %169 = vector.broadcast %cst_77 : f32 to vector<256x64xf32>
    %170 = arith.addf %168, %169 : vector<256x64xf32>
    %171 = arith.mulf %170, %157 : vector<256x64xf32>
    %cst_78 = arith.constant 0.000000e+00 : f32
    %172 = vector.broadcast %cst_78 : f32 to vector<256x64xf32>
    %173 = arith.subf %172, %152 : vector<256x64xf32>
    %174 = arith.mulf %173, %152 : vector<256x64xf32>
    %175 = math.exp %174 : vector<256x64xf32>
    %176 = arith.mulf %171, %175 : vector<256x64xf32>
    %cst_79 = arith.constant 1.000000e+00 : f32
    %177 = vector.broadcast %cst_79 : f32 to vector<256x64xf32>
    %178 = arith.subf %177, %176 : vector<256x64xf32>
    %cst_80 = arith.constant 0.000000e+00 : f32
    %179 = vector.broadcast %cst_80 : f32 to vector<256x64xf32>
    %180 = arith.cmpf oge, %151, %179 : vector<256x64xf32>
    %cst_81 = arith.constant 0.000000e+00 : f32
    %181 = vector.broadcast %cst_81 : f32 to vector<256x64xf32>
    %182 = arith.subf %181, %178 : vector<256x64xf32>
    %183 = arith.select %180, %178, %182 : vector<256x64xi1>, vector<256x64xf32>
    %cst_82 = arith.constant 1.000000e+00 : f32
    %184 = vector.broadcast %cst_82 : f32 to vector<256x64xf32>
    %185 = arith.addf %184, %183 : vector<256x64xf32>
    %186 = arith.mulf %149, %185 : vector<256x64xf32>
    %cst_83 = arith.constant dense<0.000000e+00> : vector<256x32xf32>
    %187 = tpu.matmul %186, %5, %cst_83 {dimension_numbers = #tpu.dot_dimension_numbers<[1], [0], [0], [1], [0, 0, 1, 1], [], []>} : vector<256x64xf32>, vector<64x32xf32>, vector<256x32xf32> -> vector<256x32xf32>
    %188 = arith.addf %122, %187 : vector<256x32xf32>
    %189 = vector.broadcast %16 : vector<1x32xf32> to vector<256x32xf32>
    %190 = arith.addf %188, %189 : vector<256x32xf32>
    %191 = vector.extract_strided_slice %190 {offsets = [0, 0], sizes = [1, 32], strides = [1, 1]} : vector<256x32xf32> to vector<1x32xf32>
    %cst_84 = arith.constant dense<0.000000e+00> : vector<1xf32>
    %192 = vector.multi_reduction <add>, %191, %cst_84 [1] : vector<1x32xf32> to vector<1xf32>
    %193 = vector.shape_cast %192 : vector<1xf32> to vector<1x1xf32>
    %cst_85 = arith.constant 3.200000e+01 : f32
    %194 = vector.broadcast %cst_85 : f32 to vector<1x1xf32>
    %195 = arith.divf %193, %194 : vector<1x1xf32>
    %196 = vector.broadcast %195 : vector<1x1xf32> to vector<1x32xf32>
    %197 = arith.subf %191, %196 : vector<1x32xf32>
    %198 = arith.mulf %197, %197 : vector<1x32xf32>
    %cst_86 = arith.constant dense<0.000000e+00> : vector<1xf32>
    %199 = vector.multi_reduction <add>, %198, %cst_86 [1] : vector<1x32xf32> to vector<1xf32>
    %200 = vector.shape_cast %199 : vector<1xf32> to vector<1x1xf32>
    %cst_87 = arith.constant 3.200000e+01 : f32
    %201 = vector.broadcast %cst_87 : f32 to vector<1x1xf32>
    %202 = arith.divf %200, %201 : vector<1x1xf32>
    %203 = vector.broadcast %195 : vector<1x1xf32> to vector<1x32xf32>
    %204 = arith.subf %191, %203 : vector<1x32xf32>
    %cst_88 = arith.constant 9.99999974E-6 : f32
    %205 = vector.broadcast %cst_88 : f32 to vector<1x1xf32>
    %206 = arith.addf %202, %205 : vector<1x1xf32>
    %207 = math.rsqrt %206 : vector<1x1xf32>
    %208 = vector.broadcast %207 : vector<1x1xf32> to vector<1x32xf32>
    %209 = arith.mulf %204, %208 : vector<1x32xf32>
    %210 = arith.mulf %209, %17 : vector<1x32xf32>
    %211 = arith.addf %210, %18 : vector<1x32xf32>
    %cst_89 = arith.constant dense<0.000000e+00> : vector<1x128xf32>
    %212 = tpu.matmul %211, %6, %cst_89 {dimension_numbers = #tpu.dot_dimension_numbers<[1], [0], [0], [1], [0, 0, 1, 1], [], []>} : vector<1x32xf32>, vector<32x128xf32>, vector<1x128xf32> -> vector<1x128xf32>
    %213 = arith.addf %212, %19 : vector<1x128xf32>
    %c0_90 = arith.constant 0 : index
    %c0_91 = arith.constant 0 : index
    %214 = vector.load %arg4[%c0_90, %c0_91] : memref<2x128xf32, #tpu.memory_space<vmem>>, vector<1x128xf32>
    tpu.vector_store %arg4[%c0_90, %c0_91], %213 {strides = array<i32>} : memref<2x128xf32, #tpu.memory_space<vmem>>, vector<1x128xf32>,
    %215 = vector.extract_strided_slice %190 {offsets = [128, 0], sizes = [1, 32], strides = [1, 1]} : vector<256x32xf32> to vector<1x32xf32>
    %cst_92 = arith.constant dense<0.000000e+00> : vector<1xf32>
    %216 = vector.multi_reduction <add>, %215, %cst_92 [1] : vector<1x32xf32> to vector<1xf32>
    %217 = vector.shape_cast %216 : vector<1xf32> to vector<1x1xf32>
    %cst_93 = arith.constant 3.200000e+01 : f32
    %218 = vector.broadcast %cst_93 : f32 to vector<1x1xf32>
    %219 = arith.divf %217, %218 : vector<1x1xf32>
    %220 = vector.broadcast %219 : vector<1x1xf32> to vector<1x32xf32>
    %221 = arith.subf %215, %220 : vector<1x32xf32>
    %222 = arith.mulf %221, %221 : vector<1x32xf32>
    %cst_94 = arith.constant dense<0.000000e+00> : vector<1xf32>
    %223 = vector.multi_reduction <add>, %222, %cst_94 [1] : vector<1x32xf32> to vector<1xf32>
    %224 = vector.shape_cast %223 : vector<1xf32> to vector<1x1xf32>
    %cst_95 = arith.constant 3.200000e+01 : f32
    %225 = vector.broadcast %cst_95 : f32 to vector<1x1xf32>
    %226 = arith.divf %224, %225 : vector<1x1xf32>
    %227 = vector.broadcast %219 : vector<1x1xf32> to vector<1x32xf32>
    %228 = arith.subf %215, %227 : vector<1x32xf32>
    %cst_96 = arith.constant 9.99999974E-6 : f32
    %229 = vector.broadcast %cst_96 : f32 to vector<1x1xf32>
    %230 = arith.addf %226, %229 : vector<1x1xf32>
    %231 = math.rsqrt %230 : vector<1x1xf32>
    %232 = vector.broadcast %231 : vector<1x1xf32> to vector<1x32xf32>
    %233 = arith.mulf %228, %232 : vector<1x32xf32>
    %234 = arith.mulf %233, %17 : vector<1x32xf32>
    %235 = arith.addf %234, %18 : vector<1x32xf32>
    %cst_97 = arith.constant dense<0.000000e+00> : vector<1x128xf32>
    %236 = tpu.matmul %235, %6, %cst_97 {dimension_numbers = #tpu.dot_dimension_numbers<[1], [0], [0], [1], [0, 0, 1, 1], [], []>} : vector<1x32xf32>, vector<32x128xf32>, vector<1x128xf32> -> vector<1x128xf32>
    %237 = arith.addf %236, %19 : vector<1x128xf32>
    %c1_98 = arith.constant 1 : index
    %c0_99 = arith.constant 0 : index
    %238 = vector.load %arg4[%c1_98, %c0_99] : memref<2x128xf32, #tpu.memory_space<vmem>>, vector<1x128xf32>
    tpu.vector_store %arg4[%c1_98, %c0_99], %237 {strides = array<i32>} : memref<2x128xf32, #tpu.memory_space<vmem>>, vector<1x128xf32>,
    return
  }
  func.func @transform_0(%arg0: i32) -> (i32, i32) {
    %c0_i32 = arith.constant 0 : i32
    %c0_i32_0 = arith.constant 0 : i32
    return %arg0, %c0_i32 : i32, i32
  }
  func.func @transform_1(%arg0: i32) -> (i32, i32) {
    %c0_i32 = arith.constant 0 : i32
    %c0_i32_0 = arith.constant 0 : i32
    %c0_i32_1 = arith.constant 0 : i32
    return %c0_i32, %c0_i32_0 : i32, i32
  }
  func.func @transform_2(%arg0: i32) -> (i32, i32) {
    %c0_i32 = arith.constant 0 : i32
    %c0_i32_0 = arith.constant 0 : i32
    %c0_i32_1 = arith.constant 0 : i32
    return %c0_i32, %c0_i32_0 : i32, i32
  }
  func.func @transform_3(%arg0: i32) -> (i32, i32) {
    %c0_i32 = arith.constant 0 : i32
    %c0_i32_0 = arith.constant 0 : i32
    return %arg0, %c0_i32 : i32, i32
  }
}

</mosaic_0001>

<llo_original>
// kernel: tpu_custom_call.1
$region0: #{tpu_custom_call.1}
  #allocation0 [shape = 'u32[]', space=smem, size = 0x4, offset = 0x4, fixed_abs, tag = 'smem constant byte address 0x4 - core index']
  #allocation1 [shape = 'u32[72,128]{1,0:T(1,128)}', space=vmem, size = 0x9000, scoped, tag = 'internal scratch']
  #allocation2 [shape = 'f32[256,32]{1,0:T(8,128)}', space=vmem, size = 0x20000, scoped, tag = 'scratch operand']
  #allocation3 [shape = 'f32[128,32]{1,0:T(8,128)}', space=vmem, size = 0x10000, scoped, tag = 'scratch operand']
  %s0 = inlined_call_operand.vmem [shape: f32[128,16], index: 0, kind: input, shape index: {}]
  %s1 = inlined_call_operand.hbm [shape: f32[336,128], index: 1, kind: input, shape index: {}]
  %s2 = inlined_call_operand.vmem [shape: f32[16,128], index: 2, kind: input, shape index: {}]
  %s3 = inlined_call_operand.hbm [shape: f32[2,128], index: 3, kind: output, shape index: {}]
  %s4 = sld [smem:[#allocation0]]
  $region26: #{tpu_custom_call.1} parent=0
    _
  %s6 = ssub.s32 1, %s4
  %s7 = scalar_select 0, %s6, %s4
  $region1: #{tpu_custom_call.1} parent=0
    #allocation4 [shape = 'u8[172032]{0}', space=vmem, size = 0x2a000, scoped, tag = 'input window, operand 1, single buffered']
    #allocation5 [shape = 's32[1]{0}', space=sflag, size = 0x4, scoped, tag = 'scoped memory for tpu_custom_call.1']
    #allocation6 [shape = 's32[1]{0}', space=sflag, size = 0x4, scoped, tag = 'scoped memory for tpu_custom_call.1']
    #allocation7 [shape = 'u8[1024]{0}', space=vmem, size = 0x400, scoped, tag = 'output window, operand 0, single buffered']
    %8 = vsyncpa [#allocation5], 0
    %9 = vsyncpa [#allocation6], 0
    // Predicated region
    $region2: #{tpu_custom_call.1} parent=1 // pred_check
      _
    $region3: #{tpu_custom_call.1} parent=1 // pred_check_branch
      %11 = sbr.rel (0) target = $region5
    $region4: #{tpu_custom_call.1} parent=1 // pred_region
      _
    $region5: #{tpu_custom_call.1} parent=1 // pred_fallthru
      _
    // Predicated region
    $region6: #{tpu_custom_call.1} parent=1 // pred_check
      _
    $region7: #{tpu_custom_call.1} parent=1 // pred_check_branch
      %13 = sbr.rel (0) target = $region9
    $region8: #{tpu_custom_call.1} parent=1 // pred_region
      %15 = vsyncadd [#allocation5], 0
      %s16 = sshll.u32 %s1, 4
      %s17 = int_to_ptr.hbm [resolvable:$true] %s16
      %s18 = sshll.u32 [#allocation4], 4
      %s19 = int_to_ptr.vmem [resolvable:$true] %s18
      %24 = dma.hbm_to_vmem [thread:$0]  %s17, 5376, %s19, [#allocation5], 128, 128, 8
    $region9: #{tpu_custom_call.1} parent=1 // pred_fallthru
      _
    // Predicated region
    $region10: #{tpu_custom_call.1} parent=1 // pred_check
      _
    $region11: #{tpu_custom_call.1} parent=1 // pred_check_branch
      %26 = sbr.rel (0) target = $region13
    $region12: #{tpu_custom_call.1} parent=1 // pred_region
      _
    $region13: #{tpu_custom_call.1} parent=1 // pred_fallthru
      _
    // Predicated region
    $region14: #{tpu_custom_call.1} parent=1 // pred_check
      _
    $region15: #{tpu_custom_call.1} parent=1 // pred_check_branch
      %28 = sbr.rel (0) target = $region17
    $region16: #{tpu_custom_call.1} parent=1 // pred_region
      %30 = dma.done [#allocation5], 5376
    $region17: #{tpu_custom_call.1} parent=1 // pred_fallthru
      _
    %v31 = vld [vmem:[#allocation4] sm:$0xff]
    %v32 = vld [vmem:[#allocation4 + $0x8] sm:$0xff]
    %v33 = vld [vmem:[#allocation4 + $0x10] sm:$0xff]
    %v34 = vld [vmem:[#allocation4 + $0x18] sm:$0xff]
    %v35 = vld [vmem:[#allocation4 + $0x20] sm:$0xff]
    %v36 = vld [vmem:[#allocation4 + $0x28] sm:$0xff]
    %v37 = vld [vmem:[#allocation4 + $0x30] sm:$0xff]
    %v38 = vld [vmem:[#allocation4 + $0x38] sm:$0xff]
    %v39 = vld [vmem:[#allocation4 + $0x40] sm:$0xff]
    %v40 = vld [vmem:[#allocation4 + $0x48] sm:$0xff]
    %v41 = vld [vmem:[#allocation4 + $0x50] sm:$0xff]
    %v42 = vld [vmem:[#allocation4 + $0x58] sm:$0xff]
    %v43 = vld [vmem:[#allocation4 + $0x60] sm:$0xff]
    %v44 = vld [vmem:[#allocation4 + $0x68] sm:$0xff]
    %v45 = vld [vmem:[#allocation4 + $0x70] sm:$0xff]
    %v46 = vld [vmem:[#allocation4 + $0x78] sm:$0xff]
    %v47 = vld [vmem:[#allocation4 + $0x80] sm:$0xff]
    %v48 = vld [vmem:[#allocation4 + $0x88] sm:$0xff]
    %v49 = vld [vmem:[#allocation4 + $0x90] sm:$0xff]
    %v50 = vld [vmem:[#allocation4 + $0x98] sm:$0xff]
    %v51 = vld [vmem:[#allocation4 + $0xa0] sm:$0xff]
    %v52 = vld [vmem:[#allocation4 + $0xa8] sm:$0xff]
    %v53 = vld [vmem:[#allocation4 + $0xb0] sm:$0xff]
    %v54 = vld [vmem:[#allocation4 + $0xb8] sm:$0xff]
    %v55 = vld [vmem:[#allocation4 + $0xc0] sm:$0xff]
    %v56 = vld [vmem:[#allocation4 + $0xc8] sm:$0xff]
    %v57 = vld [vmem:[#allocation4 + $0xd0] sm:$0xff]
    %v58 = vld [vmem:[#allocation4 + $0xd8] sm:$0xff]
    %v59 = vld [vmem:[#allocation4 + $0xe0] sm:$0xff]
    %v60 = vld [vmem:[#allocation4 + $0xe8] sm:$0xff]
    %v61 = vld [vmem:[#allocation4 + $0xf0] sm:$0xff]
    %v62 = vld [vmem:[#allocation4 + $0xf8] sm:$0xff]
    %v63 = vld [vmem:[#allocation4 + $0x100] sm:$0xff]
    %v64 = vld [vmem:[#allocation4 + $0x108] sm:$0xff]
    %v65 = vld [vmem:[#allocation4 + $0x110] sm:$0xff]
    %v66 = vld [vmem:[#allocation4 + $0x118] sm:$0xff]
    %v67 = vld [vmem:[#allocation4 + $0x120] sm:$0xff]
    %v68 = vld [vmem:[#allocation4 + $0x128] sm:$0xff]
    %v69 = vld [vmem:[#allocation4 + $0x130] sm:$0xff]
    %v70 = vld [vmem:[#allocation4 + $0x138] sm:$0xff]
    %v71 = vld [vmem:[#allocation4 + $0x140] sm:$0xff]
    %v72 = vld [vmem:[#allocation4 + $0x148] sm:$0xff]
    %v73 = vld [vmem:[%s2] sm:$0x1]
    %v74 = vld [vmem:[%s2 + $0x1] sm:$0x1]
    %v75 = vld [vmem:[%s2 + $0x2] sm:$0x1]
    %v76 = vld [vmem:[%s2 + $0x3] sm:$0x1]
    %v77 = vld [vmem:[%s2 + $0x4] sm:$0x1]
    %v78 = vld [vmem:[%s2 + $0x5] sm:$0x1]
    %v79 = vld [vmem:[%s2 + $0x6] sm:$0x1]
    %v80 = vld [vmem:[%s2 + $0x7] sm:$0x1]
    %v81 = vld [vmem:[%s2 + $0x8] sm:$0x1]
    %v82 = vld [vmem:[%s2 + $0x9] sm:$0x1]
    %v83 = vld [vmem:[%s2 + $0xa] sm:$0x1]
    %v84 = vld [vmem:[%s2 + $0xb] sm:$0x1]
    %v85 = vld [vmem:[%s2 + $0xc] sm:$0x1]
    %v86 = vld [vmem:[%s0] sm:$0xff]
    %v87 = vld [vmem:[%s0 + $0x8] sm:$0xff]
    %v88 = vld [vmem:[%s0 + $0x10] sm:$0xff]
    %v89 = vld [vmem:[%s0 + $0x18] sm:$0xff]
    %v90 = vld [vmem:[%s0 + $0x20] sm:$0xff]
    %v91 = vld [vmem:[%s0 + $0x28] sm:$0xff]
    %v92 = vld [vmem:[%s0 + $0x30] sm:$0xff]
    %v93 = vld [vmem:[%s0 + $0x38] sm:$0xff]
    %v94 = vld [vmem:[%s0 + $0x40] sm:$0xff]
    %v95 = vld [vmem:[%s0 + $0x48] sm:$0xff]
    %v96 = vld [vmem:[%s0 + $0x50] sm:$0xff]
    %v97 = vld [vmem:[%s0 + $0x58] sm:$0xff]
    %v98 = vld [vmem:[%s0 + $0x60] sm:$0xff]
    %v99 = vld [vmem:[%s0 + $0x68] sm:$0xff]
    %v100 = vld [vmem:[%s0 + $0x70] sm:$0xff]
    %v101 = vld [vmem:[%s0 + $0x78] sm:$0xff]
    %v102 = vperm.slane %v73, 0
    %vm103 = vcmask 130048
    %v105 = vsel %vm103, %v86, 0
    %v108 = vsel %vm103, %v87, 0
    %v111 = vsel %vm103, %v88, 0
    %v114 = vsel %vm103, %v89, 0
    %v117 = vsel %vm103, %v90, 0
    %v120 = vsel %vm103, %v91, 0
    %v123 = vsel %vm103, %v92, 0
    %v126 = vsel %vm103, %v93, 0
    %v129 = vsel %vm103, %v94, 0
    %v132 = vsel %vm103, %v95, 0
    %v135 = vsel %vm103, %v96, 0
    %v138 = vsel %vm103, %v97, 0
    %v141 = vsel %vm103, %v98, 0
    %v144 = vsel %vm103, %v99, 0
    %v147 = vsel %vm103, %v100, 0
    %v150 = vsel %vm103, %v101, 0
    %152 = vmatpush.msra.mxu0 0.0
    %153 = vmatpush.msra.mxu0 0.0
    %154 = vmatpush.msra.mxu0 0.0
    %155 = vmatpush.msra.mxu0 0.0
    %156 = vmatpush.msra.mxu0 0.0
    %157 = vmatpush.msra.mxu0 0.0
    %158 = vmatpush.msra.mxu0 0.0
    %159 = vmatpush.msra.mxu0 0.0
    %160 = vmatpush.msra.mxu0 0.0
    %161 = vmatpush.msra.mxu0 0.0
    %162 = vmatpush.msra.mxu0 0.0
    %163 = vmatpush.msra.mxu0 0.0
    %164 = vmatpush.msra.mxu0 0.0
    %165 = vmatpush.msra.mxu0 0.0
    %166 = vmatpush.msra.mxu0 %v32
    %167 = vmatpush.msra.mxu0 %v31
    %168 = vmatmul.f32.gmra.mxu0 %v105
    %v169 = vpop.f32.mrf.mxu0
    %v170 = vadd.f32 %v102, %v169
    %171 = vmatmul.f32.gmra.mxu0 %v108
    %v172 = vpop.f32.mrf.mxu0
    %v173 = vadd.f32 %v102, %v172
    %174 = vmatmul.f32.gmra.mxu0 %v111
    %v175 = vpop.f32.mrf.mxu0
    %v176 = vadd.f32 %v102, %v175
    %177 = vmatmul.f32.gmra.mxu0 %v114
    %v178 = vpop.f32.mrf.mxu0
    %v179 = vadd.f32 %v102, %v178
    %180 = vmatmul.f32.gmra.mxu0 %v117
    %v181 = vpop.f32.mrf.mxu0
    %v182 = vadd.f32 %v102, %v181
    %183 = vmatmul.f32.gmra.mxu0 %v120
    %v184 = vpop.f32.mrf.mxu0
    %v185 = vadd.f32 %v102, %v184
    %186 = vmatmul.f32.gmra.mxu0 %v123
    %v187 = vpop.f32.mrf.mxu0
    %v188 = vadd.f32 %v102, %v187
    %189 = vmatmul.f32.gmra.mxu0 %v126
    %v190 = vpop.f32.mrf.mxu0
    %v191 = vadd.f32 %v102, %v190
    %192 = vmatmul.f32.gmra.mxu0 %v129
    %v193 = vpop.f32.mrf.mxu0
    %v194 = vadd.f32 %v102, %v193
    %195 = vmatmul.f32.gmra.mxu0 %v132
    %v196 = vpop.f32.mrf.mxu0
    %v197 = vadd.f32 %v102, %v196
    %198 = vmatmul.f32.gmra.mxu0 %v135
    %v199 = vpop.f32.mrf.mxu0
    %v200 = vadd.f32 %v102, %v199
    %201 = vmatmul.f32.gmra.mxu0 %v138
    %v202 = vpop.f32.mrf.mxu0
    %v203 = vadd.f32 %v102, %v202
    %204 = vmatmul.f32.gmra.mxu0 %v141
    %v205 = vpop.f32.mrf.mxu0
    %v206 = vadd.f32 %v102, %v205
    %207 = vmatmul.f32.gmra.mxu0 %v144
    %v208 = vpop.f32.mrf.mxu0
    %v209 = vadd.f32 %v102, %v208
    %210 = vmatmul.f32.gmra.mxu0 %v147
    %v211 = vpop.f32.mrf.mxu0
    %v212 = vadd.f32 %v102, %v211
    %213 = vmatmul.f32.gmra.mxu0 %v150
    %v214 = vpop.f32.mrf.mxu0
    %v215 = vadd.f32 %v102, %v214
    %216 = vdwg.mxu0
    %v217 = vlaneseq
    %v218 = vshrl.u32 %v217, 7
    %v219 = vadd.s32 %v218, 8
    %v220 = vadd.s32 %v218, 16
    %v221 = vadd.s32 %v218, 24
    %v222 = vadd.s32 %v218, 32
    %v223 = vadd.s32 %v218, 40
    %v224 = vadd.s32 %v218, 48
    %v225 = vadd.s32 %v218, 56
    %vm226 = vcmp.eq.s32.totalorder %v218, 0
    %vm227 = vcmp.eq.s32.totalorder %v219, 0
    %vm228 = vcmp.eq.s32.totalorder %v220, 0
    %vm229 = vcmp.eq.s32.totalorder %v221, 0
    %vm230 = vcmp.eq.s32.totalorder %v222, 0
    %vm231 = vcmp.eq.s32.totalorder %v223, 0
    %vm232 = vcmp.eq.s32.totalorder %v224, 0
    %vm233 = vcmp.eq.s32.totalorder %v225, 0
    %v234 = vperm.slane %v74, 0
    %v235 = vsel %vm226, %v234, 0.0
    %v236 = vsel %vm227, %v234, 0.0
    %v237 = vsel %vm228, %v234, 0.0
    %v238 = vsel %vm229, %v234, 0.0
    %v239 = vsel %vm230, %v234, 0.0
    %v240 = vsel %vm231, %v234, 0.0
    %v241 = vsel %vm232, %v234, 0.0
    %v242 = vsel %vm233, %v234, 0.0
    %v243 = vadd.f32 %v235, %v41
    %v244 = vadd.f32 %v236, %v42
    %v245 = vadd.f32 %v237, %v43
    %v246 = vadd.f32 %v238, %v44
    %v247 = vadd.f32 %v239, %v45
    %v248 = vadd.f32 %v240, %v46
    %v249 = vadd.f32 %v241, %v47
    %v250 = vadd.f32 %v242, %v48
    %v251 = vadd.f32 %v170, %v33
    %v252 = vadd.f32 %v173, %v34
    %v253 = vadd.f32 %v176, %v35
    %v254 = vadd.f32 %v179, %v36
    %v255 = vadd.f32 %v182, %v37
    %v256 = vadd.f32 %v185, %v38
    %v257 = vadd.f32 %v188, %v39
    %v258 = vadd.f32 %v191, %v40
    %vm259 = vcmask 261120
    %260 = vst.msk [vmem:[#allocation2] sm:$0xff] %vm259, %v251
    %261 = vst.msk [vmem:[#allocation2 + $0x8] sm:$0xff] %vm259, %v252
    %262 = vst.msk [vmem:[#allocation2 + $0x10] sm:$0xff] %vm259, %v253
    %263 = vst.msk [vmem:[#allocation2 + $0x18] sm:$0xff] %vm259, %v254
    %264 = vst.msk [vmem:[#allocation2 + $0x20] sm:$0xff] %vm259, %v255
    %265 = vst.msk [vmem:[#allocation2 + $0x28] sm:$0xff] %vm259, %v256
    %266 = vst.msk [vmem:[#allocation2 + $0x30] sm:$0xff] %vm259, %v257
    %267 = vst.msk [vmem:[#allocation2 + $0x38] sm:$0xff] %vm259, %v258
    %268 = vst.msk [vmem:[#allocation2 + $0x40] sm:$0xff] %vm259, %v243
    %269 = vst.msk [vmem:[#allocation2 + $0x48] sm:$0xff] %vm259, %v244
    %270 = vst.msk [vmem:[#allocation2 + $0x50] sm:$0xff] %vm259, %v245
    %271 = vst.msk [vmem:[#allocation2 + $0x58] sm:$0xff] %vm259, %v246
    %272 = vst.msk [vmem:[#allocation2 + $0x60] sm:$0xff] %vm259, %v247
    %273 = vst.msk [vmem:[#allocation2 + $0x68] sm:$0xff] %vm259, %v248
    %274 = vst.msk [vmem:[#allocation2 + $0x70] sm:$0xff] %vm259, %v249
    %275 = vst.msk [vmem:[#allocation2 + $0x78] sm:$0xff] %vm259, %v250
    %v276 = vadd.f32 %v194, %v33
    %v277 = vadd.f32 %v197, %v34
    %v278 = vadd.f32 %v200, %v35
    %v279 = vadd.f32 %v203, %v36
    %v280 = vadd.f32 %v206, %v37
    %v281 = vadd.f32 %v209, %v38
    %v282 = vadd.f32 %v212, %v39
    %v283 = vadd.f32 %v215, %v40
    %284 = vst.msk [vmem:[#allocation2 + $0x80] sm:$0xff] %vm259, %v276
    %285 = vst.msk [vmem:[#allocation2 + $0x88] sm:$0xff] %vm259, %v277
    %286 = vst.msk [vmem:[#allocation2 + $0x90] sm:$0xff] %vm259, %v278
    %287 = vst.msk [vmem:[#allocation2 + $0x98] sm:$0xff] %vm259, %v279
    %288 = vst.msk [vmem:[#allocation2 + $0xa0] sm:$0xff] %vm259, %v280
    %289 = vst.msk [vmem:[#allocation2 + $0xa8] sm:$0xff] %vm259, %v281
    %290 = vst.msk [vmem:[#allocation2 + $0xb0] sm:$0xff] %vm259, %v282
    %291 = vst.msk [vmem:[#allocation2 + $0xb8] sm:$0xff] %vm259, %v283
    %292 = vst.msk [vmem:[#allocation2 + $0xc0] sm:$0xff] %vm259, %v243
    %293 = vst.msk [vmem:[#allocation2 + $0xc8] sm:$0xff] %vm259, %v244
    %294 = vst.msk [vmem:[#allocation2 + $0xd0] sm:$0xff] %vm259, %v245
    %295 = vst.msk [vmem:[#allocation2 + $0xd8] sm:$0xff] %vm259, %v246
    %296 = vst.msk [vmem:[#allocation2 + $0xe0] sm:$0xff] %vm259, %v247
    %297 = vst.msk [vmem:[#allocation2 + $0xe8] sm:$0xff] %vm259, %v248
    %298 = vst.msk [vmem:[#allocation2 + $0xf0] sm:$0xff] %vm259, %v249
    %299 = vst.msk [vmem:[#allocation2 + $0xf8] sm:$0xff] %vm259, %v250
    %v300 = vld [vmem:[#allocation2] sm:$0xff]
    %v301 = vld [vmem:[#allocation2 + $0x8] sm:$0xff]
    %v302 = vld [vmem:[#allocation2 + $0x10] sm:$0xff]
    %v303 = vld [vmem:[#allocation2 + $0x18] sm:$0xff]
    %v304 = vld [vmem:[#allocation2 + $0x20] sm:$0xff]
    %v305 = vld [vmem:[#allocation2 + $0x28] sm:$0xff]
    %v306 = vld [vmem:[#allocation2 + $0x30] sm:$0xff]
    %v307 = vld [vmem:[#allocation2 + $0x38] sm:$0xff]
    %v308 = vld [vmem:[#allocation2 + $0x40] sm:$0xff]
    %v309 = vld [vmem:[#allocation2 + $0x48] sm:$0xff]
    %v310 = vld [vmem:[#allocation2 + $0x50] sm:$0xff]
    %v311 = vld [vmem:[#allocation2 + $0x58] sm:$0xff]
    %v312 = vld [vmem:[#allocation2 + $0x60] sm:$0xff]
    %v313 = vld [vmem:[#allocation2 + $0x68] sm:$0xff]
    %v314 = vld [vmem:[#allocation2 + $0x70] sm:$0xff]
    %v315 = vld [vmem:[#allocation2 + $0x78] sm:$0xff]
    %v316 = vld [vmem:[#allocation2 + $0x80] sm:$0xff]
    %v317 = vld [vmem:[#allocation2 + $0x88] sm:$0xff]
    %v318 = vld [vmem:[#allocation2 + $0x90] sm:$0xff]
    %v319 = vld [vmem:[#allocation2 + $0x98] sm:$0xff]
    %v320 = vld [vmem:[#allocation2 + $0xa0] sm:$0xff]
    %v321 = vld [vmem:[#allocation2 + $0xa8] sm:$0xff]
    %v322 = vld [vmem:[#allocation2 + $0xb0] sm:$0xff]
    %v323 = vld [vmem:[#allocation2 + $0xb8] sm:$0xff]
    %v324 = vld [vmem:[#allocation2 + $0xc0] sm:$0xff]
    %v325 = vld [vmem:[#allocation2 + $0xc8] sm:$0xff]
    %v326 = vld [vmem:[#allocation2 + $0xd0] sm:$0xff]
    %v327 = vld [vmem:[#allocation2 + $0xd8] sm:$0xff]
    %v328 = vld [vmem:[#allocation2 + $0xe0] sm:$0xff]
    %v329 = vld [vmem:[#allocation2 + $0xe8] sm:$0xff]
    %v330 = vld [vmem:[#allocation2 + $0xf0] sm:$0xff]
    %v331 = vld [vmem:[#allocation2 + $0xf8] sm:$0xff]
    %v332 = vsel %vm259, %v300, 0.0
    %333 = vadd.xlane.f32.xlu0 %v332
    %v334 = vpop.xlane.xlu0 %333
    %v335 = vsel %vm259, %v301, 0.0
    %336 = vadd.xlane.f32.xlu0 %v335
    %v337 = vpop.xlane.xlu0 %336
    %v338 = vsel %vm259, %v302, 0.0
    %339 = vadd.xlane.f32.xlu0 %v338
    %v340 = vpop.xlane.xlu0 %339
    %v341 = vsel %vm259, %v303, 0.0
    %342 = vadd.xlane.f32.xlu0 %v341
    %v343 = vpop.xlane.xlu0 %342
    %v344 = vsel %vm259, %v304, 0.0
    %345 = vadd.xlane.f32.xlu0 %v344
    %v346 = vpop.xlane.xlu0 %345
    %v347 = vsel %vm259, %v305, 0.0
    %348 = vadd.xlane.f32.xlu0 %v347
    %v349 = vpop.xlane.xlu0 %348
    %v350 = vsel %vm259, %v306, 0.0
    %351 = vadd.xlane.f32.xlu0 %v350
    %v352 = vpop.xlane.xlu0 %351
    %v353 = vsel %vm259, %v307, 0.0
    %354 = vadd.xlane.f32.xlu0 %v353
    %v355 = vpop.xlane.xlu0 %354
    %v356 = vsel %vm259, %v308, 0.0
    %357 = vadd.xlane.f32.xlu0 %v356
    %v358 = vpop.xlane.xlu0 %357
    %v359 = vsel %vm259, %v309, 0.0
    %360 = vadd.xlane.f32.xlu0 %v359
    %v361 = vpop.xlane.xlu0 %360
    %v362 = vsel %vm259, %v310, 0.0
    %363 = vadd.xlane.f32.xlu0 %v362
    %v364 = vpop.xlane.xlu0 %363
    %v365 = vsel %vm259, %v311, 0.0
    %366 = vadd.xlane.f32.xlu0 %v365
    %v367 = vpop.xlane.xlu0 %366
    %v368 = vsel %vm259, %v312, 0.0
    %369 = vadd.xlane.f32.xlu0 %v368
    %v370 = vpop.xlane.xlu0 %369
    %v371 = vsel %vm259, %v313, 0.0
    %372 = vadd.xlane.f32.xlu0 %v371
    %v373 = vpop.xlane.xlu0 %372
    %v374 = vsel %vm259, %v314, 0.0
    %375 = vadd.xlane.f32.xlu0 %v374
    %v376 = vpop.xlane.xlu0 %375
    %v377 = vsel %vm259, %v315, 0.0
    %378 = vadd.xlane.f32.xlu0 %v377
    %v379 = vpop.xlane.xlu0 %378
    %v380 = vsel %vm259, %v316, 0.0
    %381 = vadd.xlane.f32.xlu0 %v380
    %v382 = vpop.xlane.xlu0 %381
    %v383 = vsel %vm259, %v317, 0.0
    %384 = vadd.xlane.f32.xlu0 %v383
    %v385 = vpop.xlane.xlu0 %384
    %v386 = vsel %vm259, %v318, 0.0
    %387 = vadd.xlane.f32.xlu0 %v386
    %v388 = vpop.xlane.xlu0 %387
    %v389 = vsel %vm259, %v319, 0.0
    %390 = vadd.xlane.f32.xlu0 %v389
    %v391 = vpop.xlane.xlu0 %390
    %v392 = vsel %vm259, %v320, 0.0
    %393 = vadd.xlane.f32.xlu0 %v392
    %v394 = vpop.xlane.xlu0 %393
    %v395 = vsel %vm259, %v321, 0.0
    %396 = vadd.xlane.f32.xlu0 %v395
    %v397 = vpop.xlane.xlu0 %396
    %v398 = vsel %vm259, %v322, 0.0
    %399 = vadd.xlane.f32.xlu0 %v398
    %v400 = vpop.xlane.xlu0 %399
    %v401 = vsel %vm259, %v323, 0.0
    %402 = vadd.xlane.f32.xlu0 %v401
    %v403 = vpop.xlane.xlu0 %402
    %v404 = vsel %vm259, %v324, 0.0
    %405 = vadd.xlane.f32.xlu0 %v404
    %v406 = vpop.xlane.xlu0 %405
    %v407 = vsel %vm259, %v325, 0.0
    %408 = vadd.xlane.f32.xlu0 %v407
    %v409 = vpop.xlane.xlu0 %408
    %v410 = vsel %vm259, %v326, 0.0
    %411 = vadd.xlane.f32.xlu0 %v410
    %v412 = vpop.xlane.xlu0 %411
    %v413 = vsel %vm259, %v327, 0.0
    %414 = vadd.xlane.f32.xlu0 %v413
    %v415 = vpop.xlane.xlu0 %414
    %v416 = vsel %vm259, %v328, 0.0
    %417 = vadd.xlane.f32.xlu0 %v416
    %v418 = vpop.xlane.xlu0 %417
    %v419 = vsel %vm259, %v329, 0.0
    %420 = vadd.xlane.f32.xlu0 %v419
    %v421 = vpop.xlane.xlu0 %420
    %v422 = vsel %vm259, %v330, 0.0
    %423 = vadd.xlane.f32.xlu0 %v422
    %v424 = vpop.xlane.xlu0 %423
    %v425 = vsel %vm259, %v331, 0.0
    %426 = vadd.xlane.f32.xlu0 %v425
    %v427 = vpop.xlane.xlu0 %426
    %v428 = vrcp.pop 32.0
    %v429 = vmul.f32 32.0, %v428
    %v430 = vsub.f32 1.0, %v429
    %v431 = vmul.f32 %v428, %v430
    %v432 = vadd.f32 %v428, %v431
    %vm433 = vweird.f32 %v428
    %v434 = vsel %vm433, %v428, %v432
    %v435 = vmul.f32 %v334, %v434
    %v436 = vmul.f32 %v337, %v434
    %v437 = vmul.f32 %v340, %v434
    %v438 = vmul.f32 %v343, %v434
    %v439 = vmul.f32 %v346, %v434
    %v440 = vmul.f32 %v349, %v434
    %v441 = vmul.f32 %v352, %v434
    %v442 = vmul.f32 %v355, %v434
    %v443 = vmul.f32 %v358, %v434
    %v444 = vmul.f32 %v361, %v434
    %v445 = vmul.f32 %v364, %v434
    %v446 = vmul.f32 %v367, %v434
    %v447 = vmul.f32 %v370, %v434
    %v448 = vmul.f32 %v373, %v434
    %v449 = vmul.f32 %v376, %v434
    %v450 = vmul.f32 %v379, %v434
    %v451 = vmul.f32 %v382, %v434
    %v452 = vmul.f32 %v385, %v434
    %v453 = vmul.f32 %v388, %v434
    %v454 = vmul.f32 %v391, %v434
    %v455 = vmul.f32 %v394, %v434
    %v456 = vmul.f32 %v397, %v434
    %v457 = vmul.f32 %v400, %v434
    %v458 = vmul.f32 %v403, %v434
    %v459 = vmul.f32 %v406, %v434
    %v460 = vmul.f32 %v409, %v434
    %v461 = vmul.f32 %v412, %v434
    %v462 = vmul.f32 %v415, %v434
    %v463 = vmul.f32 %v418, %v434
    %v464 = vmul.f32 %v421, %v434
    %v465 = vmul.f32 %v424, %v434
    %v466 = vmul.f32 %v427, %v434
    %v467 = vsub.f32 %v300, %v435
    %v468 = vsub.f32 %v301, %v436
    %v469 = vsub.f32 %v302, %v437
    %v470 = vsub.f32 %v303, %v438
    %v471 = vsub.f32 %v304, %v439
    %v472 = vsub.f32 %v305, %v440
    %v473 = vsub.f32 %v306, %v441
    %v474 = vsub.f32 %v307, %v442
    %v475 = vsub.f32 %v308, %v443
    %v476 = vsub.f32 %v309, %v444
    %v477 = vsub.f32 %v310, %v445
    %v478 = vsub.f32 %v311, %v446
    %v479 = vsub.f32 %v312, %v447
    %v480 = vsub.f32 %v313, %v448
    %v481 = vsub.f32 %v314, %v449
    %v482 = vsub.f32 %v315, %v450
    %v483 = vsub.f32 %v316, %v451
    %v484 = vsub.f32 %v317, %v452
    %v485 = vsub.f32 %v318, %v453
    %v486 = vsub.f32 %v319, %v454
    %v487 = vsub.f32 %v320, %v455
    %v488 = vsub.f32 %v321, %v456
    %v489 = vsub.f32 %v322, %v457
    %v490 = vsub.f32 %v323, %v458
    %v491 = vsub.f32 %v324, %v459
    %v492 = vsub.f32 %v325, %v460
    %v493 = vsub.f32 %v326, %v461
    %v494 = vsub.f32 %v327, %v462
    %v495 = vsub.f32 %v328, %v463
    %v496 = vsub.f32 %v329, %v464
    %v497 = vsub.f32 %v330, %v465
    %v498 = vsub.f32 %v331, %v466
    %v499 = vmul.f32 %v467, %v467
    %v500 = vmul.f32 %v468, %v468
    %v501 = vmul.f32 %v469, %v469
    %v502 = vmul.f32 %v470, %v470
    %v503 = vmul.f32 %v471, %v471
    %v504 = vmul.f32 %v472, %v472
    %v505 = vmul.f32 %v473, %v473
    %v506 = vmul.f32 %v474, %v474
    %v507 = vmul.f32 %v475, %v475
    %v508 = vmul.f32 %v476, %v476
    %v509 = vmul.f32 %v477, %v477
    %v510 = vmul.f32 %v478, %v478
    %v511 = vmul.f32 %v479, %v479
    %v512 = vmul.f32 %v480, %v480
    %v513 = vmul.f32 %v481, %v481
    %v514 = vmul.f32 %v482, %v482
    %v515 = vmul.f32 %v483, %v483
    %v516 = vmul.f32 %v484, %v484
    %v517 = vmul.f32 %v485, %v485
    %v518 = vmul.f32 %v486, %v486
    %v519 = vmul.f32 %v487, %v487
    %v520 = vmul.f32 %v488, %v488
    %v521 = vmul.f32 %v489, %v489
    %v522 = vmul.f32 %v490, %v490
    %v523 = vmul.f32 %v491, %v491
    %v524 = vmul.f32 %v492, %v492
    %v525 = vmul.f32 %v493, %v493
    %v526 = vmul.f32 %v494, %v494
    %v527 = vmul.f32 %v495, %v495
    %v528 = vmul.f32 %v496, %v496
    %v529 = vmul.f32 %v497, %v497
    %v530 = vmul.f32 %v498, %v498
    %v531 = vsel %vm259, %v499, 0.0
    %532 = vadd.xlane.f32.xlu0 %v531
    %v533 = vpop.xlane.xlu0 %532
    %v534 = vsel %vm259, %v500, 0.0
    %535 = vadd.xlane.f32.xlu0 %v534
    %v536 = vpop.xlane.xlu0 %535
    %v537 = vsel %vm259, %v501, 0.0
    %538 = vadd.xlane.f32.xlu0 %v537
    %v539 = vpop.xlane.xlu0 %538
    %v540 = vsel %vm259, %v502, 0.0
    %541 = vadd.xlane.f32.xlu0 %v540
    %v542 = vpop.xlane.xlu0 %541
    %v543 = vsel %vm259, %v503, 0.0
    %544 = vadd.xlane.f32.xlu0 %v543
    %v545 = vpop.xlane.xlu0 %544
    %v546 = vsel %vm259, %v504, 0.0
    %547 = vadd.xlane.f32.xlu0 %v546
    %v548 = vpop.xlane.xlu0 %547
    %v549 = vsel %vm259, %v505, 0.0
    %550 = vadd.xlane.f32.xlu0 %v549
    %v551 = vpop.xlane.xlu0 %550
    %v552 = vsel %vm259, %v506, 0.0
    %553 = vadd.xlane.f32.xlu0 %v552
    %v554 = vpop.xlane.xlu0 %553
    %v555 = vsel %vm259, %v507, 0.0
    %556 = vadd.xlane.f32.xlu0 %v555
    %v557 = vpop.xlane.xlu0 %556
    %v558 = vsel %vm259, %v508, 0.0
    %559 = vadd.xlane.f32.xlu0 %v558
    %v560 = vpop.xlane.xlu0 %559
    %v561 = vsel %vm259, %v509, 0.0
    %562 = vadd.xlane.f32.xlu0 %v561
    %v563 = vpop.xlane.xlu0 %562
    %v564 = vsel %vm259, %v510, 0.0
    %565 = vadd.xlane.f32.xlu0 %v564
    %v566 = vpop.xlane.xlu0 %565
    %v567 = vsel %vm259, %v511, 0.0
    %568 = vadd.xlane.f32.xlu0 %v567
    %v569 = vpop.xlane.xlu0 %568
    %v570 = vsel %vm259, %v512, 0.0
    %571 = vadd.xlane.f32.xlu0 %v570
    %v572 = vpop.xlane.xlu0 %571
    %v573 = vsel %vm259, %v513, 0.0
    %574 = vadd.xlane.f32.xlu0 %v573
    %v575 = vpop.xlane.xlu0 %574
    %v576 = vsel %vm259, %v514, 0.0
    %577 = vadd.xlane.f32.xlu0 %v576
    %v578 = vpop.xlane.xlu0 %577
    %v579 = vsel %vm259, %v515, 0.0
    %580 = vadd.xlane.f32.xlu0 %v579
    %v581 = vpop.xlane.xlu0 %580
    %v582 = vsel %vm259, %v516, 0.0
    %583 = vadd.xlane.f32.xlu0 %v582
    %v584 = vpop.xlane.xlu0 %583
    %v585 = vsel %vm259, %v517, 0.0
    %586 = vadd.xlane.f32.xlu0 %v585
    %v587 = vpop.xlane.xlu0 %586
    %v588 = vsel %vm259, %v518, 0.0
    %589 = vadd.xlane.f32.xlu0 %v588
    %v590 = vpop.xlane.xlu0 %589
    %v591 = vsel %vm259, %v519, 0.0
    %592 = vadd.xlane.f32.xlu0 %v591
    %v593 = vpop.xlane.xlu0 %592
    %v594 = vsel %vm259, %v520, 0.0
    %595 = vadd.xlane.f32.xlu0 %v594
    %v596 = vpop.xlane.xlu0 %595
    %v597 = vsel %vm259, %v521, 0.0
    %598 = vadd.xlane.f32.xlu0 %v597
    %v599 = vpop.xlane.xlu0 %598
    %v600 = vsel %vm259, %v522, 0.0
    %601 = vadd.xlane.f32.xlu0 %v600
    %v602 = vpop.xlane.xlu0 %601
    %v603 = vsel %vm259, %v523, 0.0
    %604 = vadd.xlane.f32.xlu0 %v603
    %v605 = vpop.xlane.xlu0 %604
    %v606 = vsel %vm259, %v524, 0.0
    %607 = vadd.xlane.f32.xlu0 %v606
    %v608 = vpop.xlane.xlu0 %607
    %v609 = vsel %vm259, %v525, 0.0
    %610 = vadd.xlane.f32.xlu0 %v609
    %v611 = vpop.xlane.xlu0 %610
    %v612 = vsel %vm259, %v526, 0.0
    %613 = vadd.xlane.f32.xlu0 %v612
    %v614 = vpop.xlane.xlu0 %613
    %v615 = vsel %vm259, %v527, 0.0
    %616 = vadd.xlane.f32.xlu0 %v615
    %v617 = vpop.xlane.xlu0 %616
    %v618 = vsel %vm259, %v528, 0.0
    %619 = vadd.xlane.f32.xlu0 %v618
    %v620 = vpop.xlane.xlu0 %619
    %v621 = vsel %vm259, %v529, 0.0
    %622 = vadd.xlane.f32.xlu0 %v621
    %v623 = vpop.xlane.xlu0 %622
    %v624 = vsel %vm259, %v530, 0.0
    %625 = vadd.xlane.f32.xlu0 %v624
    %v626 = vpop.xlane.xlu0 %625
    %v627 = vmul.f32 %v533, %v434
    %v628 = vmul.f32 %v536, %v434
    %v629 = vmul.f32 %v539, %v434
    %v630 = vmul.f32 %v542, %v434
    %v631 = vmul.f32 %v545, %v434
    %v632 = vmul.f32 %v548, %v434
    %v633 = vmul.f32 %v551, %v434
    %v634 = vmul.f32 %v554, %v434
    %v635 = vmul.f32 %v557, %v434
    %v636 = vmul.f32 %v560, %v434
    %v637 = vmul.f32 %v563, %v434
    %v638 = vmul.f32 %v566, %v434
    %v639 = vmul.f32 %v569, %v434
    %v640 = vmul.f32 %v572, %v434
    %v641 = vmul.f32 %v575, %v434
    %v642 = vmul.f32 %v578, %v434
    %v643 = vmul.f32 %v581, %v434
    %v644 = vmul.f32 %v584, %v434
    %v645 = vmul.f32 %v587, %v434
    %v646 = vmul.f32 %v590, %v434
    %v647 = vmul.f32 %v593, %v434
    %v648 = vmul.f32 %v596, %v434
    %v649 = vmul.f32 %v599, %v434
    %v650 = vmul.f32 %v602, %v434
    %v651 = vmul.f32 %v605, %v434
    %v652 = vmul.f32 %v608, %v434
    %v653 = vmul.f32 %v611, %v434
    %v654 = vmul.f32 %v614, %v434
    %v655 = vmul.f32 %v617, %v434
    %v656 = vmul.f32 %v620, %v434
    %v657 = vmul.f32 %v623, %v434
    %v658 = vmul.f32 %v626, %v434
    %v659 = vadd.f32 %v627, 1e-05
    %v660 = vadd.f32 %v628, 1e-05
    %v661 = vadd.f32 %v629, 1e-05
    %v662 = vadd.f32 %v630, 1e-05
    %v663 = vadd.f32 %v631, 1e-05
    %v664 = vadd.f32 %v632, 1e-05
    %v665 = vadd.f32 %v633, 1e-05
    %v666 = vadd.f32 %v634, 1e-05
    %v667 = vadd.f32 %v635, 1e-05
    %v668 = vadd.f32 %v636, 1e-05
    %v669 = vadd.f32 %v637, 1e-05
    %v670 = vadd.f32 %v638, 1e-05
    %v671 = vadd.f32 %v639, 1e-05
    %v672 = vadd.f32 %v640, 1e-05
    %v673 = vadd.f32 %v641, 1e-05
    %v674 = vadd.f32 %v642, 1e-05
    %v675 = vadd.f32 %v643, 1e-05
    %v676 = vadd.f32 %v644, 1e-05
    %v677 = vadd.f32 %v645, 1e-05
    %v678 = vadd.f32 %v646, 1e-05
    %v679 = vadd.f32 %v647, 1e-05
    %v680 = vadd.f32 %v648, 1e-05
    %v681 = vadd.f32 %v649, 1e-05
    %v682 = vadd.f32 %v650, 1e-05
    %v683 = vadd.f32 %v651, 1e-05
    %v684 = vadd.f32 %v652, 1e-05
    %v685 = vadd.f32 %v653, 1e-05
    %v686 = vadd.f32 %v654, 1e-05
    %v687 = vadd.f32 %v655, 1e-05
    %v688 = vadd.f32 %v656, 1e-05
    %v689 = vadd.f32 %v657, 1e-05
    %v690 = vadd.f32 %v658, 1e-05
    %v691 = vrsqrt.pop %v659
    %v692 = vmul.f32 %v691, %v659
    %v693 = vmul.f32 %v692, %v691
    %v694 = vmul.f32 0.5, %v693
    %v695 = vsub.f32 1.5, %v694
    %v696 = vmul.f32 %v691, %v695
    %vm697 = vweird.f32 %v659
    %vm698 = vweird.f32 %v691
    %vm699 = vmor %vm697, %vm698
    %v700 = vsel %vm699, %v691, %v696
    %v701 = vrsqrt.pop %v660
    %v702 = vmul.f32 %v701, %v660
    %v703 = vmul.f32 %v702, %v701
    %v704 = vmul.f32 0.5, %v703
    %v705 = vsub.f32 1.5, %v704
    %v706 = vmul.f32 %v701, %v705
    %vm707 = vweird.f32 %v660
    %vm708 = vweird.f32 %v701
    %vm709 = vmor %vm707, %vm708
    %v710 = vsel %vm709, %v701, %v706
    %v711 = vrsqrt.pop %v661
    %v712 = vmul.f32 %v711, %v661
    %v713 = vmul.f32 %v712, %v711
    %v714 = vmul.f32 0.5, %v713
    %v715 = vsub.f32 1.5, %v714
    %v716 = vmul.f32 %v711, %v715
    %vm717 = vweird.f32 %v661
    %vm718 = vweird.f32 %v711
    %vm719 = vmor %vm717, %vm718
    %v720 = vsel %vm719, %v711, %v716
    %v721 = vrsqrt.pop %v662
    %v722 = vmul.f32 %v721, %v662
    %v723 = vmul.f32 %v722, %v721
    %v724 = vmul.f32 0.5, %v723
    %v725 = vsub.f32 1.5, %v724
    %v726 = vmul.f32 %v721, %v725
    %vm727 = vweird.f32 %v662
    %vm728 = vweird.f32 %v721
    %vm729 = vmor %vm727, %vm728
    %v730 = vsel %vm729, %v721, %v726
    %v731 = vrsqrt.pop %v663
    %v732 = vmul.f32 %v731, %v663
    %v733 = vmul.f32 %v732, %v731
    %v734 = vmul.f32 0.5, %v733
    %v735 = vsub.f32 1.5, %v734
    %v736 = vmul.f32 %v731, %v735
    %vm737 = vweird.f32 %v663
    %vm738 = vweird.f32 %v731
    %vm739 = vmor %vm737, %vm738
    %v740 = vsel %vm739, %v731, %v736
    %v741 = vrsqrt.pop %v664
    %v742 = vmul.f32 %v741, %v664
    %v743 = vmul.f32 %v742, %v741
    %v744 = vmul.f32 0.5, %v743
    %v745 = vsub.f32 1.5, %v744
    %v746 = vmul.f32 %v741, %v745
    %vm747 = vweird.f32 %v664
    %vm748 = vweird.f32 %v741
    %vm749 = vmor %vm747, %vm748
    %v750 = vsel %vm749, %v741, %v746
    %v751 = vrsqrt.pop %v665
    %v752 = vmul.f32 %v751, %v665
    %v753 = vmul.f32 %v752, %v751
    %v754 = vmul.f32 0.5, %v753
    %v755 = vsub.f32 1.5, %v754
    %v756 = vmul.f32 %v751, %v755
    %vm757 = vweird.f32 %v665
    %vm758 = vweird.f32 %v751
    %vm759 = vmor %vm757, %vm758
    %v760 = vsel %vm759, %v751, %v756
    %v761 = vrsqrt.pop %v666
    %v762 = vmul.f32 %v761, %v666
    %v763 = vmul.f32 %v762, %v761
    %v764 = vmul.f32 0.5, %v763
    %v765 = vsub.f32 1.5, %v764
    %v766 = vmul.f32 %v761, %v765
    %vm767 = vweird.f32 %v666
    %vm768 = vweird.f32 %v761
    %vm769 = vmor %vm767, %vm768
    %v770 = vsel %vm769, %v761, %v766
    %v771 = vrsqrt.pop %v667
    %v772 = vmul.f32 %v771, %v667
    %v773 = vmul.f32 %v772, %v771
    %v774 = vmul.f32 0.5, %v773
    %v775 = vsub.f32 1.5, %v774
    %v776 = vmul.f32 %v771, %v775
    %vm777 = vweird.f32 %v667
    %vm778 = vweird.f32 %v771
    %vm779 = vmor %vm777, %vm778
    %v780 = vsel %vm779, %v771, %v776
    %v781 = vrsqrt.pop %v668
    %v782 = vmul.f32 %v781, %v668
    %v783 = vmul.f32 %v782, %v781
    %v784 = vmul.f32 0.5, %v783
    %v785 = vsub.f32 1.5, %v784
    %v786 = vmul.f32 %v781, %v785
    %vm787 = vweird.f32 %v668
    %vm788 = vweird.f32 %v781
    %vm789 = vmor %vm787, %vm788
    %v790 = vsel %vm789, %v781, %v786
    %v791 = vrsqrt.pop %v669
    %v792 = vmul.f32 %v791, %v669
    %v793 = vmul.f32 %v792, %v791
    %v794 = vmul.f32 0.5, %v793
    %v795 = vsub.f32 1.5, %v794
    %v796 = vmul.f32 %v791, %v795
    %vm797 = vweird.f32 %v669
    %vm798 = vweird.f32 %v791
    %vm799 = vmor %vm797, %vm798
    %v800 = vsel %vm799, %v791, %v796
    %v801 = vrsqrt.pop %v670
    %v802 = vmul.f32 %v801, %v670
    %v803 = vmul.f32 %v802, %v801
    %v804 = vmul.f32 0.5, %v803
    %v805 = vsub.f32 1.5, %v804
    %v806 = vmul.f32 %v801, %v805
    %vm807 = vweird.f32 %v670
    %vm808 = vweird.f32 %v801
    %vm809 = vmor %vm807, %vm808
    %v810 = vsel %vm809, %v801, %v806
    %v811 = vrsqrt.pop %v671
    %v812 = vmul.f32 %v811, %v671
    %v813 = vmul.f32 %v812, %v811
    %v814 = vmul.f32 0.5, %v813
    %v815 = vsub.f32 1.5, %v814
    %v816 = vmul.f32 %v811, %v815
    %vm817 = vweird.f32 %v671
    %vm818 = vweird.f32 %v811
    %vm819 = vmor %vm817, %vm818
    %v820 = vsel %vm819, %v811, %v816
    %v821 = vrsqrt.pop %v672
    %v822 = vmul.f32 %v821, %v672
    %v823 = vmul.f32 %v822, %v821
    %v824 = vmul.f32 0.5, %v823
    %v825 = vsub.f32 1.5, %v824
    %v826 = vmul.f32 %v821, %v825
    %vm827 = vweird.f32 %v672
    %vm828 = vweird.f32 %v821
    %vm829 = vmor %vm827, %vm828
    %v830 = vsel %vm829, %v821, %v826
    %v831 = vrsqrt.pop %v673
    %v832 = vmul.f32 %v831, %v673
    %v833 = vmul.f32 %v832, %v831
    %v834 = vmul.f32 0.5, %v833
    %v835 = vsub.f32 1.5, %v834
    %v836 = vmul.f32 %v831, %v835
    %vm837 = vweird.f32 %v673
    %vm838 = vweird.f32 %v831
    %vm839 = vmor %vm837, %vm838
    %v840 = vsel %vm839, %v831, %v836
    %v841 = vrsqrt.pop %v674
    %v842 = vmul.f32 %v841, %v674
    %v843 = vmul.f32 %v842, %v841
    %v844 = vmul.f32 0.5, %v843
    %v845 = vsub.f32 1.5, %v844
    %v846 = vmul.f32 %v841, %v845
    %vm847 = vweird.f32 %v674
    %vm848 = vweird.f32 %v841
    %vm849 = vmor %vm847, %vm848
    %v850 = vsel %vm849, %v841, %v846
    %v851 = vrsqrt.pop %v675
    %v852 = vmul.f32 %v851, %v675
    %v853 = vmul.f32 %v852, %v851
    %v854 = vmul.f32 0.5, %v853
    %v855 = vsub.f32 1.5, %v854
    %v856 = vmul.f32 %v851, %v855
    %vm857 = vweird.f32 %v675
    %vm858 = vweird.f32 %v851
    %vm859 = vmor %vm857, %vm858
    %v860 = vsel %vm859, %v851, %v856
    %v861 = vrsqrt.pop %v676
    %v862 = vmul.f32 %v861, %v676
    %v863 = vmul.f32 %v862, %v861
    %v864 = vmul.f32 0.5, %v863
    %v865 = vsub.f32 1.5, %v864
    %v866 = vmul.f32 %v861, %v865
    %vm867 = vweird.f32 %v676
    %vm868 = vweird.f32 %v861
    %vm869 = vmor %vm867, %vm868
    %v870 = vsel %vm869, %v861, %v866
    %v871 = vrsqrt.pop %v677
    %v872 = vmul.f32 %v871, %v677
    %v873 = vmul.f32 %v872, %v871
    %v874 = vmul.f32 0.5, %v873
    %v875 = vsub.f32 1.5, %v874
    %v876 = vmul.f32 %v871, %v875
    %vm877 = vweird.f32 %v677
    %vm878 = vweird.f32 %v871
    %vm879 = vmor %vm877, %vm878
    %v880 = vsel %vm879, %v871, %v876
    %v881 = vrsqrt.pop %v678
    %v882 = vmul.f32 %v881, %v678
    %v883 = vmul.f32 %v882, %v881
    %v884 = vmul.f32 0.5, %v883
    %v885 = vsub.f32 1.5, %v884
    %v886 = vmul.f32 %v881, %v885
    %vm887 = vweird.f32 %v678
    %vm888 = vweird.f32 %v881
    %vm889 = vmor %vm887, %vm888
    %v890 = vsel %vm889, %v881, %v886
    %v891 = vrsqrt.pop %v679
    %v892 = vmul.f32 %v891, %v679
    %v893 = vmul.f32 %v892, %v891
    %v894 = vmul.f32 0.5, %v893
    %v895 = vsub.f32 1.5, %v894
    %v896 = vmul.f32 %v891, %v895
    %vm897 = vweird.f32 %v679
    %vm898 = vweird.f32 %v891
    %vm899 = vmor %vm897, %vm898
    %v900 = vsel %vm899, %v891, %v896
    %v901 = vrsqrt.pop %v680
    %v902 = vmul.f32 %v901, %v680
    %v903 = vmul.f32 %v902, %v901
    %v904 = vmul.f32 0.5, %v903
    %v905 = vsub.f32 1.5, %v904
    %v906 = vmul.f32 %v901, %v905
    %vm907 = vweird.f32 %v680
    %vm908 = vweird.f32 %v901
    %vm909 = vmor %vm907, %vm908
    %v910 = vsel %vm909, %v901, %v906
    %v911 = vrsqrt.pop %v681
    %v912 = vmul.f32 %v911, %v681
    %v913 = vmul.f32 %v912, %v911
    %v914 = vmul.f32 0.5, %v913
    %v915 = vsub.f32 1.5, %v914
    %v916 = vmul.f32 %v911, %v915
    %vm917 = vweird.f32 %v681
    %vm918 = vweird.f32 %v911
    %vm919 = vmor %vm917, %vm918
    %v920 = vsel %vm919, %v911, %v916
    %v921 = vrsqrt.pop %v682
    %v922 = vmul.f32 %v921, %v682
    %v923 = vmul.f32 %v922, %v921
    %v924 = vmul.f32 0.5, %v923
    %v925 = vsub.f32 1.5, %v924
    %v926 = vmul.f32 %v921, %v925
    %vm927 = vweird.f32 %v682
    %vm928 = vweird.f32 %v921
    %vm929 = vmor %vm927, %vm928
    %v930 = vsel %vm929, %v921, %v926
    %v931 = vrsqrt.pop %v683
    %v932 = vmul.f32 %v931, %v683
    %v933 = vmul.f32 %v932, %v931
    %v934 = vmul.f32 0.5, %v933
    %v935 = vsub.f32 1.5, %v934
    %v936 = vmul.f32 %v931, %v935
    %vm937 = vweird.f32 %v683
    %vm938 = vweird.f32 %v931
    %vm939 = vmor %vm937, %vm938
    %v940 = vsel %vm939, %v931, %v936
    %v941 = vrsqrt.pop %v684
    %v942 = vmul.f32 %v941, %v684
    %v943 = vmul.f32 %v942, %v941
    %v944 = vmul.f32 0.5, %v943
    %v945 = vsub.f32 1.5, %v944
    %v946 = vmul.f32 %v941, %v945
    %vm947 = vweird.f32 %v684
    %vm948 = vweird.f32 %v941
    %vm949 = vmor %vm947, %vm948
    %v950 = vsel %vm949, %v941, %v946
    %v951 = vrsqrt.pop %v685
    %v952 = vmul.f32 %v951, %v685
    %v953 = vmul.f32 %v952, %v951
    %v954 = vmul.f32 0.5, %v953
    %v955 = vsub.f32 1.5, %v954
    %v956 = vmul.f32 %v951, %v955
    %vm957 = vweird.f32 %v685
    %vm958 = vweird.f32 %v951
    %vm959 = vmor %vm957, %vm958
    %v960 = vsel %vm959, %v951, %v956
    %v961 = vrsqrt.pop %v686
    %v962 = vmul.f32 %v961, %v686
    %v963 = vmul.f32 %v962, %v961
    %v964 = vmul.f32 0.5, %v963
    %v965 = vsub.f32 1.5, %v964
    %v966 = vmul.f32 %v961, %v965
    %vm967 = vweird.f32 %v686
    %vm968 = vweird.f32 %v961
    %vm969 = vmor %vm967, %vm968
    %v970 = vsel %vm969, %v961, %v966
    %v971 = vrsqrt.pop %v687
    %v972 = vmul.f32 %v971, %v687
    %v973 = vmul.f32 %v972, %v971
    %v974 = vmul.f32 0.5, %v973
    %v975 = vsub.f32 1.5, %v974
    %v976 = vmul.f32 %v971, %v975
    %vm977 = vweird.f32 %v687
    %vm978 = vweird.f32 %v971
    %vm979 = vmor %vm977, %vm978
    %v980 = vsel %vm979, %v971, %v976
    %v981 = vrsqrt.pop %v688
    %v982 = vmul.f32 %v981, %v688
    %v983 = vmul.f32 %v982, %v981
    %v984 = vmul.f32 0.5, %v983
    %v985 = vsub.f32 1.5, %v984
    %v986 = vmul.f32 %v981, %v985
    %vm987 = vweird.f32 %v688
    %vm988 = vweird.f32 %v981
    %vm989 = vmor %vm987, %vm988
    %v990 = vsel %vm989, %v981, %v986
    %v991 = vrsqrt.pop %v689
    %v992 = vmul.f32 %v991, %v689
    %v993 = vmul.f32 %v992, %v991
    %v994 = vmul.f32 0.5, %v993
    %v995 = vsub.f32 1.5, %v994
    %v996 = vmul.f32 %v991, %v995
    %vm997 = vweird.f32 %v689
    %vm998 = vweird.f32 %v991
    %vm999 = vmor %vm997, %vm998
    %v1000 = vsel %vm999, %v991, %v996
    %v1001 = vrsqrt.pop %v690
    %v1002 = vmul.f32 %v1001, %v690
    %v1003 = vmul.f32 %v1002, %v1001
    %v1004 = vmul.f32 0.5, %v1003
    %v1005 = vsub.f32 1.5, %v1004
    %v1006 = vmul.f32 %v1001, %v1005
    %vm1007 = vweird.f32 %v690
    %vm1008 = vweird.f32 %v1001
    %vm1009 = vmor %vm1007, %vm1008
    %v1010 = vsel %vm1009, %v1001, %v1006
    %v1011 = vmul.f32 %v467, %v700
    %v1012 = vmul.f32 %v468, %v710
    %v1013 = vmul.f32 %v469, %v720
    %v1014 = vmul.f32 %v470, %v730
    %v1015 = vmul.f32 %v471, %v740
    %v1016 = vmul.f32 %v472, %v750
    %v1017 = vmul.f32 %v473, %v760
    %v1018 = vmul.f32 %v474, %v770
    %v1019 = vmul.f32 %v475, %v780
    %v1020 = vmul.f32 %v476, %v790
    %v1021 = vmul.f32 %v477, %v800
    %v1022 = vmul.f32 %v478, %v810
    %v1023 = vmul.f32 %v479, %v820
    %v1024 = vmul.f32 %v480, %v830
    %v1025 = vmul.f32 %v481, %v840
    %v1026 = vmul.f32 %v482, %v850
    %v1027 = vmul.f32 %v483, %v860
    %v1028 = vmul.f32 %v484, %v870
    %v1029 = vmul.f32 %v485, %v880
    %v1030 = vmul.f32 %v486, %v890
    %v1031 = vmul.f32 %v487, %v900
    %v1032 = vmul.f32 %v488, %v910
    %v1033 = vmul.f32 %v489, %v920
    %v1034 = vmul.f32 %v490, %v930
    %v1035 = vmul.f32 %v491, %v940
    %v1036 = vmul.f32 %v492, %v950
    %v1037 = vmul.f32 %v493, %v960
    %v1038 = vmul.f32 %v494, %v970
    %v1039 = vmul.f32 %v495, %v980
    %v1040 = vmul.f32 %v496, %v990
    %v1041 = vmul.f32 %v497, %v1000
    %v1042 = vmul.f32 %v498, %v1010
    %v1043 = vperm.slane %v75, 0
    %v1044 = vmul.f32 %v1011, %v1043
    %v1045 = vmul.f32 %v1012, %v1043
    %v1046 = vmul.f32 %v1013, %v1043
    %v1047 = vmul.f32 %v1014, %v1043
    %v1048 = vmul.f32 %v1015, %v1043
    %v1049 = vmul.f32 %v1016, %v1043
    %v1050 = vmul.f32 %v1017, %v1043
    %v1051 = vmul.f32 %v1018, %v1043
    %v1052 = vmul.f32 %v1019, %v1043
    %v1053 = vmul.f32 %v1020, %v1043
    %v1054 = vmul.f32 %v1021, %v1043
    %v1055 = vmul.f32 %v1022, %v1043
    %v1056 = vmul.f32 %v1023, %v1043
    %v1057 = vmul.f32 %v1024, %v1043
    %v1058 = vmul.f32 %v1025, %v1043
    %v1059 = vmul.f32 %v1026, %v1043
    %v1060 = vmul.f32 %v1027, %v1043
    %v1061 = vmul.f32 %v1028, %v1043
    %v1062 = vmul.f32 %v1029, %v1043
    %v1063 = vmul.f32 %v1030, %v1043
    %v1064 = vmul.f32 %v1031, %v1043
    %v1065 = vmul.f32 %v1032, %v1043
    %v1066 = vmul.f32 %v1033, %v1043
    %v1067 = vmul.f32 %v1034, %v1043
    %v1068 = vmul.f32 %v1035, %v1043
    %v1069 = vmul.f32 %v1036, %v1043
    %v1070 = vmul.f32 %v1037, %v1043
    %v1071 = vmul.f32 %v1038, %v1043
    %v1072 = vmul.f32 %v1039, %v1043
    %v1073 = vmul.f32 %v1040, %v1043
    %v1074 = vmul.f32 %v1041, %v1043
    %v1075 = vmul.f32 %v1042, %v1043
    %v1076 = vperm.slane %v76, 0
    %v1077 = vadd.f32 %v1044, %v1076
    %v1078 = vadd.f32 %v1045, %v1076
    %v1079 = vadd.f32 %v1046, %v1076
    %v1080 = vadd.f32 %v1047, %v1076
    %v1081 = vadd.f32 %v1048, %v1076
    %v1082 = vadd.f32 %v1049, %v1076
    %v1083 = vadd.f32 %v1050, %v1076
    %v1084 = vadd.f32 %v1051, %v1076
    %v1085 = vadd.f32 %v1052, %v1076
    %v1086 = vadd.f32 %v1053, %v1076
    %v1087 = vadd.f32 %v1054, %v1076
    %v1088 = vadd.f32 %v1055, %v1076
    %v1089 = vadd.f32 %v1056, %v1076
    %v1090 = vadd.f32 %v1057, %v1076
    %v1091 = vadd.f32 %v1058, %v1076
    %v1092 = vadd.f32 %v1059, %v1076
    %v1093 = vadd.f32 %v1060, %v1076
    %v1094 = vadd.f32 %v1061, %v1076
    %v1095 = vadd.f32 %v1062, %v1076
    %v1096 = vadd.f32 %v1063, %v1076
    %v1097 = vadd.f32 %v1064, %v1076
    %v1098 = vadd.f32 %v1065, %v1076
    %v1099 = vadd.f32 %v1066, %v1076
    %v1100 = vadd.f32 %v1067, %v1076
    %v1101 = vadd.f32 %v1068, %v1076
    %v1102 = vadd.f32 %v1069, %v1076
    %v1103 = vadd.f32 %v1070, %v1076
    %v1104 = vadd.f32 %v1071, %v1076
    %v1105 = vadd.f32 %v1072, %v1076
    %v1106 = vadd.f32 %v1073, %v1076
    %v1107 = vadd.f32 %v1074, %v1076
    %v1108 = vadd.f32 %v1075, %v1076
    %v1109 = vperm.slane %v77, 0
    %v1111 = vsel %vm259, %v1077, 0
    %v1114 = vsel %vm259, %v1078, 0
    %v1117 = vsel %vm259, %v1079, 0
    %v1120 = vsel %vm259, %v1080, 0
    %v1123 = vsel %vm259, %v1081, 0
    %v1126 = vsel %vm259, %v1082, 0
    %v1129 = vsel %vm259, %v1083, 0
    %v1132 = vsel %vm259, %v1084, 0
    %v1135 = vsel %vm259, %v1085, 0
    %v1138 = vsel %vm259, %v1086, 0
    %v1141 = vsel %vm259, %v1087, 0
    %v1144 = vsel %vm259, %v1088, 0
    %v1147 = vsel %vm259, %v1089, 0
    %v1150 = vsel %vm259, %v1090, 0
    %v1153 = vsel %vm259, %v1091, 0
    %v1156 = vsel %vm259, %v1092, 0
    %v1159 = vsel %vm259, %v1093, 0
    %v1162 = vsel %vm259, %v1094, 0
    %v1165 = vsel %vm259, %v1095, 0
    %v1168 = vsel %vm259, %v1096, 0
    %v1171 = vsel %vm259, %v1097, 0
    %v1174 = vsel %vm259, %v1098, 0
    %v1177 = vsel %vm259, %v1099, 0
    %v1180 = vsel %vm259, %v1100, 0
    %v1183 = vsel %vm259, %v1101, 0
    %v1186 = vsel %vm259, %v1102, 0
    %v1189 = vsel %vm259, %v1103, 0
    %v1192 = vsel %vm259, %v1104, 0
    %v1195 = vsel %vm259, %v1105, 0
    %v1198 = vsel %vm259, %v1106, 0
    %v1201 = vsel %vm259, %v1107, 0
    %v1204 = vsel %vm259, %v1108, 0
    %1206 = vmatpush.msra.mxu0 0.0
    %1207 = vmatpush.msra.mxu0 0.0
    %1208 = vmatpush.msra.mxu0 0.0
    %1209 = vmatpush.msra.mxu0 0.0
    %1210 = vmatpush.msra.mxu0 0.0
    %1211 = vmatpush.msra.mxu0 0.0
    %1212 = vmatpush.msra.mxu0 0.0
    %1213 = vmatpush.msra.mxu0 0.0
    %1214 = vmatpush.msra.mxu0 0.0
    %1215 = vmatpush.msra.mxu0 0.0
    %1216 = vmatpush.msra.mxu0 0.0
    %1217 = vmatpush.msra.mxu0 0.0
    %1218 = vmatpush.msra.mxu0 %v52
    %1219 = vmatpush.msra.mxu0 %v51
    %1220 = vmatpush.msra.mxu0 %v50
    %1221 = vmatpush.msra.mxu0 %v49
    %1222 = vmatmul.f32.gmra.mxu0 %v1111
    %v1223 = vpop.f32.mrf.mxu0
    %v1224 = vadd.f32 %v1109, %v1223
    %1225 = vmatmul.f32.gmra.mxu0 %v1114
    %v1226 = vpop.f32.mrf.mxu0
    %v1227 = vadd.f32 %v1109, %v1226
    %1228 = vmatmul.f32.gmra.mxu0 %v1117
    %v1229 = vpop.f32.mrf.mxu0
    %v1230 = vadd.f32 %v1109, %v1229
    %1231 = vmatmul.f32.gmra.mxu0 %v1120
    %v1232 = vpop.f32.mrf.mxu0
    %v1233 = vadd.f32 %v1109, %v1232
    %1234 = vmatmul.f32.gmra.mxu0 %v1123
    %v1235 = vpop.f32.mrf.mxu0
    %v1236 = vadd.f32 %v1109, %v1235
    %1237 = vmatmul.f32.gmra.mxu0 %v1126
    %v1238 = vpop.f32.mrf.mxu0
    %v1239 = vadd.f32 %v1109, %v1238
    %1240 = vmatmul.f32.gmra.mxu0 %v1129
    %v1241 = vpop.f32.mrf.mxu0
    %v1242 = vadd.f32 %v1109, %v1241
    %1243 = vmatmul.f32.gmra.mxu0 %v1132
    %v1244 = vpop.f32.mrf.mxu0
    %v1245 = vadd.f32 %v1109, %v1244
    %1246 = vmatmul.f32.gmra.mxu0 %v1135
    %v1247 = vpop.f32.mrf.mxu0
    %v1248 = vadd.f32 %v1109, %v1247
    %1249 = vmatmul.f32.gmra.mxu0 %v1138
    %v1250 = vpop.f32.mrf.mxu0
    %v1251 = vadd.f32 %v1109, %v1250
    %1252 = vmatmul.f32.gmra.mxu0 %v1141
    %v1253 = vpop.f32.mrf.mxu0
    %v1254 = vadd.f32 %v1109, %v1253
    %1255 = vmatmul.f32.gmra.mxu0 %v1144
    %v1256 = vpop.f32.mrf.mxu0
    %v1257 = vadd.f32 %v1109, %v1256
    %1258 = vmatmul.f32.gmra.mxu0 %v1147
    %v1259 = vpop.f32.mrf.mxu0
    %v1260 = vadd.f32 %v1109, %v1259
    %1261 = vmatmul.f32.gmra.mxu0 %v1150
    %v1262 = vpop.f32.mrf.mxu0
    %v1263 = vadd.f32 %v1109, %v1262
    %1264 = vmatmul.f32.gmra.mxu0 %v1153
    %v1265 = vpop.f32.mrf.mxu0
    %v1266 = vadd.f32 %v1109, %v1265
    %1267 = vmatmul.f32.gmra.mxu0 %v1156
    %v1268 = vpop.f32.mrf.mxu0
    %v1269 = vadd.f32 %v1109, %v1268
    %1270 = vmatmul.f32.gmra.mxu0 %v1159
    %v1271 = vpop.f32.mrf.mxu0
    %v1272 = vadd.f32 %v1109, %v1271
    %1273 = vmatmul.f32.gmra.mxu0 %v1162
    %v1274 = vpop.f32.mrf.mxu0
    %v1275 = vadd.f32 %v1109, %v1274
    %1276 = vmatmul.f32.gmra.mxu0 %v1165
    %v1277 = vpop.f32.mrf.mxu0
    %v1278 = vadd.f32 %v1109, %v1277
    %1279 = vmatmul.f32.gmra.mxu0 %v1168
    %v1280 = vpop.f32.mrf.mxu0
    %v1281 = vadd.f32 %v1109, %v1280
    %1282 = vmatmul.f32.gmra.mxu0 %v1171
    %v1283 = vpop.f32.mrf.mxu0
    %v1284 = vadd.f32 %v1109, %v1283
    %1285 = vmatmul.f32.gmra.mxu0 %v1174
    %v1286 = vpop.f32.mrf.mxu0
    %v1287 = vadd.f32 %v1109, %v1286
    %1288 = vmatmul.f32.gmra.mxu0 %v1177
    %v1289 = vpop.f32.mrf.mxu0
    %v1290 = vadd.f32 %v1109, %v1289
    %1291 = vmatmul.f32.gmra.mxu0 %v1180
    %v1292 = vpop.f32.mrf.mxu0
    %v1293 = vadd.f32 %v1109, %v1292
    %1294 = vmatmul.f32.gmra.mxu0 %v1183
    %v1295 = vpop.f32.mrf.mxu0
    %v1296 = vadd.f32 %v1109, %v1295
    %1297 = vmatmul.f32.gmra.mxu0 %v1186
    %v1298 = vpop.f32.mrf.mxu0
    %v1299 = vadd.f32 %v1109, %v1298
    %1300 = vmatmul.f32.gmra.mxu0 %v1189
    %v1301 = vpop.f32.mrf.mxu0
    %v1302 = vadd.f32 %v1109, %v1301
    %1303 = vmatmul.f32.gmra.mxu0 %v1192
    %v1304 = vpop.f32.mrf.mxu0
    %v1305 = vadd.f32 %v1109, %v1304
    %1306 = vmatmul.f32.gmra.mxu0 %v1195
    %v1307 = vpop.f32.mrf.mxu0
    %v1308 = vadd.f32 %v1109, %v1307
    %1309 = vmatmul.f32.gmra.mxu0 %v1198
    %v1310 = vpop.f32.mrf.mxu0
    %v1311 = vadd.f32 %v1109, %v1310
    %1312 = vmatmul.f32.gmra.mxu0 %v1201
    %v1313 = vpop.f32.mrf.mxu0
    %v1314 = vadd.f32 %v1109, %v1313
    %1315 = vmatmul.f32.gmra.mxu0 %v1204
    %v1316 = vpop.f32.mrf.mxu0
    %v1317 = vadd.f32 %v1109, %v1316
    %1318 = vdwg.mxu0
    %v1319 = vlaneseq
    %v1320 = vand.u32 %v1319, 127
    %vm1321 = vcmp.lt.s32.totalorder %v1320, 65
    %1338 = vrot.lane.b32.xlu0 %v1224, 96
    %v1339 = vpop.permute.xlu0 %1338
    %1340 = vrot.lane.b32.xlu0 %v1227, 96
    %v1341 = vpop.permute.xlu0 %1340
    %1342 = vrot.lane.b32.xlu0 %v1230, 96
    %v1343 = vpop.permute.xlu0 %1342
    %1344 = vrot.lane.b32.xlu0 %v1233, 96
    %v1345 = vpop.permute.xlu0 %1344
    %1346 = vrot.lane.b32.xlu0 %v1236, 96
    %v1347 = vpop.permute.xlu0 %1346
    %1348 = vrot.lane.b32.xlu0 %v1239, 96
    %v1349 = vpop.permute.xlu0 %1348
    %1350 = vrot.lane.b32.xlu0 %v1242, 96
    %v1351 = vpop.permute.xlu0 %1350
    %1352 = vrot.lane.b32.xlu0 %v1245, 96
    %v1353 = vpop.permute.xlu0 %1352
    %1354 = vrot.lane.b32.xlu0 %v1248, 96
    %v1355 = vpop.permute.xlu0 %1354
    %1356 = vrot.lane.b32.xlu0 %v1251, 96
    %v1357 = vpop.permute.xlu0 %1356
    %1358 = vrot.lane.b32.xlu0 %v1254, 96
    %v1359 = vpop.permute.xlu0 %1358
    %1360 = vrot.lane.b32.xlu0 %v1257, 96
    %v1361 = vpop.permute.xlu0 %1360
    %1362 = vrot.lane.b32.xlu0 %v1260, 96
    %v1363 = vpop.permute.xlu0 %1362
    %1364 = vrot.lane.b32.xlu0 %v1263, 96
    %v1365 = vpop.permute.xlu0 %1364
    %1366 = vrot.lane.b32.xlu0 %v1266, 96
    %v1367 = vpop.permute.xlu0 %1366
    %1368 = vrot.lane.b32.xlu0 %v1269, 96
    %v1369 = vpop.permute.xlu0 %1368
    %v1370 = vsel %vm259, %v1224, 0
    %v1372 = vsel %vm259, %v1227, 0
    %v1374 = vsel %vm259, %v1230, 0
    %v1376 = vsel %vm259, %v1233, 0
    %v1378 = vsel %vm259, %v1236, 0
    %v1380 = vsel %vm259, %v1239, 0
    %v1382 = vsel %vm259, %v1242, 0
    %v1384 = vsel %vm259, %v1245, 0
    %v1386 = vsel %vm259, %v1248, 0
    %v1388 = vsel %vm259, %v1251, 0
    %v1390 = vsel %vm259, %v1254, 0
    %v1392 = vsel %vm259, %v1257, 0
    %v1394 = vsel %vm259, %v1260, 0
    %v1396 = vsel %vm259, %v1263, 0
    %v1398 = vsel %vm259, %v1266, 0
    %v1400 = vsel %vm259, %v1269, 0
    %v1402 = vsel %vm259, %v1339, 0
    %v1404 = vsel %vm259, %v1341, 0
    %v1406 = vsel %vm259, %v1343, 0
    %v1408 = vsel %vm259, %v1345, 0
    %v1410 = vsel %vm259, %v1347, 0
    %v1412 = vsel %vm259, %v1349, 0
    %v1414 = vsel %vm259, %v1351, 0
    %v1416 = vsel %vm259, %v1353, 0
    %v1418 = vsel %vm259, %v1355, 0
    %v1420 = vsel %vm259, %v1357, 0
    %v1422 = vsel %vm259, %v1359, 0
    %v1424 = vsel %vm259, %v1361, 0
    %v1426 = vsel %vm259, %v1363, 0
    %v1428 = vsel %vm259, %v1365, 0
    %v1430 = vsel %vm259, %v1367, 0
    %v1432 = vsel %vm259, %v1369, 0
    %1434 = vmatpush.xpose.msra.mxu0 %v1432
    %1435 = vmatpush.xpose.msra.mxu0 %v1430
    %1436 = vmatpush.xpose.msra.mxu0 %v1428
    %1437 = vmatpush.xpose.msra.mxu0 %v1426
    %1438 = vmatpush.xpose.msra.mxu0 %v1424
    %1439 = vmatpush.xpose.msra.mxu0 %v1422
    %1440 = vmatpush.xpose.msra.mxu0 %v1420
    %1441 = vmatpush.xpose.msra.mxu0 %v1418
    %1442 = vmatpush.xpose.msra.mxu0 %v1416
    %1443 = vmatpush.xpose.msra.mxu0 %v1414
    %1444 = vmatpush.xpose.msra.mxu0 %v1412
    %1445 = vmatpush.xpose.msra.mxu0 %v1410
    %1446 = vmatpush.xpose.msra.mxu0 %v1408
    %1447 = vmatpush.xpose.msra.mxu0 %v1406
    %1448 = vmatpush.xpose.msra.mxu0 %v1404
    %1449 = vmatpush.xpose.msra.mxu0 %v1402
    %1450 = vmatmul.f32.gmra.mxu0 %v1370
    %v1451 = vpop.f32.mrf.mxu0
    %v1452 = vadd.f32 0.0, %v1451
    %1453 = vmatmul.f32.gmra.mxu0 %v1372
    %v1454 = vpop.f32.mrf.mxu0
    %v1455 = vadd.f32 0.0, %v1454
    %1456 = vmatmul.f32.gmra.mxu0 %v1374
    %v1457 = vpop.f32.mrf.mxu0
    %v1458 = vadd.f32 0.0, %v1457
    %1459 = vmatmul.f32.gmra.mxu0 %v1376
    %v1460 = vpop.f32.mrf.mxu0
    %v1461 = vadd.f32 0.0, %v1460
    %1462 = vmatmul.f32.gmra.mxu0 %v1378
    %v1463 = vpop.f32.mrf.mxu0
    %v1464 = vadd.f32 0.0, %v1463
    %1465 = vmatmul.f32.gmra.mxu0 %v1380
    %v1466 = vpop.f32.mrf.mxu0
    %v1467 = vadd.f32 0.0, %v1466
    %1468 = vmatmul.f32.gmra.mxu0 %v1382
    %v1469 = vpop.f32.mrf.mxu0
    %v1470 = vadd.f32 0.0, %v1469
    %1471 = vmatmul.f32.gmra.mxu0 %v1384
    %v1472 = vpop.f32.mrf.mxu0
    %v1473 = vadd.f32 0.0, %v1472
    %1474 = vmatmul.f32.gmra.mxu0 %v1386
    %v1475 = vpop.f32.mrf.mxu0
    %v1476 = vadd.f32 0.0, %v1475
    %1477 = vmatmul.f32.gmra.mxu0 %v1388
    %v1478 = vpop.f32.mrf.mxu0
    %v1479 = vadd.f32 0.0, %v1478
    %1480 = vmatmul.f32.gmra.mxu0 %v1390
    %v1481 = vpop.f32.mrf.mxu0
    %v1482 = vadd.f32 0.0, %v1481
    %1483 = vmatmul.f32.gmra.mxu0 %v1392
    %v1484 = vpop.f32.mrf.mxu0
    %v1485 = vadd.f32 0.0, %v1484
    %1486 = vmatmul.f32.gmra.mxu0 %v1394
    %v1487 = vpop.f32.mrf.mxu0
    %v1488 = vadd.f32 0.0, %v1487
    %1489 = vmatmul.f32.gmra.mxu0 %v1396
    %v1490 = vpop.f32.mrf.mxu0
    %v1491 = vadd.f32 0.0, %v1490
    %1492 = vmatmul.f32.gmra.mxu0 %v1398
    %v1493 = vpop.f32.mrf.mxu0
    %v1494 = vadd.f32 0.0, %v1493
    %1495 = vmatmul.f32.gmra.mxu0 %v1400
    %v1496 = vpop.f32.mrf.mxu0
    %v1497 = vadd.f32 0.0, %v1496
    %1498 = vdwg.mxu0
    %v1499 = vsel %vm1321, %v1452, -1e+30
    %v1500 = vsel %vm1321, %v1455, -1e+30
    %v1501 = vsel %vm1321, %v1458, -1e+30
    %v1502 = vsel %vm1321, %v1461, -1e+30
    %v1503 = vsel %vm1321, %v1464, -1e+30
    %v1504 = vsel %vm1321, %v1467, -1e+30
    %v1505 = vsel %vm1321, %v1470, -1e+30
    %v1506 = vsel %vm1321, %v1473, -1e+30
    %v1507 = vsel %vm1321, %v1476, -1e+30
    %v1508 = vsel %vm1321, %v1479, -1e+30
    %v1509 = vsel %vm1321, %v1482, -1e+30
    %v1510 = vsel %vm1321, %v1485, -1e+30
    %v1511 = vsel %vm1321, %v1488, -1e+30
    %v1512 = vsel %vm1321, %v1491, -1e+30
    %v1513 = vsel %vm1321, %v1494, -1e+30
    %v1514 = vsel %vm1321, %v1497, -1e+30
    %1515 = vmax.xlane.f32.xlu0 %v1499
    %v1516 = vpop.xlane.xlu0 %1515
    %1517 = vmax.xlane.f32.xlu0 %v1500
    %v1518 = vpop.xlane.xlu0 %1517
    %1519 = vmax.xlane.f32.xlu0 %v1501
    %v1520 = vpop.xlane.xlu0 %1519
    %1521 = vmax.xlane.f32.xlu0 %v1502
    %v1522 = vpop.xlane.xlu0 %1521
    %1523 = vmax.xlane.f32.xlu0 %v1503
    %v1524 = vpop.xlane.xlu0 %1523
    %1525 = vmax.xlane.f32.xlu0 %v1504
    %v1526 = vpop.xlane.xlu0 %1525
    %1527 = vmax.xlane.f32.xlu0 %v1505
    %v1528 = vpop.xlane.xlu0 %1527
    %1529 = vmax.xlane.f32.xlu0 %v1506
    %v1530 = vpop.xlane.xlu0 %1529
    %1531 = vmax.xlane.f32.xlu0 %v1507
    %v1532 = vpop.xlane.xlu0 %1531
    %1533 = vmax.xlane.f32.xlu0 %v1508
    %v1534 = vpop.xlane.xlu0 %1533
    %1535 = vmax.xlane.f32.xlu0 %v1509
    %v1536 = vpop.xlane.xlu0 %1535
    %1537 = vmax.xlane.f32.xlu0 %v1510
    %v1538 = vpop.xlane.xlu0 %1537
    %1539 = vmax.xlane.f32.xlu0 %v1511
    %v1540 = vpop.xlane.xlu0 %1539
    %1541 = vmax.xlane.f32.xlu0 %v1512
    %v1542 = vpop.xlane.xlu0 %1541
    %1543 = vmax.xlane.f32.xlu0 %v1513
    %v1544 = vpop.xlane.xlu0 %1543
    %1545 = vmax.xlane.f32.xlu0 %v1514
    %v1546 = vpop.xlane.xlu0 %1545
    %v1547 = vsub.f32 %v1499, %v1516
    %v1548 = vsub.f32 %v1500, %v1518
    %v1549 = vsub.f32 %v1501, %v1520
    %v1550 = vsub.f32 %v1502, %v1522
    %v1551 = vsub.f32 %v1503, %v1524
    %v1552 = vsub.f32 %v1504, %v1526
    %v1553 = vsub.f32 %v1505, %v1528
    %v1554 = vsub.f32 %v1506, %v1530
    %v1555 = vsub.f32 %v1507, %v1532
    %v1556 = vsub.f32 %v1508, %v1534
    %v1557 = vsub.f32 %v1509, %v1536
    %v1558 = vsub.f32 %v1510, %v1538
    %v1559 = vsub.f32 %v1511, %v1540
    %v1560 = vsub.f32 %v1512, %v1542
    %v1561 = vsub.f32 %v1513, %v1544
    %v1562 = vsub.f32 %v1514, %v1546
    %v1563 = vmul.f32 %v1547, 1.442695
    %v1564 = vpow.pop %v1563
    %v1565 = vmul.f32 %v1548, 1.442695
    %v1566 = vpow.pop %v1565
    %v1567 = vmul.f32 %v1549, 1.442695
    %v1568 = vpow.pop %v1567
    %v1569 = vmul.f32 %v1550, 1.442695
    %v1570 = vpow.pop %v1569
    %v1571 = vmul.f32 %v1551, 1.442695
    %v1572 = vpow.pop %v1571
    %v1573 = vmul.f32 %v1552, 1.442695
    %v1574 = vpow.pop %v1573
    %v1575 = vmul.f32 %v1553, 1.442695
    %v1576 = vpow.pop %v1575
    %v1577 = vmul.f32 %v1554, 1.442695
    %v1578 = vpow.pop %v1577
    %v1579 = vmul.f32 %v1555, 1.442695
    %v1580 = vpow.pop %v1579
    %v1581 = vmul.f32 %v1556, 1.442695
    %v1582 = vpow.pop %v1581
    %v1583 = vmul.f32 %v1557, 1.442695
    %v1584 = vpow.pop %v1583
    %v1585 = vmul.f32 %v1558, 1.442695
    %v1586 = vpow.pop %v1585
    %v1587 = vmul.f32 %v1559, 1.442695
    %v1588 = vpow.pop %v1587
    %v1589 = vmul.f32 %v1560, 1.442695
    %v1590 = vpow.pop %v1589
    %v1591 = vmul.f32 %v1561, 1.442695
    %v1592 = vpow.pop %v1591
    %v1593 = vmul.f32 %v1562, 1.442695
    %v1594 = vpow.pop %v1593
    %1595 = vadd.xlane.f32.xlu0 %v1564
    %v1596 = vpop.xlane.xlu0 %1595
    %1597 = vadd.xlane.f32.xlu0 %v1566
    %v1598 = vpop.xlane.xlu0 %1597
    %1599 = vadd.xlane.f32.xlu0 %v1568
    %v1600 = vpop.xlane.xlu0 %1599
    %1601 = vadd.xlane.f32.xlu0 %v1570
    %v1602 = vpop.xlane.xlu0 %1601
    %1603 = vadd.xlane.f32.xlu0 %v1572
    %v1604 = vpop.xlane.xlu0 %1603
    %1605 = vadd.xlane.f32.xlu0 %v1574
    %v1606 = vpop.xlane.xlu0 %1605
    %1607 = vadd.xlane.f32.xlu0 %v1576
    %v1608 = vpop.xlane.xlu0 %1607
    %1609 = vadd.xlane.f32.xlu0 %v1578
    %v1610 = vpop.xlane.xlu0 %1609
    %1611 = vadd.xlane.f32.xlu0 %v1580
    %v1612 = vpop.xlane.xlu0 %1611
    %1613 = vadd.xlane.f32.xlu0 %v1582
    %v1614 = vpop.xlane.xlu0 %1613
    %1615 = vadd.xlane.f32.xlu0 %v1584
    %v1616 = vpop.xlane.xlu0 %1615
    %1617 = vadd.xlane.f32.xlu0 %v1586
    %v1618 = vpop.xlane.xlu0 %1617
    %1619 = vadd.xlane.f32.xlu0 %v1588
    %v1620 = vpop.xlane.xlu0 %1619
    %1621 = vadd.xlane.f32.xlu0 %v1590
    %v1622 = vpop.xlane.xlu0 %1621
    %1623 = vadd.xlane.f32.xlu0 %v1592
    %v1624 = vpop.xlane.xlu0 %1623
    %1625 = vadd.xlane.f32.xlu0 %v1594
    %v1626 = vpop.xlane.xlu0 %1625
    %v1627 = vrcp.pop %v1596
    %v1628 = vrcp.pop %v1598
    %v1629 = vrcp.pop %v1600
    %v1630 = vrcp.pop %v1602
    %v1631 = vrcp.pop %v1604
    %v1632 = vrcp.pop %v1606
    %v1633 = vrcp.pop %v1608
    %v1634 = vrcp.pop %v1610
    %v1635 = vrcp.pop %v1612
    %v1636 = vrcp.pop %v1614
    %v1637 = vrcp.pop %v1616
    %v1638 = vrcp.pop %v1618
    %v1639 = vrcp.pop %v1620
    %v1640 = vrcp.pop %v1622
    %v1641 = vrcp.pop %v1624
    %v1642 = vrcp.pop %v1626
    %v1643 = vmul.f32 %v1564, %v1627
    %v1644 = vmul.f32 %v1566, %v1628
    %v1645 = vmul.f32 %v1568, %v1629
    %v1646 = vmul.f32 %v1570, %v1630
    %v1647 = vmul.f32 %v1572, %v1631
    %v1648 = vmul.f32 %v1574, %v1632
    %v1649 = vmul.f32 %v1576, %v1633
    %v1650 = vmul.f32 %v1578, %v1634
    %v1651 = vmul.f32 %v1580, %v1635
    %v1652 = vmul.f32 %v1582, %v1636
    %v1653 = vmul.f32 %v1584, %v1637
    %v1654 = vmul.f32 %v1586, %v1638
    %v1655 = vmul.f32 %v1588, %v1639
    %v1656 = vmul.f32 %v1590, %v1640
    %v1657 = vmul.f32 %v1592, %v1641
    %v1658 = vmul.f32 %v1594, %v1642
    %1659 = vrot.lane.b32.xlu0 %v1224, 64
    %v1660 = vpop.permute.xlu0 %1659
    %1661 = vrot.lane.b32.xlu0 %v1227, 64
    %v1662 = vpop.permute.xlu0 %1661
    %1663 = vrot.lane.b32.xlu0 %v1230, 64
    %v1664 = vpop.permute.xlu0 %1663
    %1665 = vrot.lane.b32.xlu0 %v1233, 64
    %v1666 = vpop.permute.xlu0 %1665
    %1667 = vrot.lane.b32.xlu0 %v1236, 64
    %v1668 = vpop.permute.xlu0 %1667
    %1669 = vrot.lane.b32.xlu0 %v1239, 64
    %v1670 = vpop.permute.xlu0 %1669
    %1671 = vrot.lane.b32.xlu0 %v1242, 64
    %v1672 = vpop.permute.xlu0 %1671
    %1673 = vrot.lane.b32.xlu0 %v1245, 64
    %v1674 = vpop.permute.xlu0 %1673
    %1675 = vrot.lane.b32.xlu0 %v1248, 64
    %v1676 = vpop.permute.xlu0 %1675
    %1677 = vrot.lane.b32.xlu0 %v1251, 64
    %v1678 = vpop.permute.xlu0 %1677
    %1679 = vrot.lane.b32.xlu0 %v1254, 64
    %v1680 = vpop.permute.xlu0 %1679
    %1681 = vrot.lane.b32.xlu0 %v1257, 64
    %v1682 = vpop.permute.xlu0 %1681
    %1683 = vrot.lane.b32.xlu0 %v1260, 64
    %v1684 = vpop.permute.xlu0 %1683
    %1685 = vrot.lane.b32.xlu0 %v1263, 64
    %v1686 = vpop.permute.xlu0 %1685
    %1687 = vrot.lane.b32.xlu0 %v1266, 64
    %v1688 = vpop.permute.xlu0 %1687
    %1689 = vrot.lane.b32.xlu0 %v1269, 64
    %v1690 = vpop.permute.xlu0 %1689
    %1707 = vmatpush.msra.mxu0 %v1690
    %1708 = vmatpush.msra.mxu0 %v1688
    %1709 = vmatpush.msra.mxu0 %v1686
    %1710 = vmatpush.msra.mxu0 %v1684
    %1711 = vmatpush.msra.mxu0 %v1682
    %1712 = vmatpush.msra.mxu0 %v1680
    %1713 = vmatpush.msra.mxu0 %v1678
    %1714 = vmatpush.msra.mxu0 %v1676
    %1715 = vmatpush.msra.mxu0 %v1674
    %1716 = vmatpush.msra.mxu0 %v1672
    %1717 = vmatpush.msra.mxu0 %v1670
    %1718 = vmatpush.msra.mxu0 %v1668
    %1719 = vmatpush.msra.mxu0 %v1666
    %1720 = vmatpush.msra.mxu0 %v1664
    %1721 = vmatpush.msra.mxu0 %v1662
    %1722 = vmatpush.msra.mxu0 %v1660
    %1723 = vmatmul.f32.gmra.mxu0 %v1643
    %v1724 = vpop.f32.mrf.mxu0
    %v1725 = vadd.f32 0.0, %v1724
    %1726 = vmatmul.f32.gmra.mxu0 %v1644
    %v1727 = vpop.f32.mrf.mxu0
    %v1728 = vadd.f32 0.0, %v1727
    %1729 = vmatmul.f32.gmra.mxu0 %v1645
    %v1730 = vpop.f32.mrf.mxu0
    %v1731 = vadd.f32 0.0, %v1730
    %1732 = vmatmul.f32.gmra.mxu0 %v1646
    %v1733 = vpop.f32.mrf.mxu0
    %v1734 = vadd.f32 0.0, %v1733
    %1735 = vmatmul.f32.gmra.mxu0 %v1647
    %v1736 = vpop.f32.mrf.mxu0
    %v1737 = vadd.f32 0.0, %v1736
    %1738 = vmatmul.f32.gmra.mxu0 %v1648
    %v1739 = vpop.f32.mrf.mxu0
    %v1740 = vadd.f32 0.0, %v1739
    %1741 = vmatmul.f32.gmra.mxu0 %v1649
    %v1742 = vpop.f32.mrf.mxu0
    %v1743 = vadd.f32 0.0, %v1742
    %1744 = vmatmul.f32.gmra.mxu0 %v1650
    %v1745 = vpop.f32.mrf.mxu0
    %v1746 = vadd.f32 0.0, %v1745
    %1747 = vmatmul.f32.gmra.mxu0 %v1651
    %v1748 = vpop.f32.mrf.mxu0
    %v1749 = vadd.f32 0.0, %v1748
    %1750 = vmatmul.f32.gmra.mxu0 %v1652
    %v1751 = vpop.f32.mrf.mxu0
    %v1752 = vadd.f32 0.0, %v1751
    %1753 = vmatmul.f32.gmra.mxu0 %v1653
    %v1754 = vpop.f32.mrf.mxu0
    %v1755 = vadd.f32 0.0, %v1754
    %1756 = vmatmul.f32.gmra.mxu0 %v1654
    %v1757 = vpop.f32.mrf.mxu0
    %v1758 = vadd.f32 0.0, %v1757
    %1759 = vmatmul.f32.gmra.mxu0 %v1655
    %v1760 = vpop.f32.mrf.mxu0
    %v1761 = vadd.f32 0.0, %v1760
    %1762 = vmatmul.f32.gmra.mxu0 %v1656
    %v1763 = vpop.f32.mrf.mxu0
    %v1764 = vadd.f32 0.0, %v1763
    %1765 = vmatmul.f32.gmra.mxu0 %v1657
    %v1766 = vpop.f32.mrf.mxu0
    %v1767 = vadd.f32 0.0, %v1766
    %1768 = vmatmul.f32.gmra.mxu0 %v1658
    %v1769 = vpop.f32.mrf.mxu0
    %v1770 = vadd.f32 0.0, %v1769
    %1771 = vdwg.mxu0
    %1772 = vst.msk [vmem:[#allocation3] sm:$0xff] %vm259, %v1725
    %1773 = vst.msk [vmem:[#allocation3 + $0x8] sm:$0xff] %vm259, %v1728
    %1774 = vst.msk [vmem:[#allocation3 + $0x10] sm:$0xff] %vm259, %v1731
    %1775 = vst.msk [vmem:[#allocation3 + $0x18] sm:$0xff] %vm259, %v1734
    %1776 = vst.msk [vmem:[#allocation3 + $0x20] sm:$0xff] %vm259, %v1737
    %1777 = vst.msk [vmem:[#allocation3 + $0x28] sm:$0xff] %vm259, %v1740
    %1778 = vst.msk [vmem:[#allocation3 + $0x30] sm:$0xff] %vm259, %v1743
    %1779 = vst.msk [vmem:[#allocation3 + $0x38] sm:$0xff] %vm259, %v1746
    %1780 = vst.msk [vmem:[#allocation3 + $0x40] sm:$0xff] %vm259, %v1749
    %1781 = vst.msk [vmem:[#allocation3 + $0x48] sm:$0xff] %vm259, %v1752
    %1782 = vst.msk [vmem:[#allocation3 + $0x50] sm:$0xff] %vm259, %v1755
    %1783 = vst.msk [vmem:[#allocation3 + $0x58] sm:$0xff] %vm259, %v1758
    %1784 = vst.msk [vmem:[#allocation3 + $0x60] sm:$0xff] %vm259, %v1761
    %1785 = vst.msk [vmem:[#allocation3 + $0x68] sm:$0xff] %vm259, %v1764
    %1786 = vst.msk [vmem:[#allocation3 + $0x70] sm:$0xff] %vm259, %v1767
    %1787 = vst.msk [vmem:[#allocation3 + $0x78] sm:$0xff] %vm259, %v1770
    %v1788 = vld [vmem:[#allocation3] sm:$0xff]
    %v1789 = vld [vmem:[#allocation3 + $0x8] sm:$0xff]
    %v1790 = vld [vmem:[#allocation3 + $0x10] sm:$0xff]
    %v1791 = vld [vmem:[#allocation3 + $0x18] sm:$0xff]
    %v1792 = vld [vmem:[#allocation3 + $0x20] sm:$0xff]
    %v1793 = vld [vmem:[#allocation3 + $0x28] sm:$0xff]
    %v1794 = vld [vmem:[#allocation3 + $0x30] sm:$0xff]
    %v1795 = vld [vmem:[#allocation3 + $0x38] sm:$0xff]
    %v1796 = vld [vmem:[#allocation3 + $0x40] sm:$0xff]
    %v1797 = vld [vmem:[#allocation3 + $0x48] sm:$0xff]
    %v1798 = vld [vmem:[#allocation3 + $0x50] sm:$0xff]
    %v1799 = vld [vmem:[#allocation3 + $0x58] sm:$0xff]
    %v1800 = vld [vmem:[#allocation3 + $0x60] sm:$0xff]
    %v1801 = vld [vmem:[#allocation3 + $0x68] sm:$0xff]
    %v1802 = vld [vmem:[#allocation3 + $0x70] sm:$0xff]
    %v1803 = vld [vmem:[#allocation3 + $0x78] sm:$0xff]
    %v1804 = vperm.slane %v78, 0
    %v1806 = vsel %vm259, %v1788, 0
    %v1809 = vsel %vm259, %v1789, 0
    %v1812 = vsel %vm259, %v1790, 0
    %v1815 = vsel %vm259, %v1791, 0
    %v1818 = vsel %vm259, %v1792, 0
    %v1821 = vsel %vm259, %v1793, 0
    %v1824 = vsel %vm259, %v1794, 0
    %v1827 = vsel %vm259, %v1795, 0
    %v1830 = vsel %vm259, %v1796, 0
    %v1833 = vsel %vm259, %v1797, 0
    %v1836 = vsel %vm259, %v1798, 0
    %v1839 = vsel %vm259, %v1799, 0
    %v1842 = vsel %vm259, %v1800, 0
    %v1845 = vsel %vm259, %v1801, 0
    %v1848 = vsel %vm259, %v1802, 0
    %v1851 = vsel %vm259, %v1803, 0
    %1853 = vmatpush.msra.mxu0 0.0
    %1854 = vmatpush.msra.mxu0 0.0
    %1855 = vmatpush.msra.mxu0 0.0
    %1856 = vmatpush.msra.mxu0 0.0
    %1857 = vmatpush.msra.mxu0 0.0
    %1858 = vmatpush.msra.mxu0 0.0
    %1859 = vmatpush.msra.mxu0 0.0
    %1860 = vmatpush.msra.mxu0 0.0
    %1861 = vmatpush.msra.mxu0 0.0
    %1862 = vmatpush.msra.mxu0 0.0
    %1863 = vmatpush.msra.mxu0 0.0
    %1864 = vmatpush.msra.mxu0 0.0
    %1865 = vmatpush.msra.mxu0 %v56
    %1866 = vmatpush.msra.mxu0 %v55
    %1867 = vmatpush.msra.mxu0 %v54
    %1868 = vmatpush.msra.mxu0 %v53
    %1869 = vmatmul.f32.gmra.mxu0 %v1806
    %v1870 = vpop.f32.mrf.mxu0
    %v1871 = vadd.f32 %v1804, %v1870
    %1872 = vmatmul.f32.gmra.mxu0 %v1809
    %v1873 = vpop.f32.mrf.mxu0
    %v1874 = vadd.f32 %v1804, %v1873
    %1875 = vmatmul.f32.gmra.mxu0 %v1812
    %v1876 = vpop.f32.mrf.mxu0
    %v1877 = vadd.f32 %v1804, %v1876
    %1878 = vmatmul.f32.gmra.mxu0 %v1815
    %v1879 = vpop.f32.mrf.mxu0
    %v1880 = vadd.f32 %v1804, %v1879
    %1881 = vmatmul.f32.gmra.mxu0 %v1818
    %v1882 = vpop.f32.mrf.mxu0
    %v1883 = vadd.f32 %v1804, %v1882
    %1884 = vmatmul.f32.gmra.mxu0 %v1821
    %v1885 = vpop.f32.mrf.mxu0
    %v1886 = vadd.f32 %v1804, %v1885
    %1887 = vmatmul.f32.gmra.mxu0 %v1824
    %v1888 = vpop.f32.mrf.mxu0
    %v1889 = vadd.f32 %v1804, %v1888
    %1890 = vmatmul.f32.gmra.mxu0 %v1827
    %v1891 = vpop.f32.mrf.mxu0
    %v1892 = vadd.f32 %v1804, %v1891
    %1893 = vmatmul.f32.gmra.mxu0 %v1830
    %v1894 = vpop.f32.mrf.mxu0
    %v1895 = vadd.f32 %v1804, %v1894
    %1896 = vmatmul.f32.gmra.mxu0 %v1833
    %v1897 = vpop.f32.mrf.mxu0
    %v1898 = vadd.f32 %v1804, %v1897
    %1899 = vmatmul.f32.gmra.mxu0 %v1836
    %v1900 = vpop.f32.mrf.mxu0
    %v1901 = vadd.f32 %v1804, %v1900
    %1902 = vmatmul.f32.gmra.mxu0 %v1839
    %v1903 = vpop.f32.mrf.mxu0
    %v1904 = vadd.f32 %v1804, %v1903
    %1905 = vmatmul.f32.gmra.mxu0 %v1842
    %v1906 = vpop.f32.mrf.mxu0
    %v1907 = vadd.f32 %v1804, %v1906
    %1908 = vmatmul.f32.gmra.mxu0 %v1845
    %v1909 = vpop.f32.mrf.mxu0
    %v1910 = vadd.f32 %v1804, %v1909
    %1911 = vmatmul.f32.gmra.mxu0 %v1848
    %v1912 = vpop.f32.mrf.mxu0
    %v1913 = vadd.f32 %v1804, %v1912
    %1914 = vmatmul.f32.gmra.mxu0 %v1851
    %v1915 = vpop.f32.mrf.mxu0
    %v1916 = vadd.f32 %v1804, %v1915
    %1917 = vdwg.mxu0
    %v1918 = vadd.f32 %v300, %v1871
    %v1919 = vadd.f32 %v301, %v1874
    %v1920 = vadd.f32 %v302, %v1877
    %v1921 = vadd.f32 %v303, %v1880
    %v1922 = vadd.f32 %v304, %v1883
    %v1923 = vadd.f32 %v305, %v1886
    %v1924 = vadd.f32 %v306, %v1889
    %v1925 = vadd.f32 %v307, %v1892
    %v1926 = vadd.f32 %v308, %v1895
    %v1927 = vadd.f32 %v309, %v1898
    %v1928 = vadd.f32 %v310, %v1901
    %v1929 = vadd.f32 %v311, %v1904
    %v1930 = vadd.f32 %v312, %v1907
    %v1931 = vadd.f32 %v313, %v1910
    %v1932 = vadd.f32 %v314, %v1913
    %v1933 = vadd.f32 %v315, %v1916
    %1934 = vst.msk [vmem:[#allocation2] sm:$0xff] %vm259, %v1918
    %1935 = vst.msk [vmem:[#allocation2 + $0x8] sm:$0xff] %vm259, %v1919
    %1936 = vst.msk [vmem:[#allocation2 + $0x10] sm:$0xff] %vm259, %v1920
    %1937 = vst.msk [vmem:[#allocation2 + $0x18] sm:$0xff] %vm259, %v1921
    %1938 = vst.msk [vmem:[#allocation2 + $0x20] sm:$0xff] %vm259, %v1922
    %1939 = vst.msk [vmem:[#allocation2 + $0x28] sm:$0xff] %vm259, %v1923
    %1940 = vst.msk [vmem:[#allocation2 + $0x30] sm:$0xff] %vm259, %v1924
    %1941 = vst.msk [vmem:[#allocation2 + $0x38] sm:$0xff] %vm259, %v1925
    %1942 = vst.msk [vmem:[#allocation2 + $0x40] sm:$0xff] %vm259, %v1926
    %1943 = vst.msk [vmem:[#allocation2 + $0x48] sm:$0xff] %vm259, %v1927
    %1944 = vst.msk [vmem:[#allocation2 + $0x50] sm:$0xff] %vm259, %v1928
    %1945 = vst.msk [vmem:[#allocation2 + $0x58] sm:$0xff] %vm259, %v1929
    %1946 = vst.msk [vmem:[#allocation2 + $0x60] sm:$0xff] %vm259, %v1930
    %1947 = vst.msk [vmem:[#allocation2 + $0x68] sm:$0xff] %vm259, %v1931
    %1948 = vst.msk [vmem:[#allocation2 + $0x70] sm:$0xff] %vm259, %v1932
    %1949 = vst.msk [vmem:[#allocation2 + $0x78] sm:$0xff] %vm259, %v1933
    %1966 = vrot.lane.b32.xlu0 %v1272, 96
    %v1967 = vpop.permute.xlu0 %1966
    %1968 = vrot.lane.b32.xlu0 %v1275, 96
    %v1969 = vpop.permute.xlu0 %1968
    %1970 = vrot.lane.b32.xlu0 %v1278, 96
    %v1971 = vpop.permute.xlu0 %1970
    %1972 = vrot.lane.b32.xlu0 %v1281, 96
    %v1973 = vpop.permute.xlu0 %1972
    %1974 = vrot.lane.b32.xlu0 %v1284, 96
    %v1975 = vpop.permute.xlu0 %1974
    %1976 = vrot.lane.b32.xlu0 %v1287, 96
    %v1977 = vpop.permute.xlu0 %1976
    %1978 = vrot.lane.b32.xlu0 %v1290, 96
    %v1979 = vpop.permute.xlu0 %1978
    %1980 = vrot.lane.b32.xlu0 %v1293, 96
    %v1981 = vpop.permute.xlu0 %1980
    %1982 = vrot.lane.b32.xlu0 %v1296, 96
    %v1983 = vpop.permute.xlu0 %1982
    %1984 = vrot.lane.b32.xlu0 %v1299, 96
    %v1985 = vpop.permute.xlu0 %1984
    %1986 = vrot.lane.b32.xlu0 %v1302, 96
    %v1987 = vpop.permute.xlu0 %1986
    %1988 = vrot.lane.b32.xlu0 %v1305, 96
    %v1989 = vpop.permute.xlu0 %1988
    %1990 = vrot.lane.b32.xlu0 %v1308, 96
    %v1991 = vpop.permute.xlu0 %1990
    %1992 = vrot.lane.b32.xlu0 %v1311, 96
    %v1993 = vpop.permute.xlu0 %1992
    %1994 = vrot.lane.b32.xlu0 %v1314, 96
    %v1995 = vpop.permute.xlu0 %1994
    %1996 = vrot.lane.b32.xlu0 %v1317, 96
    %v1997 = vpop.permute.xlu0 %1996
    %v1998 = vsel %vm259, %v1272, 0
    %v2000 = vsel %vm259, %v1275, 0
    %v2002 = vsel %vm259, %v1278, 0
    %v2004 = vsel %vm259, %v1281, 0
    %v2006 = vsel %vm259, %v1284, 0
    %v2008 = vsel %vm259, %v1287, 0
    %v2010 = vsel %vm259, %v1290, 0
    %v2012 = vsel %vm259, %v1293, 0
    %v2014 = vsel %vm259, %v1296, 0
    %v2016 = vsel %vm259, %v1299, 0
    %v2018 = vsel %vm259, %v1302, 0
    %v2020 = vsel %vm259, %v1305, 0
    %v2022 = vsel %vm259, %v1308, 0
    %v2024 = vsel %vm259, %v1311, 0
    %v2026 = vsel %vm259, %v1314, 0
    %v2028 = vsel %vm259, %v1317, 0
    %v2030 = vsel %vm259, %v1967, 0
    %v2032 = vsel %vm259, %v1969, 0
    %v2034 = vsel %vm259, %v1971, 0
    %v2036 = vsel %vm259, %v1973, 0
    %v2038 = vsel %vm259, %v1975, 0
    %v2040 = vsel %vm259, %v1977, 0
    %v2042 = vsel %vm259, %v1979, 0
    %v2044 = vsel %vm259, %v1981, 0
    %v2046 = vsel %vm259, %v1983, 0
    %v2048 = vsel %vm259, %v1985, 0
    %v2050 = vsel %vm259, %v1987, 0
    %v2052 = vsel %vm259, %v1989, 0
    %v2054 = vsel %vm259, %v1991, 0
    %v2056 = vsel %vm259, %v1993, 0
    %v2058 = vsel %vm259, %v1995, 0
    %v2060 = vsel %vm259, %v1997, 0
    %2062 = vmatpush.xpose.msra.mxu0 %v2060
    %2063 = vmatpush.xpose.msra.mxu0 %v2058
    %2064 = vmatpush.xpose.msra.mxu0 %v2056
    %2065 = vmatpush.xpose.msra.mxu0 %v2054
    %2066 = vmatpush.xpose.msra.mxu0 %v2052
    %2067 = vmatpush.xpose.msra.mxu0 %v2050
    %2068 = vmatpush.xpose.msra.mxu0 %v2048
    %2069 = vmatpush.xpose.msra.mxu0 %v2046
    %2070 = vmatpush.xpose.msra.mxu0 %v2044
    %2071 = vmatpush.xpose.msra.mxu0 %v2042
    %2072 = vmatpush.xpose.msra.mxu0 %v2040
    %2073 = vmatpush.xpose.msra.mxu0 %v2038
    %2074 = vmatpush.xpose.msra.mxu0 %v2036
    %2075 = vmatpush.xpose.msra.mxu0 %v2034
    %2076 = vmatpush.xpose.msra.mxu0 %v2032
    %2077 = vmatpush.xpose.msra.mxu0 %v2030
    %2078 = vmatmul.f32.gmra.mxu0 %v1998
    %v2079 = vpop.f32.mrf.mxu0
    %v2080 = vadd.f32 0.0, %v2079
    %2081 = vmatmul.f32.gmra.mxu0 %v2000
    %v2082 = vpop.f32.mrf.mxu0
    %v2083 = vadd.f32 0.0, %v2082
    %2084 = vmatmul.f32.gmra.mxu0 %v2002
    %v2085 = vpop.f32.mrf.mxu0
    %v2086 = vadd.f32 0.0, %v2085
    %2087 = vmatmul.f32.gmra.mxu0 %v2004
    %v2088 = vpop.f32.mrf.mxu0
    %v2089 = vadd.f32 0.0, %v2088
    %2090 = vmatmul.f32.gmra.mxu0 %v2006
    %v2091 = vpop.f32.mrf.mxu0
    %v2092 = vadd.f32 0.0, %v2091
    %2093 = vmatmul.f32.gmra.mxu0 %v2008
    %v2094 = vpop.f32.mrf.mxu0
    %v2095 = vadd.f32 0.0, %v2094
    %2096 = vmatmul.f32.gmra.mxu0 %v2010
    %v2097 = vpop.f32.mrf.mxu0
    %v2098 = vadd.f32 0.0, %v2097
    %2099 = vmatmul.f32.gmra.mxu0 %v2012
    %v2100 = vpop.f32.mrf.mxu0
    %v2101 = vadd.f32 0.0, %v2100
    %2102 = vmatmul.f32.gmra.mxu0 %v2014
    %v2103 = vpop.f32.mrf.mxu0
    %v2104 = vadd.f32 0.0, %v2103
    %2105 = vmatmul.f32.gmra.mxu0 %v2016
    %v2106 = vpop.f32.mrf.mxu0
    %v2107 = vadd.f32 0.0, %v2106
    %2108 = vmatmul.f32.gmra.mxu0 %v2018
    %v2109 = vpop.f32.mrf.mxu0
    %v2110 = vadd.f32 0.0, %v2109
    %2111 = vmatmul.f32.gmra.mxu0 %v2020
    %v2112 = vpop.f32.mrf.mxu0
    %v2113 = vadd.f32 0.0, %v2112
    %2114 = vmatmul.f32.gmra.mxu0 %v2022
    %v2115 = vpop.f32.mrf.mxu0
    %v2116 = vadd.f32 0.0, %v2115
    %2117 = vmatmul.f32.gmra.mxu0 %v2024
    %v2118 = vpop.f32.mrf.mxu0
    %v2119 = vadd.f32 0.0, %v2118
    %2120 = vmatmul.f32.gmra.mxu0 %v2026
    %v2121 = vpop.f32.mrf.mxu0
    %v2122 = vadd.f32 0.0, %v2121
    %2123 = vmatmul.f32.gmra.mxu0 %v2028
    %v2124 = vpop.f32.mrf.mxu0
    %v2125 = vadd.f32 0.0, %v2124
    %2126 = vdwg.mxu0
    %v2127 = vsel %vm1321, %v2080, -1e+30
    %v2128 = vsel %vm1321, %v2083, -1e+30
    %v2129 = vsel %vm1321, %v2086, -1e+30
    %v2130 = vsel %vm1321, %v2089, -1e+30
    %v2131 = vsel %vm1321, %v2092, -1e+30
    %v2132 = vsel %vm1321, %v2095, -1e+30
    %v2133 = vsel %vm1321, %v2098, -1e+30
    %v2134 = vsel %vm1321, %v2101, -1e+30
    %v2135 = vsel %vm1321, %v2104, -1e+30
    %v2136 = vsel %vm1321, %v2107, -1e+30
    %v2137 = vsel %vm1321, %v2110, -1e+30
    %v2138 = vsel %vm1321, %v2113, -1e+30
    %v2139 = vsel %vm1321, %v2116, -1e+30
    %v2140 = vsel %vm1321, %v2119, -1e+30
    %v2141 = vsel %vm1321, %v2122, -1e+30
    %v2142 = vsel %vm1321, %v2125, -1e+30
    %2143 = vmax.xlane.f32.xlu0 %v2127
    %v2144 = vpop.xlane.xlu0 %2143
    %2145 = vmax.xlane.f32.xlu0 %v2128
    %v2146 = vpop.xlane.xlu0 %2145
    %2147 = vmax.xlane.f32.xlu0 %v2129
    %v2148 = vpop.xlane.xlu0 %2147
    %2149 = vmax.xlane.f32.xlu0 %v2130
    %v2150 = vpop.xlane.xlu0 %2149
    %2151 = vmax.xlane.f32.xlu0 %v2131
    %v2152 = vpop.xlane.xlu0 %2151
    %2153 = vmax.xlane.f32.xlu0 %v2132
    %v2154 = vpop.xlane.xlu0 %2153
    %2155 = vmax.xlane.f32.xlu0 %v2133
    %v2156 = vpop.xlane.xlu0 %2155
    %2157 = vmax.xlane.f32.xlu0 %v2134
    %v2158 = vpop.xlane.xlu0 %2157
    %2159 = vmax.xlane.f32.xlu0 %v2135
    %v2160 = vpop.xlane.xlu0 %2159
    %2161 = vmax.xlane.f32.xlu0 %v2136
    %v2162 = vpop.xlane.xlu0 %2161
    %2163 = vmax.xlane.f32.xlu0 %v2137
    %v2164 = vpop.xlane.xlu0 %2163
    %2165 = vmax.xlane.f32.xlu0 %v2138
    %v2166 = vpop.xlane.xlu0 %2165
    %2167 = vmax.xlane.f32.xlu0 %v2139
    %v2168 = vpop.xlane.xlu0 %2167
    %2169 = vmax.xlane.f32.xlu0 %v2140
    %v2170 = vpop.xlane.xlu0 %2169
    %2171 = vmax.xlane.f32.xlu0 %v2141
    %v2172 = vpop.xlane.xlu0 %2171
    %2173 = vmax.xlane.f32.xlu0 %v2142
    %v2174 = vpop.xlane.xlu0 %2173
    %v2175 = vsub.f32 %v2127, %v2144
    %v2176 = vsub.f32 %v2128, %v2146
    %v2177 = vsub.f32 %v2129, %v2148
    %v2178 = vsub.f32 %v2130, %v2150
    %v2179 = vsub.f32 %v2131, %v2152
    %v2180 = vsub.f32 %v2132, %v2154
    %v2181 = vsub.f32 %v2133, %v2156
    %v2182 = vsub.f32 %v2134, %v2158
    %v2183 = vsub.f32 %v2135, %v2160
    %v2184 = vsub.f32 %v2136, %v2162
    %v2185 = vsub.f32 %v2137, %v2164
    %v2186 = vsub.f32 %v2138, %v2166
    %v2187 = vsub.f32 %v2139, %v2168
    %v2188 = vsub.f32 %v2140, %v2170
    %v2189 = vsub.f32 %v2141, %v2172
    %v2190 = vsub.f32 %v2142, %v2174
    %v2191 = vmul.f32 %v2175, 1.442695
    %v2192 = vpow.pop %v2191
    %v2193 = vmul.f32 %v2176, 1.442695
    %v2194 = vpow.pop %v2193
    %v2195 = vmul.f32 %v2177, 1.442695
    %v2196 = vpow.pop %v2195
    %v2197 = vmul.f32 %v2178, 1.442695
    %v2198 = vpow.pop %v2197
    %v2199 = vmul.f32 %v2179, 1.442695
    %v2200 = vpow.pop %v2199
    %v2201 = vmul.f32 %v2180, 1.442695
    %v2202 = vpow.pop %v2201
    %v2203 = vmul.f32 %v2181, 1.442695
    %v2204 = vpow.pop %v2203
    %v2205 = vmul.f32 %v2182, 1.442695
    %v2206 = vpow.pop %v2205
    %v2207 = vmul.f32 %v2183, 1.442695
    %v2208 = vpow.pop %v2207
    %v2209 = vmul.f32 %v2184, 1.442695
    %v2210 = vpow.pop %v2209
    %v2211 = vmul.f32 %v2185, 1.442695
    %v2212 = vpow.pop %v2211
    %v2213 = vmul.f32 %v2186, 1.442695
    %v2214 = vpow.pop %v2213
    %v2215 = vmul.f32 %v2187, 1.442695
    %v2216 = vpow.pop %v2215
    %v2217 = vmul.f32 %v2188, 1.442695
    %v2218 = vpow.pop %v2217
    %v2219 = vmul.f32 %v2189, 1.442695
    %v2220 = vpow.pop %v2219
    %v2221 = vmul.f32 %v2190, 1.442695
    %v2222 = vpow.pop %v2221
    %2223 = vadd.xlane.f32.xlu0 %v2192
    %v2224 = vpop.xlane.xlu0 %2223
    %2225 = vadd.xlane.f32.xlu0 %v2194
    %v2226 = vpop.xlane.xlu0 %2225
    %2227 = vadd.xlane.f32.xlu0 %v2196
    %v2228 = vpop.xlane.xlu0 %2227
    %2229 = vadd.xlane.f32.xlu0 %v2198
    %v2230 = vpop.xlane.xlu0 %2229
    %2231 = vadd.xlane.f32.xlu0 %v2200
    %v2232 = vpop.xlane.xlu0 %2231
    %2233 = vadd.xlane.f32.xlu0 %v2202
    %v2234 = vpop.xlane.xlu0 %2233
    %2235 = vadd.xlane.f32.xlu0 %v2204
    %v2236 = vpop.xlane.xlu0 %2235
    %2237 = vadd.xlane.f32.xlu0 %v2206
    %v2238 = vpop.xlane.xlu0 %2237
    %2239 = vadd.xlane.f32.xlu0 %v2208
    %v2240 = vpop.xlane.xlu0 %2239
    %2241 = vadd.xlane.f32.xlu0 %v2210
    %v2242 = vpop.xlane.xlu0 %2241
    %2243 = vadd.xlane.f32.xlu0 %v2212
    %v2244 = vpop.xlane.xlu0 %2243
    %2245 = vadd.xlane.f32.xlu0 %v2214
    %v2246 = vpop.xlane.xlu0 %2245
    %2247 = vadd.xlane.f32.xlu0 %v2216
    %v2248 = vpop.xlane.xlu0 %2247
    %2249 = vadd.xlane.f32.xlu0 %v2218
    %v2250 = vpop.xlane.xlu0 %2249
    %2251 = vadd.xlane.f32.xlu0 %v2220
    %v2252 = vpop.xlane.xlu0 %2251
    %2253 = vadd.xlane.f32.xlu0 %v2222
    %v2254 = vpop.xlane.xlu0 %2253
    %v2255 = vrcp.pop %v2224
    %v2256 = vrcp.pop %v2226
    %v2257 = vrcp.pop %v2228
    %v2258 = vrcp.pop %v2230
    %v2259 = vrcp.pop %v2232
    %v2260 = vrcp.pop %v2234
    %v2261 = vrcp.pop %v2236
    %v2262 = vrcp.pop %v2238
    %v2263 = vrcp.pop %v2240
    %v2264 = vrcp.pop %v2242
    %v2265 = vrcp.pop %v2244
    %v2266 = vrcp.pop %v2246
    %v2267 = vrcp.pop %v2248
    %v2268 = vrcp.pop %v2250
    %v2269 = vrcp.pop %v2252
    %v2270 = vrcp.pop %v2254
    %v2271 = vmul.f32 %v2192, %v2255
    %v2272 = vmul.f32 %v2194, %v2256
    %v2273 = vmul.f32 %v2196, %v2257
    %v2274 = vmul.f32 %v2198, %v2258
    %v2275 = vmul.f32 %v2200, %v2259
    %v2276 = vmul.f32 %v2202, %v2260
    %v2277 = vmul.f32 %v2204, %v2261
    %v2278 = vmul.f32 %v2206, %v2262
    %v2279 = vmul.f32 %v2208, %v2263
    %v2280 = vmul.f32 %v2210, %v2264
    %v2281 = vmul.f32 %v2212, %v2265
    %v2282 = vmul.f32 %v2214, %v2266
    %v2283 = vmul.f32 %v2216, %v2267
    %v2284 = vmul.f32 %v2218, %v2268
    %v2285 = vmul.f32 %v2220, %v2269
    %v2286 = vmul.f32 %v2222, %v2270
    %2287 = vrot.lane.b32.xlu0 %v1272, 64
    %v2288 = vpop.permute.xlu0 %2287
    %2289 = vrot.lane.b32.xlu0 %v1275, 64
    %v2290 = vpop.permute.xlu0 %2289
    %2291 = vrot.lane.b32.xlu0 %v1278, 64
    %v2292 = vpop.permute.xlu0 %2291
    %2293 = vrot.lane.b32.xlu0 %v1281, 64
    %v2294 = vpop.permute.xlu0 %2293
    %2295 = vrot.lane.b32.xlu0 %v1284, 64
    %v2296 = vpop.permute.xlu0 %2295
    %2297 = vrot.lane.b32.xlu0 %v1287, 64
    %v2298 = vpop.permute.xlu0 %2297
    %2299 = vrot.lane.b32.xlu0 %v1290, 64
    %v2300 = vpop.permute.xlu0 %2299
    %2301 = vrot.lane.b32.xlu0 %v1293, 64
    %v2302 = vpop.permute.xlu0 %2301
    %2303 = vrot.lane.b32.xlu0 %v1296, 64
    %v2304 = vpop.permute.xlu0 %2303
    %2305 = vrot.lane.b32.xlu0 %v1299, 64
    %v2306 = vpop.permute.xlu0 %2305
    %2307 = vrot.lane.b32.xlu0 %v1302, 64
    %v2308 = vpop.permute.xlu0 %2307
    %2309 = vrot.lane.b32.xlu0 %v1305, 64
    %v2310 = vpop.permute.xlu0 %2309
    %2311 = vrot.lane.b32.xlu0 %v1308, 64
    %v2312 = vpop.permute.xlu0 %2311
    %2313 = vrot.lane.b32.xlu0 %v1311, 64
    %v2314 = vpop.permute.xlu0 %2313
    %2315 = vrot.lane.b32.xlu0 %v1314, 64
    %v2316 = vpop.permute.xlu0 %2315
    %2317 = vrot.lane.b32.xlu0 %v1317, 64
    %v2318 = vpop.permute.xlu0 %2317
    %2335 = vmatpush.msra.mxu0 %v2318
    %2336 = vmatpush.msra.mxu0 %v2316
    %2337 = vmatpush.msra.mxu0 %v2314
    %2338 = vmatpush.msra.mxu0 %v2312
    %2339 = vmatpush.msra.mxu0 %v2310
    %2340 = vmatpush.msra.mxu0 %v2308
    %2341 = vmatpush.msra.mxu0 %v2306
    %2342 = vmatpush.msra.mxu0 %v2304
    %2343 = vmatpush.msra.mxu0 %v2302
    %2344 = vmatpush.msra.mxu0 %v2300
    %2345 = vmatpush.msra.mxu0 %v2298
    %2346 = vmatpush.msra.mxu0 %v2296
    %2347 = vmatpush.msra.mxu0 %v2294
    %2348 = vmatpush.msra.mxu0 %v2292
    %2349 = vmatpush.msra.mxu0 %v2290
    %2350 = vmatpush.msra.mxu0 %v2288
    %2351 = vmatmul.f32.gmra.mxu0 %v2271
    %v2352 = vpop.f32.mrf.mxu0
    %v2353 = vadd.f32 0.0, %v2352
    %2354 = vmatmul.f32.gmra.mxu0 %v2272
    %v2355 = vpop.f32.mrf.mxu0
    %v2356 = vadd.f32 0.0, %v2355
    %2357 = vmatmul.f32.gmra.mxu0 %v2273
    %v2358 = vpop.f32.mrf.mxu0
    %v2359 = vadd.f32 0.0, %v2358
    %2360 = vmatmul.f32.gmra.mxu0 %v2274
    %v2361 = vpop.f32.mrf.mxu0
    %v2362 = vadd.f32 0.0, %v2361
    %2363 = vmatmul.f32.gmra.mxu0 %v2275
    %v2364 = vpop.f32.mrf.mxu0
    %v2365 = vadd.f32 0.0, %v2364
    %2366 = vmatmul.f32.gmra.mxu0 %v2276
    %v2367 = vpop.f32.mrf.mxu0
    %v2368 = vadd.f32 0.0, %v2367
    %2369 = vmatmul.f32.gmra.mxu0 %v2277
    %v2370 = vpop.f32.mrf.mxu0
    %v2371 = vadd.f32 0.0, %v2370
    %2372 = vmatmul.f32.gmra.mxu0 %v2278
    %v2373 = vpop.f32.mrf.mxu0
    %v2374 = vadd.f32 0.0, %v2373
    %2375 = vmatmul.f32.gmra.mxu0 %v2279
    %v2376 = vpop.f32.mrf.mxu0
    %v2377 = vadd.f32 0.0, %v2376
    %2378 = vmatmul.f32.gmra.mxu0 %v2280
    %v2379 = vpop.f32.mrf.mxu0
    %v2380 = vadd.f32 0.0, %v2379
    %2381 = vmatmul.f32.gmra.mxu0 %v2281
    %v2382 = vpop.f32.mrf.mxu0
    %v2383 = vadd.f32 0.0, %v2382
    %2384 = vmatmul.f32.gmra.mxu0 %v2282
    %v2385 = vpop.f32.mrf.mxu0
    %v2386 = vadd.f32 0.0, %v2385
    %2387 = vmatmul.f32.gmra.mxu0 %v2283
    %v2388 = vpop.f32.mrf.mxu0
    %v2389 = vadd.f32 0.0, %v2388
    %2390 = vmatmul.f32.gmra.mxu0 %v2284
    %v2391 = vpop.f32.mrf.mxu0
    %v2392 = vadd.f32 0.0, %v2391
    %2393 = vmatmul.f32.gmra.mxu0 %v2285
    %v2394 = vpop.f32.mrf.mxu0
    %v2395 = vadd.f32 0.0, %v2394
    %2396 = vmatmul.f32.gmra.mxu0 %v2286
    %v2397 = vpop.f32.mrf.mxu0
    %v2398 = vadd.f32 0.0, %v2397
    %2399 = vdwg.mxu0
    %2400 = vst.msk [vmem:[#allocation3] sm:$0xff] %vm259, %v2353
    %2401 = vst.msk [vmem:[#allocation3 + $0x8] sm:$0xff] %vm259, %v2356
    %2402 = vst.msk [vmem:[#allocation3 + $0x10] sm:$0xff] %vm259, %v2359
    %2403 = vst.msk [vmem:[#allocation3 + $0x18] sm:$0xff] %vm259, %v2362
    %2404 = vst.msk [vmem:[#allocation3 + $0x20] sm:$0xff] %vm259, %v2365
    %2405 = vst.msk [vmem:[#allocation3 + $0x28] sm:$0xff] %vm259, %v2368
    %2406 = vst.msk [vmem:[#allocation3 + $0x30] sm:$0xff] %vm259, %v2371
    %2407 = vst.msk [vmem:[#allocation3 + $0x38] sm:$0xff] %vm259, %v2374
    %2408 = vst.msk [vmem:[#allocation3 + $0x40] sm:$0xff] %vm259, %v2377
    %2409 = vst.msk [vmem:[#allocation3 + $0x48] sm:$0xff] %vm259, %v2380
    %2410 = vst.msk [vmem:[#allocation3 + $0x50] sm:$0xff] %vm259, %v2383
    %2411 = vst.msk [vmem:[#allocation3 + $0x58] sm:$0xff] %vm259, %v2386
    %2412 = vst.msk [vmem:[#allocation3 + $0x60] sm:$0xff] %vm259, %v2389
    %2413 = vst.msk [vmem:[#allocation3 + $0x68] sm:$0xff] %vm259, %v2392
    %2414 = vst.msk [vmem:[#allocation3 + $0x70] sm:$0xff] %vm259, %v2395
    %2415 = vst.msk [vmem:[#allocation3 + $0x78] sm:$0xff] %vm259, %v2398
    %v2416 = vld [vmem:[#allocation3] sm:$0xff]
    %v2417 = vld [vmem:[#allocation3 + $0x8] sm:$0xff]
    %v2418 = vld [vmem:[#allocation3 + $0x10] sm:$0xff]
    %v2419 = vld [vmem:[#allocation3 + $0x18] sm:$0xff]
    %v2420 = vld [vmem:[#allocation3 + $0x20] sm:$0xff]
    %v2421 = vld [vmem:[#allocation3 + $0x28] sm:$0xff]
    %v2422 = vld [vmem:[#allocation3 + $0x30] sm:$0xff]
    %v2423 = vld [vmem:[#allocation3 + $0x38] sm:$0xff]
    %v2424 = vld [vmem:[#allocation3 + $0x40] sm:$0xff]
    %v2425 = vld [vmem:[#allocation3 + $0x48] sm:$0xff]
    %v2426 = vld [vmem:[#allocation3 + $0x50] sm:$0xff]
    %v2427 = vld [vmem:[#allocation3 + $0x58] sm:$0xff]
    %v2428 = vld [vmem:[#allocation3 + $0x60] sm:$0xff]
    %v2429 = vld [vmem:[#allocation3 + $0x68] sm:$0xff]
    %v2430 = vld [vmem:[#allocation3 + $0x70] sm:$0xff]
    %v2431 = vld [vmem:[#allocation3 + $0x78] sm:$0xff]
    %v2433 = vsel %vm259, %v2416, 0
    %v2436 = vsel %vm259, %v2417, 0
    %v2439 = vsel %vm259, %v2418, 0
    %v2442 = vsel %vm259, %v2419, 0
    %v2445 = vsel %vm259, %v2420, 0
    %v2448 = vsel %vm259, %v2421, 0
    %v2451 = vsel %vm259, %v2422, 0
    %v2454 = vsel %vm259, %v2423, 0
    %v2457 = vsel %vm259, %v2424, 0
    %v2460 = vsel %vm259, %v2425, 0
    %v2463 = vsel %vm259, %v2426, 0
    %v2466 = vsel %vm259, %v2427, 0
    %v2469 = vsel %vm259, %v2428, 0
    %v2472 = vsel %vm259, %v2429, 0
    %v2475 = vsel %vm259, %v2430, 0
    %v2478 = vsel %vm259, %v2431, 0
    %2480 = vmatpush.msra.mxu0 0.0
    %2481 = vmatpush.msra.mxu0 0.0
    %2482 = vmatpush.msra.mxu0 0.0
    %2483 = vmatpush.msra.mxu0 0.0
    %2484 = vmatpush.msra.mxu0 0.0
    %2485 = vmatpush.msra.mxu0 0.0
    %2486 = vmatpush.msra.mxu0 0.0
    %2487 = vmatpush.msra.mxu0 0.0
    %2488 = vmatpush.msra.mxu0 0.0
    %2489 = vmatpush.msra.mxu0 0.0
    %2490 = vmatpush.msra.mxu0 0.0
    %2491 = vmatpush.msra.mxu0 0.0
    %2492 = vmatpush.msra.mxu0 %v56
    %2493 = vmatpush.msra.mxu0 %v55
    %2494 = vmatpush.msra.mxu0 %v54
    %2495 = vmatpush.msra.mxu0 %v53
    %2496 = vmatmul.f32.gmra.mxu0 %v2433
    %v2497 = vpop.f32.mrf.mxu0
    %v2498 = vadd.f32 %v1804, %v2497
    %2499 = vmatmul.f32.gmra.mxu0 %v2436
    %v2500 = vpop.f32.mrf.mxu0
    %v2501 = vadd.f32 %v1804, %v2500
    %2502 = vmatmul.f32.gmra.mxu0 %v2439
    %v2503 = vpop.f32.mrf.mxu0
    %v2504 = vadd.f32 %v1804, %v2503
    %2505 = vmatmul.f32.gmra.mxu0 %v2442
    %v2506 = vpop.f32.mrf.mxu0
    %v2507 = vadd.f32 %v1804, %v2506
    %2508 = vmatmul.f32.gmra.mxu0 %v2445
    %v2509 = vpop.f32.mrf.mxu0
    %v2510 = vadd.f32 %v1804, %v2509
    %2511 = vmatmul.f32.gmra.mxu0 %v2448
    %v2512 = vpop.f32.mrf.mxu0
    %v2513 = vadd.f32 %v1804, %v2512
    %2514 = vmatmul.f32.gmra.mxu0 %v2451
    %v2515 = vpop.f32.mrf.mxu0
    %v2516 = vadd.f32 %v1804, %v2515
    %2517 = vmatmul.f32.gmra.mxu0 %v2454
    %v2518 = vpop.f32.mrf.mxu0
    %v2519 = vadd.f32 %v1804, %v2518
    %2520 = vmatmul.f32.gmra.mxu0 %v2457
    %v2521 = vpop.f32.mrf.mxu0
    %v2522 = vadd.f32 %v1804, %v2521
    %2523 = vmatmul.f32.gmra.mxu0 %v2460
    %v2524 = vpop.f32.mrf.mxu0
    %v2525 = vadd.f32 %v1804, %v2524
    %2526 = vmatmul.f32.gmra.mxu0 %v2463
    %v2527 = vpop.f32.mrf.mxu0
    %v2528 = vadd.f32 %v1804, %v2527
    %2529 = vmatmul.f32.gmra.mxu0 %v2466
    %v2530 = vpop.f32.mrf.mxu0
    %v2531 = vadd.f32 %v1804, %v2530
    %2532 = vmatmul.f32.gmra.mxu0 %v2469
    %v2533 = vpop.f32.mrf.mxu0
    %v2534 = vadd.f32 %v1804, %v2533
    %2535 = vmatmul.f32.gmra.mxu0 %v2472
    %v2536 = vpop.f32.mrf.mxu0
    %v2537 = vadd.f32 %v1804, %v2536
    %2538 = vmatmul.f32.gmra.mxu0 %v2475
    %v2539 = vpop.f32.mrf.mxu0
    %v2540 = vadd.f32 %v1804, %v2539
    %2541 = vmatmul.f32.gmra.mxu0 %v2478
    %v2542 = vpop.f32.mrf.mxu0
    %v2543 = vadd.f32 %v1804, %v2542
    %2544 = vdwg.mxu0
    %v2545 = vadd.f32 %v316, %v2498
    %v2546 = vadd.f32 %v317, %v2501
    %v2547 = vadd.f32 %v318, %v2504
    %v2548 = vadd.f32 %v319, %v2507
    %v2549 = vadd.f32 %v320, %v2510
    %v2550 = vadd.f32 %v321, %v2513
    %v2551 = vadd.f32 %v322, %v2516
    %v2552 = vadd.f32 %v323, %v2519
    %v2553 = vadd.f32 %v324, %v2522
    %v2554 = vadd.f32 %v325, %v2525
    %v2555 = vadd.f32 %v326, %v2528
    %v2556 = vadd.f32 %v327, %v2531
    %v2557 = vadd.f32 %v328, %v2534
    %v2558 = vadd.f32 %v329, %v2537
    %v2559 = vadd.f32 %v330, %v2540
    %v2560 = vadd.f32 %v331, %v2543
    %2561 = vst.msk [vmem:[#allocation2 + $0x80] sm:$0xff] %vm259, %v2545
    %2562 = vst.msk [vmem:[#allocation2 + $0x88] sm:$0xff] %vm259, %v2546
    %2563 = vst.msk [vmem:[#allocation2 + $0x90] sm:$0xff] %vm259, %v2547
    %2564 = vst.msk [vmem:[#allocation2 + $0x98] sm:$0xff] %vm259, %v2548
    %2565 = vst.msk [vmem:[#allocation2 + $0xa0] sm:$0xff] %vm259, %v2549
    %2566 = vst.msk [vmem:[#allocation2 + $0xa8] sm:$0xff] %vm259, %v2550
    %2567 = vst.msk [vmem:[#allocation2 + $0xb0] sm:$0xff] %vm259, %v2551
    %2568 = vst.msk [vmem:[#allocation2 + $0xb8] sm:$0xff] %vm259, %v2552
    %2569 = vst.msk [vmem:[#allocation2 + $0xc0] sm:$0xff] %vm259, %v2553
    %2570 = vst.msk [vmem:[#allocation2 + $0xc8] sm:$0xff] %vm259, %v2554
    %2571 = vst.msk [vmem:[#allocation2 + $0xd0] sm:$0xff] %vm259, %v2555
    %2572 = vst.msk [vmem:[#allocation2 + $0xd8] sm:$0xff] %vm259, %v2556
    %2573 = vst.msk [vmem:[#allocation2 + $0xe0] sm:$0xff] %vm259, %v2557
    %2574 = vst.msk [vmem:[#allocation2 + $0xe8] sm:$0xff] %vm259, %v2558
    %2575 = vst.msk [vmem:[#allocation2 + $0xf0] sm:$0xff] %vm259, %v2559
    %2576 = vst.msk [vmem:[#allocation2 + $0xf8] sm:$0xff] %vm259, %v2560
    %v2577 = vld [vmem:[#allocation2] sm:$0xff]
    %v2578 = vld [vmem:[#allocation2 + $0x8] sm:$0xff]
    %v2579 = vld [vmem:[#allocation2 + $0x10] sm:$0xff]
    %v2580 = vld [vmem:[#allocation2 + $0x18] sm:$0xff]
    %v2581 = vld [vmem:[#allocation2 + $0x20] sm:$0xff]
    %v2582 = vld [vmem:[#allocation2 + $0x28] sm:$0xff]
    %v2583 = vld [vmem:[#allocation2 + $0x30] sm:$0xff]
    %v2584 = vld [vmem:[#allocation2 + $0x38] sm:$0xff]
    %v2585 = vld [vmem:[#allocation2 + $0x40] sm:$0xff]
    %v2586 = vld [vmem:[#allocation2 + $0x48] sm:$0xff]
    %v2587 = vld [vmem:[#allocation2 + $0x50] sm:$0xff]
    %v2588 = vld [vmem:[#allocation2 + $0x58] sm:$0xff]
    %v2589 = vld [vmem:[#allocation2 + $0x60] sm:$0xff]
    %v2590 = vld [vmem:[#allocation2 + $0x68] sm:$0xff]
    %v2591 = vld [vmem:[#allocation2 + $0x70] sm:$0xff]
    %v2592 = vld [vmem:[#allocation2 + $0x78] sm:$0xff]
    %v2593 = vld [vmem:[#allocation2 + $0x80] sm:$0xff]
    %v2594 = vld [vmem:[#allocation2 + $0x88] sm:$0xff]
    %v2595 = vld [vmem:[#allocation2 + $0x90] sm:$0xff]
    %v2596 = vld [vmem:[#allocation2 + $0x98] sm:$0xff]
    %v2597 = vld [vmem:[#allocation2 + $0xa0] sm:$0xff]
    %v2598 = vld [vmem:[#allocation2 + $0xa8] sm:$0xff]
    %v2599 = vld [vmem:[#allocation2 + $0xb0] sm:$0xff]
    %v2600 = vld [vmem:[#allocation2 + $0xb8] sm:$0xff]
    %v2601 = vld [vmem:[#allocation2 + $0xc0] sm:$0xff]
    %v2602 = vld [vmem:[#allocation2 + $0xc8] sm:$0xff]
    %v2603 = vld [vmem:[#allocation2 + $0xd0] sm:$0xff]
    %v2604 = vld [vmem:[#allocation2 + $0xd8] sm:$0xff]
    %v2605 = vld [vmem:[#allocation2 + $0xe0] sm:$0xff]
    %v2606 = vld [vmem:[#allocation2 + $0xe8] sm:$0xff]
    %v2607 = vld [vmem:[#allocation2 + $0xf0] sm:$0xff]
    %v2608 = vld [vmem:[#allocation2 + $0xf8] sm:$0xff]
    %v2609 = vsel %vm259, %v2577, 0.0
    %2610 = vadd.xlane.f32.xlu0 %v2609
    %v2611 = vpop.xlane.xlu0 %2610
    %v2612 = vsel %vm259, %v2578, 0.0
    %2613 = vadd.xlane.f32.xlu0 %v2612
    %v2614 = vpop.xlane.xlu0 %2613
    %v2615 = vsel %vm259, %v2579, 0.0
    %2616 = vadd.xlane.f32.xlu0 %v2615
    %v2617 = vpop.xlane.xlu0 %2616
    %v2618 = vsel %vm259, %v2580, 0.0
    %2619 = vadd.xlane.f32.xlu0 %v2618
    %v2620 = vpop.xlane.xlu0 %2619
    %v2621 = vsel %vm259, %v2581, 0.0
    %2622 = vadd.xlane.f32.xlu0 %v2621
    %v2623 = vpop.xlane.xlu0 %2622
    %v2624 = vsel %vm259, %v2582, 0.0
    %2625 = vadd.xlane.f32.xlu0 %v2624
    %v2626 = vpop.xlane.xlu0 %2625
    %v2627 = vsel %vm259, %v2583, 0.0
    %2628 = vadd.xlane.f32.xlu0 %v2627
    %v2629 = vpop.xlane.xlu0 %2628
    %v2630 = vsel %vm259, %v2584, 0.0
    %2631 = vadd.xlane.f32.xlu0 %v2630
    %v2632 = vpop.xlane.xlu0 %2631
    %v2633 = vsel %vm259, %v2585, 0.0
    %2634 = vadd.xlane.f32.xlu0 %v2633
    %v2635 = vpop.xlane.xlu0 %2634
    %v2636 = vsel %vm259, %v2586, 0.0
    %2637 = vadd.xlane.f32.xlu0 %v2636
    %v2638 = vpop.xlane.xlu0 %2637
    %v2639 = vsel %vm259, %v2587, 0.0
    %2640 = vadd.xlane.f32.xlu0 %v2639
    %v2641 = vpop.xlane.xlu0 %2640
    %v2642 = vsel %vm259, %v2588, 0.0
    %2643 = vadd.xlane.f32.xlu0 %v2642
    %v2644 = vpop.xlane.xlu0 %2643
    %v2645 = vsel %vm259, %v2589, 0.0
    %2646 = vadd.xlane.f32.xlu0 %v2645
    %v2647 = vpop.xlane.xlu0 %2646
    %v2648 = vsel %vm259, %v2590, 0.0
    %2649 = vadd.xlane.f32.xlu0 %v2648
    %v2650 = vpop.xlane.xlu0 %2649
    %v2651 = vsel %vm259, %v2591, 0.0
    %2652 = vadd.xlane.f32.xlu0 %v2651
    %v2653 = vpop.xlane.xlu0 %2652
    %v2654 = vsel %vm259, %v2592, 0.0
    %2655 = vadd.xlane.f32.xlu0 %v2654
    %v2656 = vpop.xlane.xlu0 %2655
    %v2657 = vsel %vm259, %v2593, 0.0
    %2658 = vadd.xlane.f32.xlu0 %v2657
    %v2659 = vpop.xlane.xlu0 %2658
    %v2660 = vsel %vm259, %v2594, 0.0
    %2661 = vadd.xlane.f32.xlu0 %v2660
    %v2662 = vpop.xlane.xlu0 %2661
    %v2663 = vsel %vm259, %v2595, 0.0
    %2664 = vadd.xlane.f32.xlu0 %v2663
    %v2665 = vpop.xlane.xlu0 %2664
    %v2666 = vsel %vm259, %v2596, 0.0
    %2667 = vadd.xlane.f32.xlu0 %v2666
    %v2668 = vpop.xlane.xlu0 %2667
    %v2669 = vsel %vm259, %v2597, 0.0
    %2670 = vadd.xlane.f32.xlu0 %v2669
    %v2671 = vpop.xlane.xlu0 %2670
    %v2672 = vsel %vm259, %v2598, 0.0
    %2673 = vadd.xlane.f32.xlu0 %v2672
    %v2674 = vpop.xlane.xlu0 %2673
    %v2675 = vsel %vm259, %v2599, 0.0
    %2676 = vadd.xlane.f32.xlu0 %v2675
    %v2677 = vpop.xlane.xlu0 %2676
    %v2678 = vsel %vm259, %v2600, 0.0
    %2679 = vadd.xlane.f32.xlu0 %v2678
    %v2680 = vpop.xlane.xlu0 %2679
    %v2681 = vsel %vm259, %v2601, 0.0
    %2682 = vadd.xlane.f32.xlu0 %v2681
    %v2683 = vpop.xlane.xlu0 %2682
    %v2684 = vsel %vm259, %v2602, 0.0
    %2685 = vadd.xlane.f32.xlu0 %v2684
    %v2686 = vpop.xlane.xlu0 %2685
    %v2687 = vsel %vm259, %v2603, 0.0
    %2688 = vadd.xlane.f32.xlu0 %v2687
    %v2689 = vpop.xlane.xlu0 %2688
    %v2690 = vsel %vm259, %v2604, 0.0
    %2691 = vadd.xlane.f32.xlu0 %v2690
    %v2692 = vpop.xlane.xlu0 %2691
    %v2693 = vsel %vm259, %v2605, 0.0
    %2694 = vadd.xlane.f32.xlu0 %v2693
    %v2695 = vpop.xlane.xlu0 %2694
    %v2696 = vsel %vm259, %v2606, 0.0
    %2697 = vadd.xlane.f32.xlu0 %v2696
    %v2698 = vpop.xlane.xlu0 %2697
    %v2699 = vsel %vm259, %v2607, 0.0
    %2700 = vadd.xlane.f32.xlu0 %v2699
    %v2701 = vpop.xlane.xlu0 %2700
    %v2702 = vsel %vm259, %v2608, 0.0
    %2703 = vadd.xlane.f32.xlu0 %v2702
    %v2704 = vpop.xlane.xlu0 %2703
    %v2705 = vmul.f32 %v2611, %v434
    %v2706 = vmul.f32 %v2614, %v434
    %v2707 = vmul.f32 %v2617, %v434
    %v2708 = vmul.f32 %v2620, %v434
    %v2709 = vmul.f32 %v2623, %v434
    %v2710 = vmul.f32 %v2626, %v434
    %v2711 = vmul.f32 %v2629, %v434
    %v2712 = vmul.f32 %v2632, %v434
    %v2713 = vmul.f32 %v2635, %v434
    %v2714 = vmul.f32 %v2638, %v434
    %v2715 = vmul.f32 %v2641, %v434
    %v2716 = vmul.f32 %v2644, %v434
    %v2717 = vmul.f32 %v2647, %v434
    %v2718 = vmul.f32 %v2650, %v434
    %v2719 = vmul.f32 %v2653, %v434
    %v2720 = vmul.f32 %v2656, %v434
    %v2721 = vmul.f32 %v2659, %v434
    %v2722 = vmul.f32 %v2662, %v434
    %v2723 = vmul.f32 %v2665, %v434
    %v2724 = vmul.f32 %v2668, %v434
    %v2725 = vmul.f32 %v2671, %v434
    %v2726 = vmul.f32 %v2674, %v434
    %v2727 = vmul.f32 %v2677, %v434
    %v2728 = vmul.f32 %v2680, %v434
    %v2729 = vmul.f32 %v2683, %v434
    %v2730 = vmul.f32 %v2686, %v434
    %v2731 = vmul.f32 %v2689, %v434
    %v2732 = vmul.f32 %v2692, %v434
    %v2733 = vmul.f32 %v2695, %v434
    %v2734 = vmul.f32 %v2698, %v434
    %v2735 = vmul.f32 %v2701, %v434
    %v2736 = vmul.f32 %v2704, %v434
    %v2737 = vsub.f32 %v2577, %v2705
    %v2738 = vsub.f32 %v2578, %v2706
    %v2739 = vsub.f32 %v2579, %v2707
    %v2740 = vsub.f32 %v2580, %v2708
    %v2741 = vsub.f32 %v2581, %v2709
    %v2742 = vsub.f32 %v2582, %v2710
    %v2743 = vsub.f32 %v2583, %v2711
    %v2744 = vsub.f32 %v2584, %v2712
    %v2745 = vsub.f32 %v2585, %v2713
    %v2746 = vsub.f32 %v2586, %v2714
    %v2747 = vsub.f32 %v2587, %v2715
    %v2748 = vsub.f32 %v2588, %v2716
    %v2749 = vsub.f32 %v2589, %v2717
    %v2750 = vsub.f32 %v2590, %v2718
    %v2751 = vsub.f32 %v2591, %v2719
    %v2752 = vsub.f32 %v2592, %v2720
    %v2753 = vsub.f32 %v2593, %v2721
    %v2754 = vsub.f32 %v2594, %v2722
    %v2755 = vsub.f32 %v2595, %v2723
    %v2756 = vsub.f32 %v2596, %v2724
    %v2757 = vsub.f32 %v2597, %v2725
    %v2758 = vsub.f32 %v2598, %v2726
    %v2759 = vsub.f32 %v2599, %v2727
    %v2760 = vsub.f32 %v2600, %v2728
    %v2761 = vsub.f32 %v2601, %v2729
    %v2762 = vsub.f32 %v2602, %v2730
    %v2763 = vsub.f32 %v2603, %v2731
    %v2764 = vsub.f32 %v2604, %v2732
    %v2765 = vsub.f32 %v2605, %v2733
    %v2766 = vsub.f32 %v2606, %v2734
    %v2767 = vsub.f32 %v2607, %v2735
    %v2768 = vsub.f32 %v2608, %v2736
    %v2769 = vmul.f32 %v2737, %v2737
    %v2770 = vmul.f32 %v2738, %v2738
    %v2771 = vmul.f32 %v2739, %v2739
    %v2772 = vmul.f32 %v2740, %v2740
    %v2773 = vmul.f32 %v2741, %v2741
    %v2774 = vmul.f32 %v2742, %v2742
    %v2775 = vmul.f32 %v2743, %v2743
    %v2776 = vmul.f32 %v2744, %v2744
    %v2777 = vmul.f32 %v2745, %v2745
    %v2778 = vmul.f32 %v2746, %v2746
    %v2779 = vmul.f32 %v2747, %v2747
    %v2780 = vmul.f32 %v2748, %v2748
    %v2781 = vmul.f32 %v2749, %v2749
    %v2782 = vmul.f32 %v2750, %v2750
    %v2783 = vmul.f32 %v2751, %v2751
    %v2784 = vmul.f32 %v2752, %v2752
    %v2785 = vmul.f32 %v2753, %v2753
    %v2786 = vmul.f32 %v2754, %v2754
    %v2787 = vmul.f32 %v2755, %v2755
    %v2788 = vmul.f32 %v2756, %v2756
    %v2789 = vmul.f32 %v2757, %v2757
    %v2790 = vmul.f32 %v2758, %v2758
    %v2791 = vmul.f32 %v2759, %v2759
    %v2792 = vmul.f32 %v2760, %v2760
    %v2793 = vmul.f32 %v2761, %v2761
    %v2794 = vmul.f32 %v2762, %v2762
    %v2795 = vmul.f32 %v2763, %v2763
    %v2796 = vmul.f32 %v2764, %v2764
    %v2797 = vmul.f32 %v2765, %v2765
    %v2798 = vmul.f32 %v2766, %v2766
    %v2799 = vmul.f32 %v2767, %v2767
    %v2800 = vmul.f32 %v2768, %v2768
    %v2801 = vsel %vm259, %v2769, 0.0
    %2802 = vadd.xlane.f32.xlu0 %v2801
    %v2803 = vpop.xlane.xlu0 %2802
    %v2804 = vsel %vm259, %v2770, 0.0
    %2805 = vadd.xlane.f32.xlu0 %v2804
    %v2806 = vpop.xlane.xlu0 %2805
    %v2807 = vsel %vm259, %v2771, 0.0
    %2808 = vadd.xlane.f32.xlu0 %v2807
    %v2809 = vpop.xlane.xlu0 %2808
    %v2810 = vsel %vm259, %v2772, 0.0
    %2811 = vadd.xlane.f32.xlu0 %v2810
    %v2812 = vpop.xlane.xlu0 %2811
    %v2813 = vsel %vm259, %v2773, 0.0
    %2814 = vadd.xlane.f32.xlu0 %v2813
    %v2815 = vpop.xlane.xlu0 %2814
    %v2816 = vsel %vm259, %v2774, 0.0
    %2817 = vadd.xlane.f32.xlu0 %v2816
    %v2818 = vpop.xlane.xlu0 %2817
    %v2819 = vsel %vm259, %v2775, 0.0
    %2820 = vadd.xlane.f32.xlu0 %v2819
    %v2821 = vpop.xlane.xlu0 %2820
    %v2822 = vsel %vm259, %v2776, 0.0
    %2823 = vadd.xlane.f32.xlu0 %v2822
    %v2824 = vpop.xlane.xlu0 %2823
    %v2825 = vsel %vm259, %v2777, 0.0
    %2826 = vadd.xlane.f32.xlu0 %v2825
    %v2827 = vpop.xlane.xlu0 %2826
    %v2828 = vsel %vm259, %v2778, 0.0
    %2829 = vadd.xlane.f32.xlu0 %v2828
    %v2830 = vpop.xlane.xlu0 %2829
    %v2831 = vsel %vm259, %v2779, 0.0
    %2832 = vadd.xlane.f32.xlu0 %v2831
    %v2833 = vpop.xlane.xlu0 %2832
    %v2834 = vsel %vm259, %v2780, 0.0
    %2835 = vadd.xlane.f32.xlu0 %v2834
    %v2836 = vpop.xlane.xlu0 %2835
    %v2837 = vsel %vm259, %v2781, 0.0
    %2838 = vadd.xlane.f32.xlu0 %v2837
    %v2839 = vpop.xlane.xlu0 %2838
    %v2840 = vsel %vm259, %v2782, 0.0
    %2841 = vadd.xlane.f32.xlu0 %v2840
    %v2842 = vpop.xlane.xlu0 %2841
    %v2843 = vsel %vm259, %v2783, 0.0
    %2844 = vadd.xlane.f32.xlu0 %v2843
    %v2845 = vpop.xlane.xlu0 %2844
    %v2846 = vsel %vm259, %v2784, 0.0
    %2847 = vadd.xlane.f32.xlu0 %v2846
    %v2848 = vpop.xlane.xlu0 %2847
    %v2849 = vsel %vm259, %v2785, 0.0
    %2850 = vadd.xlane.f32.xlu0 %v2849
    %v2851 = vpop.xlane.xlu0 %2850
    %v2852 = vsel %vm259, %v2786, 0.0
    %2853 = vadd.xlane.f32.xlu0 %v2852
    %v2854 = vpop.xlane.xlu0 %2853
    %v2855 = vsel %vm259, %v2787, 0.0
    %2856 = vadd.xlane.f32.xlu0 %v2855
    %v2857 = vpop.xlane.xlu0 %2856
    %v2858 = vsel %vm259, %v2788, 0.0
    %2859 = vadd.xlane.f32.xlu0 %v2858
    %v2860 = vpop.xlane.xlu0 %2859
    %v2861 = vsel %vm259, %v2789, 0.0
    %2862 = vadd.xlane.f32.xlu0 %v2861
    %v2863 = vpop.xlane.xlu0 %2862
    %v2864 = vsel %vm259, %v2790, 0.0
    %2865 = vadd.xlane.f32.xlu0 %v2864
    %v2866 = vpop.xlane.xlu0 %2865
    %v2867 = vsel %vm259, %v2791, 0.0
    %2868 = vadd.xlane.f32.xlu0 %v2867
    %v2869 = vpop.xlane.xlu0 %2868
    %v2870 = vsel %vm259, %v2792, 0.0
    %2871 = vadd.xlane.f32.xlu0 %v2870
    %v2872 = vpop.xlane.xlu0 %2871
    %v2873 = vsel %vm259, %v2793, 0.0
    %2874 = vadd.xlane.f32.xlu0 %v2873
    %v2875 = vpop.xlane.xlu0 %2874
    %v2876 = vsel %vm259, %v2794, 0.0
    %2877 = vadd.xlane.f32.xlu0 %v2876
    %v2878 = vpop.xlane.xlu0 %2877
    %v2879 = vsel %vm259, %v2795, 0.0
    %2880 = vadd.xlane.f32.xlu0 %v2879
    %v2881 = vpop.xlane.xlu0 %2880
    %v2882 = vsel %vm259, %v2796, 0.0
    %2883 = vadd.xlane.f32.xlu0 %v2882
    %v2884 = vpop.xlane.xlu0 %2883
    %v2885 = vsel %vm259, %v2797, 0.0
    %2886 = vadd.xlane.f32.xlu0 %v2885
    %v2887 = vpop.xlane.xlu0 %2886
    %v2888 = vsel %vm259, %v2798, 0.0
    %2889 = vadd.xlane.f32.xlu0 %v2888
    %v2890 = vpop.xlane.xlu0 %2889
    %v2891 = vsel %vm259, %v2799, 0.0
    %2892 = vadd.xlane.f32.xlu0 %v2891
    %v2893 = vpop.xlane.xlu0 %2892
    %v2894 = vsel %vm259, %v2800, 0.0
    %2895 = vadd.xlane.f32.xlu0 %v2894
    %v2896 = vpop.xlane.xlu0 %2895
    %v2897 = vmul.f32 %v2803, %v434
    %v2898 = vmul.f32 %v2806, %v434
    %v2899 = vmul.f32 %v2809, %v434
    %v2900 = vmul.f32 %v2812, %v434
    %v2901 = vmul.f32 %v2815, %v434
    %v2902 = vmul.f32 %v2818, %v434
    %v2903 = vmul.f32 %v2821, %v434
    %v2904 = vmul.f32 %v2824, %v434
    %v2905 = vmul.f32 %v2827, %v434
    %v2906 = vmul.f32 %v2830, %v434
    %v2907 = vmul.f32 %v2833, %v434
    %v2908 = vmul.f32 %v2836, %v434
    %v2909 = vmul.f32 %v2839, %v434
    %v2910 = vmul.f32 %v2842, %v434
    %v2911 = vmul.f32 %v2845, %v434
    %v2912 = vmul.f32 %v2848, %v434
    %v2913 = vmul.f32 %v2851, %v434
    %v2914 = vmul.f32 %v2854, %v434
    %v2915 = vmul.f32 %v2857, %v434
    %v2916 = vmul.f32 %v2860, %v434
    %v2917 = vmul.f32 %v2863, %v434
    %v2918 = vmul.f32 %v2866, %v434
    %v2919 = vmul.f32 %v2869, %v434
    %v2920 = vmul.f32 %v2872, %v434
    %v2921 = vmul.f32 %v2875, %v434
    %v2922 = vmul.f32 %v2878, %v434
    %v2923 = vmul.f32 %v2881, %v434
    %v2924 = vmul.f32 %v2884, %v434
    %v2925 = vmul.f32 %v2887, %v434
    %v2926 = vmul.f32 %v2890, %v434
    %v2927 = vmul.f32 %v2893, %v434
    %v2928 = vmul.f32 %v2896, %v434
    %v2929 = vadd.f32 %v2897, 1e-05
    %v2930 = vadd.f32 %v2898, 1e-05
    %v2931 = vadd.f32 %v2899, 1e-05
    %v2932 = vadd.f32 %v2900, 1e-05
    %v2933 = vadd.f32 %v2901, 1e-05
    %v2934 = vadd.f32 %v2902, 1e-05
    %v2935 = vadd.f32 %v2903, 1e-05
    %v2936 = vadd.f32 %v2904, 1e-05
    %v2937 = vadd.f32 %v2905, 1e-05
    %v2938 = vadd.f32 %v2906, 1e-05
    %v2939 = vadd.f32 %v2907, 1e-05
    %v2940 = vadd.f32 %v2908, 1e-05
    %v2941 = vadd.f32 %v2909, 1e-05
    %v2942 = vadd.f32 %v2910, 1e-05
    %v2943 = vadd.f32 %v2911, 1e-05
    %v2944 = vadd.f32 %v2912, 1e-05
    %v2945 = vadd.f32 %v2913, 1e-05
    %v2946 = vadd.f32 %v2914, 1e-05
    %v2947 = vadd.f32 %v2915, 1e-05
    %v2948 = vadd.f32 %v2916, 1e-05
    %v2949 = vadd.f32 %v2917, 1e-05
    %v2950 = vadd.f32 %v2918, 1e-05
    %v2951 = vadd.f32 %v2919, 1e-05
    %v2952 = vadd.f32 %v2920, 1e-05
    %v2953 = vadd.f32 %v2921, 1e-05
    %v2954 = vadd.f32 %v2922, 1e-05
    %v2955 = vadd.f32 %v2923, 1e-05
    %v2956 = vadd.f32 %v2924, 1e-05
    %v2957 = vadd.f32 %v2925, 1e-05
    %v2958 = vadd.f32 %v2926, 1e-05
    %v2959 = vadd.f32 %v2927, 1e-05
    %v2960 = vadd.f32 %v2928, 1e-05
    %v2961 = vrsqrt.pop %v2929
    %v2962 = vmul.f32 %v2961, %v2929
    %v2963 = vmul.f32 %v2962, %v2961
    %v2964 = vmul.f32 0.5, %v2963
    %v2965 = vsub.f32 1.5, %v2964
    %v2966 = vmul.f32 %v2961, %v2965
    %vm2967 = vweird.f32 %v2929
    %vm2968 = vweird.f32 %v2961
    %vm2969 = vmor %vm2967, %vm2968
    %v2970 = vsel %vm2969, %v2961, %v2966
    %v2971 = vrsqrt.pop %v2930
    %v2972 = vmul.f32 %v2971, %v2930
    %v2973 = vmul.f32 %v2972, %v2971
    %v2974 = vmul.f32 0.5, %v2973
    %v2975 = vsub.f32 1.5, %v2974
    %v2976 = vmul.f32 %v2971, %v2975
    %vm2977 = vweird.f32 %v2930
    %vm2978 = vweird.f32 %v2971
    %vm2979 = vmor %vm2977, %vm2978
    %v2980 = vsel %vm2979, %v2971, %v2976
    %v2981 = vrsqrt.pop %v2931
    %v2982 = vmul.f32 %v2981, %v2931
    %v2983 = vmul.f32 %v2982, %v2981
    %v2984 = vmul.f32 0.5, %v2983
    %v2985 = vsub.f32 1.5, %v2984
    %v2986 = vmul.f32 %v2981, %v2985
    %vm2987 = vweird.f32 %v2931
    %vm2988 = vweird.f32 %v2981
    %vm2989 = vmor %vm2987, %vm2988
    %v2990 = vsel %vm2989, %v2981, %v2986
    %v2991 = vrsqrt.pop %v2932
    %v2992 = vmul.f32 %v2991, %v2932
    %v2993 = vmul.f32 %v2992, %v2991
    %v2994 = vmul.f32 0.5, %v2993
    %v2995 = vsub.f32 1.5, %v2994
    %v2996 = vmul.f32 %v2991, %v2995
    %vm2997 = vweird.f32 %v2932
    %vm2998 = vweird.f32 %v2991
    %vm2999 = vmor %vm2997, %vm2998
    %v3000 = vsel %vm2999, %v2991, %v2996
    %v3001 = vrsqrt.pop %v2933
    %v3002 = vmul.f32 %v3001, %v2933
    %v3003 = vmul.f32 %v3002, %v3001
    %v3004 = vmul.f32 0.5, %v3003
    %v3005 = vsub.f32 1.5, %v3004
    %v3006 = vmul.f32 %v3001, %v3005
    %vm3007 = vweird.f32 %v2933
    %vm3008 = vweird.f32 %v3001
    %vm3009 = vmor %vm3007, %vm3008
    %v3010 = vsel %vm3009, %v3001, %v3006
    %v3011 = vrsqrt.pop %v2934
    %v3012 = vmul.f32 %v3011, %v2934
    %v3013 = vmul.f32 %v3012, %v3011
    %v3014 = vmul.f32 0.5, %v3013
    %v3015 = vsub.f32 1.5, %v3014
    %v3016 = vmul.f32 %v3011, %v3015
    %vm3017 = vweird.f32 %v2934
    %vm3018 = vweird.f32 %v3011
    %vm3019 = vmor %vm3017, %vm3018
    %v3020 = vsel %vm3019, %v3011, %v3016
    %v3021 = vrsqrt.pop %v2935
    %v3022 = vmul.f32 %v3021, %v2935
    %v3023 = vmul.f32 %v3022, %v3021
    %v3024 = vmul.f32 0.5, %v3023
    %v3025 = vsub.f32 1.5, %v3024
    %v3026 = vmul.f32 %v3021, %v3025
    %vm3027 = vweird.f32 %v2935
    %vm3028 = vweird.f32 %v3021
    %vm3029 = vmor %vm3027, %vm3028
    %v3030 = vsel %vm3029, %v3021, %v3026
    %v3031 = vrsqrt.pop %v2936
    %v3032 = vmul.f32 %v3031, %v2936
    %v3033 = vmul.f32 %v3032, %v3031
    %v3034 = vmul.f32 0.5, %v3033
    %v3035 = vsub.f32 1.5, %v3034
    %v3036 = vmul.f32 %v3031, %v3035
    %vm3037 = vweird.f32 %v2936
    %vm3038 = vweird.f32 %v3031
    %vm3039 = vmor %vm3037, %vm3038
    %v3040 = vsel %vm3039, %v3031, %v3036
    %v3041 = vrsqrt.pop %v2937
    %v3042 = vmul.f32 %v3041, %v2937
    %v3043 = vmul.f32 %v3042, %v3041
    %v3044 = vmul.f32 0.5, %v3043
    %v3045 = vsub.f32 1.5, %v3044
    %v3046 = vmul.f32 %v3041, %v3045
    %vm3047 = vweird.f32 %v2937
    %vm3048 = vweird.f32 %v3041
    %vm3049 = vmor %vm3047, %vm3048
    %v3050 = vsel %vm3049, %v3041, %v3046
    %v3051 = vrsqrt.pop %v2938
    %v3052 = vmul.f32 %v3051, %v2938
    %v3053 = vmul.f32 %v3052, %v3051
    %v3054 = vmul.f32 0.5, %v3053
    %v3055 = vsub.f32 1.5, %v3054
    %v3056 = vmul.f32 %v3051, %v3055
    %vm3057 = vweird.f32 %v2938
    %vm3058 = vweird.f32 %v3051
    %vm3059 = vmor %vm3057, %vm3058
    %v3060 = vsel %vm3059, %v3051, %v3056
    %v3061 = vrsqrt.pop %v2939
    %v3062 = vmul.f32 %v3061, %v2939
    %v3063 = vmul.f32 %v3062, %v3061
    %v3064 = vmul.f32 0.5, %v3063
    %v3065 = vsub.f32 1.5, %v3064
    %v3066 = vmul.f32 %v3061, %v3065
    %vm3067 = vweird.f32 %v2939
    %vm3068 = vweird.f32 %v3061
    %vm3069 = vmor %vm3067, %vm3068
    %v3070 = vsel %vm3069, %v3061, %v3066
    %v3071 = vrsqrt.pop %v2940
    %v3072 = vmul.f32 %v3071, %v2940
    %v3073 = vmul.f32 %v3072, %v3071
    %v3074 = vmul.f32 0.5, %v3073
    %v3075 = vsub.f32 1.5, %v3074
    %v3076 = vmul.f32 %v3071, %v3075
    %vm3077 = vweird.f32 %v2940
    %vm3078 = vweird.f32 %v3071
    %vm3079 = vmor %vm3077, %vm3078
    %v3080 = vsel %vm3079, %v3071, %v3076
    %v3081 = vrsqrt.pop %v2941
    %v3082 = vmul.f32 %v3081, %v2941
    %v3083 = vmul.f32 %v3082, %v3081
    %v3084 = vmul.f32 0.5, %v3083
    %v3085 = vsub.f32 1.5, %v3084
    %v3086 = vmul.f32 %v3081, %v3085
    %vm3087 = vweird.f32 %v2941
    %vm3088 = vweird.f32 %v3081
    %vm3089 = vmor %vm3087, %vm3088
    %v3090 = vsel %vm3089, %v3081, %v3086
    %v3091 = vrsqrt.pop %v2942
    %v3092 = vmul.f32 %v3091, %v2942
    %v3093 = vmul.f32 %v3092, %v3091
    %v3094 = vmul.f32 0.5, %v3093
    %v3095 = vsub.f32 1.5, %v3094
    %v3096 = vmul.f32 %v3091, %v3095
    %vm3097 = vweird.f32 %v2942
    %vm3098 = vweird.f32 %v3091
    %vm3099 = vmor %vm3097, %vm3098
    %v3100 = vsel %vm3099, %v3091, %v3096
    %v3101 = vrsqrt.pop %v2943
    %v3102 = vmul.f32 %v3101, %v2943
    %v3103 = vmul.f32 %v3102, %v3101
    %v3104 = vmul.f32 0.5, %v3103
    %v3105 = vsub.f32 1.5, %v3104
    %v3106 = vmul.f32 %v3101, %v3105
    %vm3107 = vweird.f32 %v2943
    %vm3108 = vweird.f32 %v3101
    %vm3109 = vmor %vm3107, %vm3108
    %v3110 = vsel %vm3109, %v3101, %v3106
    %v3111 = vrsqrt.pop %v2944
    %v3112 = vmul.f32 %v3111, %v2944
    %v3113 = vmul.f32 %v3112, %v3111
    %v3114 = vmul.f32 0.5, %v3113
    %v3115 = vsub.f32 1.5, %v3114
    %v3116 = vmul.f32 %v3111, %v3115
    %vm3117 = vweird.f32 %v2944
    %vm3118 = vweird.f32 %v3111
    %vm3119 = vmor %vm3117, %vm3118
    %v3120 = vsel %vm3119, %v3111, %v3116
    %v3121 = vrsqrt.pop %v2945
    %v3122 = vmul.f32 %v3121, %v2945
    %v3123 = vmul.f32 %v3122, %v3121
    %v3124 = vmul.f32 0.5, %v3123
    %v3125 = vsub.f32 1.5, %v3124
    %v3126 = vmul.f32 %v3121, %v3125
    %vm3127 = vweird.f32 %v2945
    %vm3128 = vweird.f32 %v3121
    %vm3129 = vmor %vm3127, %vm3128
    %v3130 = vsel %vm3129, %v3121, %v3126
    %v3131 = vrsqrt.pop %v2946
    %v3132 = vmul.f32 %v3131, %v2946
    %v3133 = vmul.f32 %v3132, %v3131
    %v3134 = vmul.f32 0.5, %v3133
    %v3135 = vsub.f32 1.5, %v3134
    %v3136 = vmul.f32 %v3131, %v3135
    %vm3137 = vweird.f32 %v2946
    %vm3138 = vweird.f32 %v3131
    %vm3139 = vmor %vm3137, %vm3138
    %v3140 = vsel %vm3139, %v3131, %v3136
    %v3141 = vrsqrt.pop %v2947
    %v3142 = vmul.f32 %v3141, %v2947
    %v3143 = vmul.f32 %v3142, %v3141
    %v3144 = vmul.f32 0.5, %v3143
    %v3145 = vsub.f32 1.5, %v3144
    %v3146 = vmul.f32 %v3141, %v3145
    %vm3147 = vweird.f32 %v2947
    %vm3148 = vweird.f32 %v3141
    %vm3149 = vmor %vm3147, %vm3148
    %v3150 = vsel %vm3149, %v3141, %v3146
    %v3151 = vrsqrt.pop %v2948
    %v3152 = vmul.f32 %v3151, %v2948
    %v3153 = vmul.f32 %v3152, %v3151
    %v3154 = vmul.f32 0.5, %v3153
    %v3155 = vsub.f32 1.5, %v3154
    %v3156 = vmul.f32 %v3151, %v3155
    %vm3157 = vweird.f32 %v2948
    %vm3158 = vweird.f32 %v3151
    %vm3159 = vmor %vm3157, %vm3158
    %v3160 = vsel %vm3159, %v3151, %v3156
    %v3161 = vrsqrt.pop %v2949
    %v3162 = vmul.f32 %v3161, %v2949
    %v3163 = vmul.f32 %v3162, %v3161
    %v3164 = vmul.f32 0.5, %v3163
    %v3165 = vsub.f32 1.5, %v3164
    %v3166 = vmul.f32 %v3161, %v3165
    %vm3167 = vweird.f32 %v2949
    %vm3168 = vweird.f32 %v3161
    %vm3169 = vmor %vm3167, %vm3168
    %v3170 = vsel %vm3169, %v3161, %v3166
    %v3171 = vrsqrt.pop %v2950
    %v3172 = vmul.f32 %v3171, %v2950
    %v3173 = vmul.f32 %v3172, %v3171
    %v3174 = vmul.f32 0.5, %v3173
    %v3175 = vsub.f32 1.5, %v3174
    %v3176 = vmul.f32 %v3171, %v3175
    %vm3177 = vweird.f32 %v2950
    %vm3178 = vweird.f32 %v3171
    %vm3179 = vmor %vm3177, %vm3178
    %v3180 = vsel %vm3179, %v3171, %v3176
    %v3181 = vrsqrt.pop %v2951
    %v3182 = vmul.f32 %v3181, %v2951
    %v3183 = vmul.f32 %v3182, %v3181
    %v3184 = vmul.f32 0.5, %v3183
    %v3185 = vsub.f32 1.5, %v3184
    %v3186 = vmul.f32 %v3181, %v3185
    %vm3187 = vweird.f32 %v2951
    %vm3188 = vweird.f32 %v3181
    %vm3189 = vmor %vm3187, %vm3188
    %v3190 = vsel %vm3189, %v3181, %v3186
    %v3191 = vrsqrt.pop %v2952
    %v3192 = vmul.f32 %v3191, %v2952
    %v3193 = vmul.f32 %v3192, %v3191
    %v3194 = vmul.f32 0.5, %v3193
    %v3195 = vsub.f32 1.5, %v3194
    %v3196 = vmul.f32 %v3191, %v3195
    %vm3197 = vweird.f32 %v2952
    %vm3198 = vweird.f32 %v3191
    %vm3199 = vmor %vm3197, %vm3198
    %v3200 = vsel %vm3199, %v3191, %v3196
    %v3201 = vrsqrt.pop %v2953
    %v3202 = vmul.f32 %v3201, %v2953
    %v3203 = vmul.f32 %v3202, %v3201
    %v3204 = vmul.f32 0.5, %v3203
    %v3205 = vsub.f32 1.5, %v3204
    %v3206 = vmul.f32 %v3201, %v3205
    %vm3207 = vweird.f32 %v2953
    %vm3208 = vweird.f32 %v3201
    %vm3209 = vmor %vm3207, %vm3208
    %v3210 = vsel %vm3209, %v3201, %v3206
    %v3211 = vrsqrt.pop %v2954
    %v3212 = vmul.f32 %v3211, %v2954
    %v3213 = vmul.f32 %v3212, %v3211
    %v3214 = vmul.f32 0.5, %v3213
    %v3215 = vsub.f32 1.5, %v3214
    %v3216 = vmul.f32 %v3211, %v3215
    %vm3217 = vweird.f32 %v2954
    %vm3218 = vweird.f32 %v3211
    %vm3219 = vmor %vm3217, %vm3218
    %v3220 = vsel %vm3219, %v3211, %v3216
    %v3221 = vrsqrt.pop %v2955
    %v3222 = vmul.f32 %v3221, %v2955
    %v3223 = vmul.f32 %v3222, %v3221
    %v3224 = vmul.f32 0.5, %v3223
    %v3225 = vsub.f32 1.5, %v3224
    %v3226 = vmul.f32 %v3221, %v3225
    %vm3227 = vweird.f32 %v2955
    %vm3228 = vweird.f32 %v3221
    %vm3229 = vmor %vm3227, %vm3228
    %v3230 = vsel %vm3229, %v3221, %v3226
    %v3231 = vrsqrt.pop %v2956
    %v3232 = vmul.f32 %v3231, %v2956
    %v3233 = vmul.f32 %v3232, %v3231
    %v3234 = vmul.f32 0.5, %v3233
    %v3235 = vsub.f32 1.5, %v3234
    %v3236 = vmul.f32 %v3231, %v3235
    %vm3237 = vweird.f32 %v2956
    %vm3238 = vweird.f32 %v3231
    %vm3239 = vmor %vm3237, %vm3238
    %v3240 = vsel %vm3239, %v3231, %v3236
    %v3241 = vrsqrt.pop %v2957
    %v3242 = vmul.f32 %v3241, %v2957
    %v3243 = vmul.f32 %v3242, %v3241
    %v3244 = vmul.f32 0.5, %v3243
    %v3245 = vsub.f32 1.5, %v3244
    %v3246 = vmul.f32 %v3241, %v3245
    %vm3247 = vweird.f32 %v2957
    %vm3248 = vweird.f32 %v3241
    %vm3249 = vmor %vm3247, %vm3248
    %v3250 = vsel %vm3249, %v3241, %v3246
    %v3251 = vrsqrt.pop %v2958
    %v3252 = vmul.f32 %v3251, %v2958
    %v3253 = vmul.f32 %v3252, %v3251
    %v3254 = vmul.f32 0.5, %v3253
    %v3255 = vsub.f32 1.5, %v3254
    %v3256 = vmul.f32 %v3251, %v3255
    %vm3257 = vweird.f32 %v2958
    %vm3258 = vweird.f32 %v3251
    %vm3259 = vmor %vm3257, %vm3258
    %v3260 = vsel %vm3259, %v3251, %v3256
    %v3261 = vrsqrt.pop %v2959
    %v3262 = vmul.f32 %v3261, %v2959
    %v3263 = vmul.f32 %v3262, %v3261
    %v3264 = vmul.f32 0.5, %v3263
    %v3265 = vsub.f32 1.5, %v3264
    %v3266 = vmul.f32 %v3261, %v3265
    %vm3267 = vweird.f32 %v2959
    %vm3268 = vweird.f32 %v3261
    %vm3269 = vmor %vm3267, %vm3268
    %v3270 = vsel %vm3269, %v3261, %v3266
    %v3271 = vrsqrt.pop %v2960
    %v3272 = vmul.f32 %v3271, %v2960
    %v3273 = vmul.f32 %v3272, %v3271
    %v3274 = vmul.f32 0.5, %v3273
    %v3275 = vsub.f32 1.5, %v3274
    %v3276 = vmul.f32 %v3271, %v3275
    %vm3277 = vweird.f32 %v2960
    %vm3278 = vweird.f32 %v3271
    %vm3279 = vmor %vm3277, %vm3278
    %v3280 = vsel %vm3279, %v3271, %v3276
    %v3281 = vmul.f32 %v2737, %v2970
    %v3282 = vmul.f32 %v2738, %v2980
    %v3283 = vmul.f32 %v2739, %v2990
    %v3284 = vmul.f32 %v2740, %v3000
    %v3285 = vmul.f32 %v2741, %v3010
    %v3286 = vmul.f32 %v2742, %v3020
    %v3287 = vmul.f32 %v2743, %v3030
    %v3288 = vmul.f32 %v2744, %v3040
    %v3289 = vmul.f32 %v2745, %v3050
    %v3290 = vmul.f32 %v2746, %v3060
    %v3291 = vmul.f32 %v2747, %v3070
    %v3292 = vmul.f32 %v2748, %v3080
    %v3293 = vmul.f32 %v2749, %v3090
    %v3294 = vmul.f32 %v2750, %v3100
    %v3295 = vmul.f32 %v2751, %v3110
    %v3296 = vmul.f32 %v2752, %v3120
    %v3297 = vmul.f32 %v2753, %v3130
    %v3298 = vmul.f32 %v2754, %v3140
    %v3299 = vmul.f32 %v2755, %v3150
    %v3300 = vmul.f32 %v2756, %v3160
    %v3301 = vmul.f32 %v2757, %v3170
    %v3302 = vmul.f32 %v2758, %v3180
    %v3303 = vmul.f32 %v2759, %v3190
    %v3304 = vmul.f32 %v2760, %v3200
    %v3305 = vmul.f32 %v2761, %v3210
    %v3306 = vmul.f32 %v2762, %v3220
    %v3307 = vmul.f32 %v2763, %v3230
    %v3308 = vmul.f32 %v2764, %v3240
    %v3309 = vmul.f32 %v2765, %v3250
    %v3310 = vmul.f32 %v2766, %v3260
    %v3311 = vmul.f32 %v2767, %v3270
    %v3312 = vmul.f32 %v2768, %v3280
    %v3313 = vperm.slane %v79, 0
    %v3314 = vmul.f32 %v3281, %v3313
    %v3315 = vmul.f32 %v3282, %v3313
    %v3316 = vmul.f32 %v3283, %v3313
    %v3317 = vmul.f32 %v3284, %v3313
    %v3318 = vmul.f32 %v3285, %v3313
    %v3319 = vmul.f32 %v3286, %v3313
    %v3320 = vmul.f32 %v3287, %v3313
    %v3321 = vmul.f32 %v3288, %v3313
    %v3322 = vmul.f32 %v3289, %v3313
    %v3323 = vmul.f32 %v3290, %v3313
    %v3324 = vmul.f32 %v3291, %v3313
    %v3325 = vmul.f32 %v3292, %v3313
    %v3326 = vmul.f32 %v3293, %v3313
    %v3327 = vmul.f32 %v3294, %v3313
    %v3328 = vmul.f32 %v3295, %v3313
    %v3329 = vmul.f32 %v3296, %v3313
    %v3330 = vmul.f32 %v3297, %v3313
    %v3331 = vmul.f32 %v3298, %v3313
    %v3332 = vmul.f32 %v3299, %v3313
    %v3333 = vmul.f32 %v3300, %v3313
    %v3334 = vmul.f32 %v3301, %v3313
    %v3335 = vmul.f32 %v3302, %v3313
    %v3336 = vmul.f32 %v3303, %v3313
    %v3337 = vmul.f32 %v3304, %v3313
    %v3338 = vmul.f32 %v3305, %v3313
    %v3339 = vmul.f32 %v3306, %v3313
    %v3340 = vmul.f32 %v3307, %v3313
    %v3341 = vmul.f32 %v3308, %v3313
    %v3342 = vmul.f32 %v3309, %v3313
    %v3343 = vmul.f32 %v3310, %v3313
    %v3344 = vmul.f32 %v3311, %v3313
    %v3345 = vmul.f32 %v3312, %v3313
    %v3346 = vperm.slane %v80, 0
    %v3347 = vadd.f32 %v3314, %v3346
    %v3348 = vadd.f32 %v3315, %v3346
    %v3349 = vadd.f32 %v3316, %v3346
    %v3350 = vadd.f32 %v3317, %v3346
    %v3351 = vadd.f32 %v3318, %v3346
    %v3352 = vadd.f32 %v3319, %v3346
    %v3353 = vadd.f32 %v3320, %v3346
    %v3354 = vadd.f32 %v3321, %v3346
    %v3355 = vadd.f32 %v3322, %v3346
    %v3356 = vadd.f32 %v3323, %v3346
    %v3357 = vadd.f32 %v3324, %v3346
    %v3358 = vadd.f32 %v3325, %v3346
    %v3359 = vadd.f32 %v3326, %v3346
    %v3360 = vadd.f32 %v3327, %v3346
    %v3361 = vadd.f32 %v3328, %v3346
    %v3362 = vadd.f32 %v3329, %v3346
    %v3363 = vadd.f32 %v3330, %v3346
    %v3364 = vadd.f32 %v3331, %v3346
    %v3365 = vadd.f32 %v3332, %v3346
    %v3366 = vadd.f32 %v3333, %v3346
    %v3367 = vadd.f32 %v3334, %v3346
    %v3368 = vadd.f32 %v3335, %v3346
    %v3369 = vadd.f32 %v3336, %v3346
    %v3370 = vadd.f32 %v3337, %v3346
    %v3371 = vadd.f32 %v3338, %v3346
    %v3372 = vadd.f32 %v3339, %v3346
    %v3373 = vadd.f32 %v3340, %v3346
    %v3374 = vadd.f32 %v3341, %v3346
    %v3375 = vadd.f32 %v3342, %v3346
    %v3376 = vadd.f32 %v3343, %v3346
    %v3377 = vadd.f32 %v3344, %v3346
    %v3378 = vadd.f32 %v3345, %v3346
    %v3379 = vperm.slane %v81, 0
    %v3381 = vsel %vm259, %v3347, 0
    %v3384 = vsel %vm259, %v3348, 0
    %v3387 = vsel %vm259, %v3349, 0
    %v3390 = vsel %vm259, %v3350, 0
    %v3393 = vsel %vm259, %v3351, 0
    %v3396 = vsel %vm259, %v3352, 0
    %v3399 = vsel %vm259, %v3353, 0
    %v3402 = vsel %vm259, %v3354, 0
    %v3405 = vsel %vm259, %v3355, 0
    %v3408 = vsel %vm259, %v3356, 0
    %v3411 = vsel %vm259, %v3357, 0
    %v3414 = vsel %vm259, %v3358, 0
    %v3417 = vsel %vm259, %v3359, 0
    %v3420 = vsel %vm259, %v3360, 0
    %v3423 = vsel %vm259, %v3361, 0
    %v3426 = vsel %vm259, %v3362, 0
    %v3429 = vsel %vm259, %v3363, 0
    %v3432 = vsel %vm259, %v3364, 0
    %v3435 = vsel %vm259, %v3365, 0
    %v3438 = vsel %vm259, %v3366, 0
    %v3441 = vsel %vm259, %v3367, 0
    %v3444 = vsel %vm259, %v3368, 0
    %v3447 = vsel %vm259, %v3369, 0
    %v3450 = vsel %vm259, %v3370, 0
    %v3453 = vsel %vm259, %v3371, 0
    %v3456 = vsel %vm259, %v3372, 0
    %v3459 = vsel %vm259, %v3373, 0
    %v3462 = vsel %vm259, %v3374, 0
    %v3465 = vsel %vm259, %v3375, 0
    %v3468 = vsel %vm259, %v3376, 0
    %v3471 = vsel %vm259, %v3377, 0
    %v3474 = vsel %vm259, %v3378, 0
    %3476 = vmatpush.msra.mxu0 0.0
    %3477 = vmatpush.msra.mxu0 0.0
    %3478 = vmatpush.msra.mxu0 0.0
    %3479 = vmatpush.msra.mxu0 0.0
    %3480 = vmatpush.msra.mxu0 0.0
    %3481 = vmatpush.msra.mxu0 0.0
    %3482 = vmatpush.msra.mxu0 0.0
    %3483 = vmatpush.msra.mxu0 0.0
    %3484 = vmatpush.msra.mxu0 0.0
    %3485 = vmatpush.msra.mxu0 0.0
    %3486 = vmatpush.msra.mxu0 0.0
    %3487 = vmatpush.msra.mxu0 0.0
    %3488 = vmatpush.msra.mxu0 %v60
    %3489 = vmatpush.msra.mxu0 %v59
    %3490 = vmatpush.msra.mxu0 %v58
    %3491 = vmatpush.msra.mxu0 %v57
    %3492 = vmatmul.f32.gmra.mxu0 %v3381
    %v3493 = vpop.f32.mrf.mxu0
    %v3494 = vadd.f32 %v3379, %v3493
    %3495 = vmatmul.f32.gmra.mxu0 %v3384
    %v3496 = vpop.f32.mrf.mxu0
    %v3497 = vadd.f32 %v3379, %v3496
    %3498 = vmatmul.f32.gmra.mxu0 %v3387
    %v3499 = vpop.f32.mrf.mxu0
    %v3500 = vadd.f32 %v3379, %v3499
    %3501 = vmatmul.f32.gmra.mxu0 %v3390
    %v3502 = vpop.f32.mrf.mxu0
    %v3503 = vadd.f32 %v3379, %v3502
    %3504 = vmatmul.f32.gmra.mxu0 %v3393
    %v3505 = vpop.f32.mrf.mxu0
    %v3506 = vadd.f32 %v3379, %v3505
    %3507 = vmatmul.f32.gmra.mxu0 %v3396
    %v3508 = vpop.f32.mrf.mxu0
    %v3509 = vadd.f32 %v3379, %v3508
    %3510 = vmatmul.f32.gmra.mxu0 %v3399
    %v3511 = vpop.f32.mrf.mxu0
    %v3512 = vadd.f32 %v3379, %v3511
    %3513 = vmatmul.f32.gmra.mxu0 %v3402
    %v3514 = vpop.f32.mrf.mxu0
    %v3515 = vadd.f32 %v3379, %v3514
    %3516 = vmatmul.f32.gmra.mxu0 %v3405
    %v3517 = vpop.f32.mrf.mxu0
    %v3518 = vadd.f32 %v3379, %v3517
    %3519 = vmatmul.f32.gmra.mxu0 %v3408
    %v3520 = vpop.f32.mrf.mxu0
    %v3521 = vadd.f32 %v3379, %v3520
    %3522 = vmatmul.f32.gmra.mxu0 %v3411
    %v3523 = vpop.f32.mrf.mxu0
    %v3524 = vadd.f32 %v3379, %v3523
    %3525 = vmatmul.f32.gmra.mxu0 %v3414
    %v3526 = vpop.f32.mrf.mxu0
    %v3527 = vadd.f32 %v3379, %v3526
    %3528 = vmatmul.f32.gmra.mxu0 %v3417
    %v3529 = vpop.f32.mrf.mxu0
    %v3530 = vadd.f32 %v3379, %v3529
    %3531 = vmatmul.f32.gmra.mxu0 %v3420
    %v3532 = vpop.f32.mrf.mxu0
    %v3533 = vadd.f32 %v3379, %v3532
    %3534 = vmatmul.f32.gmra.mxu0 %v3423
    %v3535 = vpop.f32.mrf.mxu0
    %v3536 = vadd.f32 %v3379, %v3535
    %3537 = vmatmul.f32.gmra.mxu0 %v3426
    %v3538 = vpop.f32.mrf.mxu0
    %v3539 = vadd.f32 %v3379, %v3538
    %3540 = vmatmul.f32.gmra.mxu0 %v3429
    %v3541 = vpop.f32.mrf.mxu0
    %v3542 = vadd.f32 %v3379, %v3541
    %3543 = vmatmul.f32.gmra.mxu0 %v3432
    %v3544 = vpop.f32.mrf.mxu0
    %v3545 = vadd.f32 %v3379, %v3544
    %3546 = vmatmul.f32.gmra.mxu0 %v3435
    %v3547 = vpop.f32.mrf.mxu0
    %v3548 = vadd.f32 %v3379, %v3547
    %3549 = vmatmul.f32.gmra.mxu0 %v3438
    %v3550 = vpop.f32.mrf.mxu0
    %v3551 = vadd.f32 %v3379, %v3550
    %3552 = vmatmul.f32.gmra.mxu0 %v3441
    %v3553 = vpop.f32.mrf.mxu0
    %v3554 = vadd.f32 %v3379, %v3553
    %3555 = vmatmul.f32.gmra.mxu0 %v3444
    %v3556 = vpop.f32.mrf.mxu0
    %v3557 = vadd.f32 %v3379, %v3556
    %3558 = vmatmul.f32.gmra.mxu0 %v3447
    %v3559 = vpop.f32.mrf.mxu0
    %v3560 = vadd.f32 %v3379, %v3559
    %3561 = vmatmul.f32.gmra.mxu0 %v3450
    %v3562 = vpop.f32.mrf.mxu0
    %v3563 = vadd.f32 %v3379, %v3562
    %3564 = vmatmul.f32.gmra.mxu0 %v3453
    %v3565 = vpop.f32.mrf.mxu0
    %v3566 = vadd.f32 %v3379, %v3565
    %3567 = vmatmul.f32.gmra.mxu0 %v3456
    %v3568 = vpop.f32.mrf.mxu0
    %v3569 = vadd.f32 %v3379, %v3568
    %3570 = vmatmul.f32.gmra.mxu0 %v3459
    %v3571 = vpop.f32.mrf.mxu0
    %v3572 = vadd.f32 %v3379, %v3571
    %3573 = vmatmul.f32.gmra.mxu0 %v3462
    %v3574 = vpop.f32.mrf.mxu0
    %v3575 = vadd.f32 %v3379, %v3574
    %3576 = vmatmul.f32.gmra.mxu0 %v3465
    %v3577 = vpop.f32.mrf.mxu0
    %v3578 = vadd.f32 %v3379, %v3577
    %3579 = vmatmul.f32.gmra.mxu0 %v3468
    %v3580 = vpop.f32.mrf.mxu0
    %v3581 = vadd.f32 %v3379, %v3580
    %3582 = vmatmul.f32.gmra.mxu0 %v3471
    %v3583 = vpop.f32.mrf.mxu0
    %v3584 = vadd.f32 %v3379, %v3583
    %3585 = vmatmul.f32.gmra.mxu0 %v3474
    %v3586 = vpop.f32.mrf.mxu0
    %v3587 = vadd.f32 %v3379, %v3586
    %3588 = vdwg.mxu0
    %v3589 = vmul.f32 %v3494, 0.5
    %v3590 = vmul.f32 %v3497, 0.5
    %v3591 = vmul.f32 %v3500, 0.5
    %v3592 = vmul.f32 %v3503, 0.5
    %v3593 = vmul.f32 %v3506, 0.5
    %v3594 = vmul.f32 %v3509, 0.5
    %v3595 = vmul.f32 %v3512, 0.5
    %v3596 = vmul.f32 %v3515, 0.5
    %v3597 = vmul.f32 %v3518, 0.5
    %v3598 = vmul.f32 %v3521, 0.5
    %v3599 = vmul.f32 %v3524, 0.5
    %v3600 = vmul.f32 %v3527, 0.5
    %v3601 = vmul.f32 %v3530, 0.5
    %v3602 = vmul.f32 %v3533, 0.5
    %v3603 = vmul.f32 %v3536, 0.5
    %v3604 = vmul.f32 %v3539, 0.5
    %v3605 = vmul.f32 %v3542, 0.5
    %v3606 = vmul.f32 %v3545, 0.5
    %v3607 = vmul.f32 %v3548, 0.5
    %v3608 = vmul.f32 %v3551, 0.5
    %v3609 = vmul.f32 %v3554, 0.5
    %v3610 = vmul.f32 %v3557, 0.5
    %v3611 = vmul.f32 %v3560, 0.5
    %v3612 = vmul.f32 %v3563, 0.5
    %v3613 = vmul.f32 %v3566, 0.5
    %v3614 = vmul.f32 %v3569, 0.5
    %v3615 = vmul.f32 %v3572, 0.5
    %v3616 = vmul.f32 %v3575, 0.5
    %v3617 = vmul.f32 %v3578, 0.5
    %v3618 = vmul.f32 %v3581, 0.5
    %v3619 = vmul.f32 %v3584, 0.5
    %v3620 = vmul.f32 %v3587, 0.5
    %v3621 = vmul.f32 %v3494, 0.70710677
    %v3622 = vmul.f32 %v3497, 0.70710677
    %v3623 = vmul.f32 %v3500, 0.70710677
    %v3624 = vmul.f32 %v3503, 0.70710677
    %v3625 = vmul.f32 %v3506, 0.70710677
    %v3626 = vmul.f32 %v3509, 0.70710677
    %v3627 = vmul.f32 %v3512, 0.70710677
    %v3628 = vmul.f32 %v3515, 0.70710677
    %v3629 = vmul.f32 %v3518, 0.70710677
    %v3630 = vmul.f32 %v3521, 0.70710677
    %v3631 = vmul.f32 %v3524, 0.70710677
    %v3632 = vmul.f32 %v3527, 0.70710677
    %v3633 = vmul.f32 %v3530, 0.70710677
    %v3634 = vmul.f32 %v3533, 0.70710677
    %v3635 = vmul.f32 %v3536, 0.70710677
    %v3636 = vmul.f32 %v3539, 0.70710677
    %v3637 = vmul.f32 %v3542, 0.70710677
    %v3638 = vmul.f32 %v3545, 0.70710677
    %v3639 = vmul.f32 %v3548, 0.70710677
    %v3640 = vmul.f32 %v3551, 0.70710677
    %v3641 = vmul.f32 %v3554, 0.70710677
    %v3642 = vmul.f32 %v3557, 0.70710677
    %v3643 = vmul.f32 %v3560, 0.70710677
    %v3644 = vmul.f32 %v3563, 0.70710677
    %v3645 = vmul.f32 %v3566, 0.70710677
    %v3646 = vmul.f32 %v3569, 0.70710677
    %v3647 = vmul.f32 %v3572, 0.70710677
    %v3648 = vmul.f32 %v3575, 0.70710677
    %v3649 = vmul.f32 %v3578, 0.70710677
    %v3650 = vmul.f32 %v3581, 0.70710677
    %v3651 = vmul.f32 %v3584, 0.70710677
    %v3652 = vmul.f32 %v3587, 0.70710677
    %v3653 = vand.u32 2147483647, %v3621
    %v3654 = vand.u32 2147483647, %v3622
    %v3655 = vand.u32 2147483647, %v3623
    %v3656 = vand.u32 2147483647, %v3624
    %v3657 = vand.u32 2147483647, %v3625
    %v3658 = vand.u32 2147483647, %v3626
    %v3659 = vand.u32 2147483647, %v3627
    %v3660 = vand.u32 2147483647, %v3628
    %v3661 = vand.u32 2147483647, %v3629
    %v3662 = vand.u32 2147483647, %v3630
    %v3663 = vand.u32 2147483647, %v3631
    %v3664 = vand.u32 2147483647, %v3632
    %v3665 = vand.u32 2147483647, %v3633
    %v3666 = vand.u32 2147483647, %v3634
    %v3667 = vand.u32 2147483647, %v3635
    %v3668 = vand.u32 2147483647, %v3636
    %v3669 = vand.u32 2147483647, %v3637
    %v3670 = vand.u32 2147483647, %v3638
    %v3671 = vand.u32 2147483647, %v3639
    %v3672 = vand.u32 2147483647, %v3640
    %v3673 = vand.u32 2147483647, %v3641
    %v3674 = vand.u32 2147483647, %v3642
    %v3675 = vand.u32 2147483647, %v3643
    %v3676 = vand.u32 2147483647, %v3644
    %v3677 = vand.u32 2147483647, %v3645
    %v3678 = vand.u32 2147483647, %v3646
    %v3679 = vand.u32 2147483647, %v3647
    %v3680 = vand.u32 2147483647, %v3648
    %v3681 = vand.u32 2147483647, %v3649
    %v3682 = vand.u32 2147483647, %v3650
    %v3683 = vand.u32 2147483647, %v3651
    %v3684 = vand.u32 2147483647, %v3652
    %v3685 = vmul.f32 %v3653, 0.3275911
    %v3686 = vmul.f32 %v3654, 0.3275911
    %v3687 = vmul.f32 %v3655, 0.3275911
    %v3688 = vmul.f32 %v3656, 0.3275911
    %v3689 = vmul.f32 %v3657, 0.3275911
    %v3690 = vmul.f32 %v3658, 0.3275911
    %v3691 = vmul.f32 %v3659, 0.3275911
    %v3692 = vmul.f32 %v3660, 0.3275911
    %v3693 = vmul.f32 %v3661, 0.3275911
    %v3694 = vmul.f32 %v3662, 0.3275911
    %v3695 = vmul.f32 %v3663, 0.3275911
    %v3696 = vmul.f32 %v3664, 0.3275911
    %v3697 = vmul.f32 %v3665, 0.3275911
    %v3698 = vmul.f32 %v3666, 0.3275911
    %v3699 = vmul.f32 %v3667, 0.3275911
    %v3700 = vmul.f32 %v3668, 0.3275911
    %v3701 = vmul.f32 %v3669, 0.3275911
    %v3702 = vmul.f32 %v3670, 0.3275911
    %v3703 = vmul.f32 %v3671, 0.3275911
    %v3704 = vmul.f32 %v3672, 0.3275911
    %v3705 = vmul.f32 %v3673, 0.3275911
    %v3706 = vmul.f32 %v3674, 0.3275911
    %v3707 = vmul.f32 %v3675, 0.3275911
    %v3708 = vmul.f32 %v3676, 0.3275911
    %v3709 = vmul.f32 %v3677, 0.3275911
    %v3710 = vmul.f32 %v3678, 0.3275911
    %v3711 = vmul.f32 %v3679, 0.3275911
    %v3712 = vmul.f32 %v3680, 0.3275911
    %v3713 = vmul.f32 %v3681, 0.3275911
    %v3714 = vmul.f32 %v3682, 0.3275911
    %v3715 = vmul.f32 %v3683, 0.3275911
    %v3716 = vmul.f32 %v3684, 0.3275911
    %v3717 = vadd.f32 %v3685, 1.0
    %v3718 = vadd.f32 %v3686, 1.0
    %v3719 = vadd.f32 %v3687, 1.0
    %v3720 = vadd.f32 %v3688, 1.0
    %v3721 = vadd.f32 %v3689, 1.0
    %v3722 = vadd.f32 %v3690, 1.0
    %v3723 = vadd.f32 %v3691, 1.0
    %v3724 = vadd.f32 %v3692, 1.0
    %v3725 = vadd.f32 %v3693, 1.0
    %v3726 = vadd.f32 %v3694, 1.0
    %v3727 = vadd.f32 %v3695, 1.0
    %v3728 = vadd.f32 %v3696, 1.0
    %v3729 = vadd.f32 %v3697, 1.0
    %v3730 = vadd.f32 %v3698, 1.0
    %v3731 = vadd.f32 %v3699, 1.0
    %v3732 = vadd.f32 %v3700, 1.0
    %v3733 = vadd.f32 %v3701, 1.0
    %v3734 = vadd.f32 %v3702, 1.0
    %v3735 = vadd.f32 %v3703, 1.0
    %v3736 = vadd.f32 %v3704, 1.0
    %v3737 = vadd.f32 %v3705, 1.0
    %v3738 = vadd.f32 %v3706, 1.0
    %v3739 = vadd.f32 %v3707, 1.0
    %v3740 = vadd.f32 %v3708, 1.0
    %v3741 = vadd.f32 %v3709, 1.0
    %v3742 = vadd.f32 %v3710, 1.0
    %v3743 = vadd.f32 %v3711, 1.0
    %v3744 = vadd.f32 %v3712, 1.0
    %v3745 = vadd.f32 %v3713, 1.0
    %v3746 = vadd.f32 %v3714, 1.0
    %v3747 = vadd.f32 %v3715, 1.0
    %v3748 = vadd.f32 %v3716, 1.0
    %v3749 = vrcp.pop %v3717
    %v3750 = vrcp.pop %v3718
    %v3751 = vrcp.pop %v3719
    %v3752 = vrcp.pop %v3720
    %v3753 = vrcp.pop %v3721
    %v3754 = vrcp.pop %v3722
    %v3755 = vrcp.pop %v3723
    %v3756 = vrcp.pop %v3724
    %v3757 = vrcp.pop %v3725
    %v3758 = vrcp.pop %v3726
    %v3759 = vrcp.pop %v3727
    %v3760 = vrcp.pop %v3728
    %v3761 = vrcp.pop %v3729
    %v3762 = vrcp.pop %v3730
    %v3763 = vrcp.pop %v3731
    %v3764 = vrcp.pop %v3732
    %v3765 = vrcp.pop %v3733
    %v3766 = vrcp.pop %v3734
    %v3767 = vrcp.pop %v3735
    %v3768 = vrcp.pop %v3736
    %v3769 = vrcp.pop %v3737
    %v3770 = vrcp.pop %v3738
    %v3771 = vrcp.pop %v3739
    %v3772 = vrcp.pop %v3740
    %v3773 = vrcp.pop %v3741
    %v3774 = vrcp.pop %v3742
    %v3775 = vrcp.pop %v3743
    %v3776 = vrcp.pop %v3744
    %v3777 = vrcp.pop %v3745
    %v3778 = vrcp.pop %v3746
    %v3779 = vrcp.pop %v3747
    %v3780 = vrcp.pop %v3748
    %v3781 = vmul.f32 %v3749, 1.0614054
    %v3782 = vmul.f32 %v3750, 1.0614054
    %v3783 = vmul.f32 %v3751, 1.0614054
    %v3784 = vmul.f32 %v3752, 1.0614054
    %v3785 = vmul.f32 %v3753, 1.0614054
    %v3786 = vmul.f32 %v3754, 1.0614054
    %v3787 = vmul.f32 %v3755, 1.0614054
    %v3788 = vmul.f32 %v3756, 1.0614054
    %v3789 = vmul.f32 %v3757, 1.0614054
    %v3790 = vmul.f32 %v3758, 1.0614054
    %v3791 = vmul.f32 %v3759, 1.0614054
    %v3792 = vmul.f32 %v3760, 1.0614054
    %v3793 = vmul.f32 %v3761, 1.0614054
    %v3794 = vmul.f32 %v3762, 1.0614054
    %v3795 = vmul.f32 %v3763, 1.0614054
    %v3796 = vmul.f32 %v3764, 1.0614054
    %v3797 = vmul.f32 %v3765, 1.0614054
    %v3798 = vmul.f32 %v3766, 1.0614054
    %v3799 = vmul.f32 %v3767, 1.0614054
    %v3800 = vmul.f32 %v3768, 1.0614054
    %v3801 = vmul.f32 %v3769, 1.0614054
    %v3802 = vmul.f32 %v3770, 1.0614054
    %v3803 = vmul.f32 %v3771, 1.0614054
    %v3804 = vmul.f32 %v3772, 1.0614054
    %v3805 = vmul.f32 %v3773, 1.0614054
    %v3806 = vmul.f32 %v3774, 1.0614054
    %v3807 = vmul.f32 %v3775, 1.0614054
    %v3808 = vmul.f32 %v3776, 1.0614054
    %v3809 = vmul.f32 %v3777, 1.0614054
    %v3810 = vmul.f32 %v3778, 1.0614054
    %v3811 = vmul.f32 %v3779, 1.0614054
    %v3812 = vmul.f32 %v3780, 1.0614054
    %v3813 = vadd.f32 %v3781, -1.4531521
    %v3814 = vadd.f32 %v3782, -1.4531521
    %v3815 = vadd.f32 %v3783, -1.4531521
    %v3816 = vadd.f32 %v3784, -1.4531521
    %v3817 = vadd.f32 %v3785, -1.4531521
    %v3818 = vadd.f32 %v3786, -1.4531521
    %v3819 = vadd.f32 %v3787, -1.4531521
    %v3820 = vadd.f32 %v3788, -1.4531521
    %v3821 = vadd.f32 %v3789, -1.4531521
    %v3822 = vadd.f32 %v3790, -1.4531521
    %v3823 = vadd.f32 %v3791, -1.4531521
    %v3824 = vadd.f32 %v3792, -1.4531521
    %v3825 = vadd.f32 %v3793, -1.4531521
    %v3826 = vadd.f32 %v3794, -1.4531521
    %v3827 = vadd.f32 %v3795, -1.4531521
    %v3828 = vadd.f32 %v3796, -1.4531521
    %v3829 = vadd.f32 %v3797, -1.4531521
    %v3830 = vadd.f32 %v3798, -1.4531521
    %v3831 = vadd.f32 %v3799, -1.4531521
    %v3832 = vadd.f32 %v3800, -1.4531521
    %v3833 = vadd.f32 %v3801, -1.4531521
    %v3834 = vadd.f32 %v3802, -1.4531521
    %v3835 = vadd.f32 %v3803, -1.4531521
    %v3836 = vadd.f32 %v3804, -1.4531521
    %v3837 = vadd.f32 %v3805, -1.4531521
    %v3838 = vadd.f32 %v3806, -1.4531521
    %v3839 = vadd.f32 %v3807, -1.4531521
    %v3840 = vadd.f32 %v3808, -1.4531521
    %v3841 = vadd.f32 %v3809, -1.4531521
    %v3842 = vadd.f32 %v3810, -1.4531521
    %v3843 = vadd.f32 %v3811, -1.4531521
    %v3844 = vadd.f32 %v3812, -1.4531521
    %v3845 = vmul.f32 %v3813, %v3749
    %v3846 = vmul.f32 %v3814, %v3750
    %v3847 = vmul.f32 %v3815, %v3751
    %v3848 = vmul.f32 %v3816, %v3752
    %v3849 = vmul.f32 %v3817, %v3753
    %v3850 = vmul.f32 %v3818, %v3754
    %v3851 = vmul.f32 %v3819, %v3755
    %v3852 = vmul.f32 %v3820, %v3756
    %v3853 = vmul.f32 %v3821, %v3757
    %v3854 = vmul.f32 %v3822, %v3758
    %v3855 = vmul.f32 %v3823, %v3759
    %v3856 = vmul.f32 %v3824, %v3760
    %v3857 = vmul.f32 %v3825, %v3761
    %v3858 = vmul.f32 %v3826, %v3762
    %v3859 = vmul.f32 %v3827, %v3763
    %v3860 = vmul.f32 %v3828, %v3764
    %v3861 = vmul.f32 %v3829, %v3765
    %v3862 = vmul.f32 %v3830, %v3766
    %v3863 = vmul.f32 %v3831, %v3767
    %v3864 = vmul.f32 %v3832, %v3768
    %v3865 = vmul.f32 %v3833, %v3769
    %v3866 = vmul.f32 %v3834, %v3770
    %v3867 = vmul.f32 %v3835, %v3771
    %v3868 = vmul.f32 %v3836, %v3772
    %v3869 = vmul.f32 %v3837, %v3773
    %v3870 = vmul.f32 %v3838, %v3774
    %v3871 = vmul.f32 %v3839, %v3775
    %v3872 = vmul.f32 %v3840, %v3776
    %v3873 = vmul.f32 %v3841, %v3777
    %v3874 = vmul.f32 %v3842, %v3778
    %v3875 = vmul.f32 %v3843, %v3779
    %v3876 = vmul.f32 %v3844, %v3780
    %v3877 = vadd.f32 %v3845, 1.4214138
    %v3878 = vadd.f32 %v3846, 1.4214138
    %v3879 = vadd.f32 %v3847, 1.4214138
    %v3880 = vadd.f32 %v3848, 1.4214138
    %v3881 = vadd.f32 %v3849, 1.4214138
    %v3882 = vadd.f32 %v3850, 1.4214138
    %v3883 = vadd.f32 %v3851, 1.4214138
    %v3884 = vadd.f32 %v3852, 1.4214138
    %v3885 = vadd.f32 %v3853, 1.4214138
    %v3886 = vadd.f32 %v3854, 1.4214138
    %v3887 = vadd.f32 %v3855, 1.4214138
    %v3888 = vadd.f32 %v3856, 1.4214138
    %v3889 = vadd.f32 %v3857, 1.4214138
    %v3890 = vadd.f32 %v3858, 1.4214138
    %v3891 = vadd.f32 %v3859, 1.4214138
    %v3892 = vadd.f32 %v3860, 1.4214138
    %v3893 = vadd.f32 %v3861, 1.4214138
    %v3894 = vadd.f32 %v3862, 1.4214138
    %v3895 = vadd.f32 %v3863, 1.4214138
    %v3896 = vadd.f32 %v3864, 1.4214138
    %v3897 = vadd.f32 %v3865, 1.4214138
    %v3898 = vadd.f32 %v3866, 1.4214138
    %v3899 = vadd.f32 %v3867, 1.4214138
    %v3900 = vadd.f32 %v3868, 1.4214138
    %v3901 = vadd.f32 %v3869, 1.4214138
    %v3902 = vadd.f32 %v3870, 1.4214138
    %v3903 = vadd.f32 %v3871, 1.4214138
    %v3904 = vadd.f32 %v3872, 1.4214138
    %v3905 = vadd.f32 %v3873, 1.4214138
    %v3906 = vadd.f32 %v3874, 1.4214138
    %v3907 = vadd.f32 %v3875, 1.4214138
    %v3908 = vadd.f32 %v3876, 1.4214138
    %v3909 = vmul.f32 %v3877, %v3749
    %v3910 = vmul.f32 %v3878, %v3750
    %v3911 = vmul.f32 %v3879, %v3751
    %v3912 = vmul.f32 %v3880, %v3752
    %v3913 = vmul.f32 %v3881, %v3753
    %v3914 = vmul.f32 %v3882, %v3754
    %v3915 = vmul.f32 %v3883, %v3755
    %v3916 = vmul.f32 %v3884, %v3756
    %v3917 = vmul.f32 %v3885, %v3757
    %v3918 = vmul.f32 %v3886, %v3758
    %v3919 = vmul.f32 %v3887, %v3759
    %v3920 = vmul.f32 %v3888, %v3760
    %v3921 = vmul.f32 %v3889, %v3761
    %v3922 = vmul.f32 %v3890, %v3762
    %v3923 = vmul.f32 %v3891, %v3763
    %v3924 = vmul.f32 %v3892, %v3764
    %v3925 = vmul.f32 %v3893, %v3765
    %v3926 = vmul.f32 %v3894, %v3766
    %v3927 = vmul.f32 %v3895, %v3767
    %v3928 = vmul.f32 %v3896, %v3768
    %v3929 = vmul.f32 %v3897, %v3769
    %v3930 = vmul.f32 %v3898, %v3770
    %v3931 = vmul.f32 %v3899, %v3771
    %v3932 = vmul.f32 %v3900, %v3772
    %v3933 = vmul.f32 %v3901, %v3773
    %v3934 = vmul.f32 %v3902, %v3774
    %v3935 = vmul.f32 %v3903, %v3775
    %v3936 = vmul.f32 %v3904, %v3776
    %v3937 = vmul.f32 %v3905, %v3777
    %v3938 = vmul.f32 %v3906, %v3778
    %v3939 = vmul.f32 %v3907, %v3779
    %v3940 = vmul.f32 %v3908, %v3780
    %v3941 = vadd.f32 %v3909, -0.28449672
    %v3942 = vadd.f32 %v3910, -0.28449672
    %v3943 = vadd.f32 %v3911, -0.28449672
    %v3944 = vadd.f32 %v3912, -0.28449672
    %v3945 = vadd.f32 %v3913, -0.28449672
    %v3946 = vadd.f32 %v3914, -0.28449672
    %v3947 = vadd.f32 %v3915, -0.28449672
    %v3948 = vadd.f32 %v3916, -0.28449672
    %v3949 = vadd.f32 %v3917, -0.28449672
    %v3950 = vadd.f32 %v3918, -0.28449672
    %v3951 = vadd.f32 %v3919, -0.28449672
    %v3952 = vadd.f32 %v3920, -0.28449672
    %v3953 = vadd.f32 %v3921, -0.28449672
    %v3954 = vadd.f32 %v3922, -0.28449672
    %v3955 = vadd.f32 %v3923, -0.28449672
    %v3956 = vadd.f32 %v3924, -0.28449672
    %v3957 = vadd.f32 %v3925, -0.28449672
    %v3958 = vadd.f32 %v3926, -0.28449672
    %v3959 = vadd.f32 %v3927, -0.28449672
    %v3960 = vadd.f32 %v3928, -0.28449672
    %v3961 = vadd.f32 %v3929, -0.28449672
    %v3962 = vadd.f32 %v3930, -0.28449672
    %v3963 = vadd.f32 %v3931, -0.28449672
    %v3964 = vadd.f32 %v3932, -0.28449672
    %v3965 = vadd.f32 %v3933, -0.28449672
    %v3966 = vadd.f32 %v3934, -0.28449672
    %v3967 = vadd.f32 %v3935, -0.28449672
    %v3968 = vadd.f32 %v3936, -0.28449672
    %v3969 = vadd.f32 %v3937, -0.28449672
    %v3970 = vadd.f32 %v3938, -0.28449672
    %v3971 = vadd.f32 %v3939, -0.28449672
    %v3972 = vadd.f32 %v3940, -0.28449672
    %v3973 = vmul.f32 %v3941, %v3749
    %v3974 = vmul.f32 %v3942, %v3750
    %v3975 = vmul.f32 %v3943, %v3751
    %v3976 = vmul.f32 %v3944, %v3752
    %v3977 = vmul.f32 %v3945, %v3753
    %v3978 = vmul.f32 %v3946, %v3754
    %v3979 = vmul.f32 %v3947, %v3755
    %v3980 = vmul.f32 %v3948, %v3756
    %v3981 = vmul.f32 %v3949, %v3757
    %v3982 = vmul.f32 %v3950, %v3758
    %v3983 = vmul.f32 %v3951, %v3759
    %v3984 = vmul.f32 %v3952, %v3760
    %v3985 = vmul.f32 %v3953, %v3761
    %v3986 = vmul.f32 %v3954, %v3762
    %v3987 = vmul.f32 %v3955, %v3763
    %v3988 = vmul.f32 %v3956, %v3764
    %v3989 = vmul.f32 %v3957, %v3765
    %v3990 = vmul.f32 %v3958, %v3766
    %v3991 = vmul.f32 %v3959, %v3767
    %v3992 = vmul.f32 %v3960, %v3768
    %v3993 = vmul.f32 %v3961, %v3769
    %v3994 = vmul.f32 %v3962, %v3770
    %v3995 = vmul.f32 %v3963, %v3771
    %v3996 = vmul.f32 %v3964, %v3772
    %v3997 = vmul.f32 %v3965, %v3773
    %v3998 = vmul.f32 %v3966, %v3774
    %v3999 = vmul.f32 %v3967, %v3775
    %v4000 = vmul.f32 %v3968, %v3776
    %v4001 = vmul.f32 %v3969, %v3777
    %v4002 = vmul.f32 %v3970, %v3778
    %v4003 = vmul.f32 %v3971, %v3779
    %v4004 = vmul.f32 %v3972, %v3780
    %v4005 = vadd.f32 %v3973, 0.2548296
    %v4006 = vadd.f32 %v3974, 0.2548296
    %v4007 = vadd.f32 %v3975, 0.2548296
    %v4008 = vadd.f32 %v3976, 0.2548296
    %v4009 = vadd.f32 %v3977, 0.2548296
    %v4010 = vadd.f32 %v3978, 0.2548296
    %v4011 = vadd.f32 %v3979, 0.2548296
    %v4012 = vadd.f32 %v3980, 0.2548296
    %v4013 = vadd.f32 %v3981, 0.2548296
    %v4014 = vadd.f32 %v3982, 0.2548296
    %v4015 = vadd.f32 %v3983, 0.2548296
    %v4016 = vadd.f32 %v3984, 0.2548296
    %v4017 = vadd.f32 %v3985, 0.2548296
    %v4018 = vadd.f32 %v3986, 0.2548296
    %v4019 = vadd.f32 %v3987, 0.2548296
    %v4020 = vadd.f32 %v3988, 0.2548296
    %v4021 = vadd.f32 %v3989, 0.2548296
    %v4022 = vadd.f32 %v3990, 0.2548296
    %v4023 = vadd.f32 %v3991, 0.2548296
    %v4024 = vadd.f32 %v3992, 0.2548296
    %v4025 = vadd.f32 %v3993, 0.2548296
    %v4026 = vadd.f32 %v3994, 0.2548296
    %v4027 = vadd.f32 %v3995, 0.2548296
    %v4028 = vadd.f32 %v3996, 0.2548296
    %v4029 = vadd.f32 %v3997, 0.2548296
    %v4030 = vadd.f32 %v3998, 0.2548296
    %v4031 = vadd.f32 %v3999, 0.2548296
    %v4032 = vadd.f32 %v4000, 0.2548296
    %v4033 = vadd.f32 %v4001, 0.2548296
    %v4034 = vadd.f32 %v4002, 0.2548296
    %v4035 = vadd.f32 %v4003, 0.2548296
    %v4036 = vadd.f32 %v4004, 0.2548296
    %v4037 = vmul.f32 %v4005, %v3749
    %v4038 = vmul.f32 %v4006, %v3750
    %v4039 = vmul.f32 %v4007, %v3751
    %v4040 = vmul.f32 %v4008, %v3752
    %v4041 = vmul.f32 %v4009, %v3753
    %v4042 = vmul.f32 %v4010, %v3754
    %v4043 = vmul.f32 %v4011, %v3755
    %v4044 = vmul.f32 %v4012, %v3756
    %v4045 = vmul.f32 %v4013, %v3757
    %v4046 = vmul.f32 %v4014, %v3758
    %v4047 = vmul.f32 %v4015, %v3759
    %v4048 = vmul.f32 %v4016, %v3760
    %v4049 = vmul.f32 %v4017, %v3761
    %v4050 = vmul.f32 %v4018, %v3762
    %v4051 = vmul.f32 %v4019, %v3763
    %v4052 = vmul.f32 %v4020, %v3764
    %v4053 = vmul.f32 %v4021, %v3765
    %v4054 = vmul.f32 %v4022, %v3766
    %v4055 = vmul.f32 %v4023, %v3767
    %v4056 = vmul.f32 %v4024, %v3768
    %v4057 = vmul.f32 %v4025, %v3769
    %v4058 = vmul.f32 %v4026, %v3770
    %v4059 = vmul.f32 %v4027, %v3771
    %v4060 = vmul.f32 %v4028, %v3772
    %v4061 = vmul.f32 %v4029, %v3773
    %v4062 = vmul.f32 %v4030, %v3774
    %v4063 = vmul.f32 %v4031, %v3775
    %v4064 = vmul.f32 %v4032, %v3776
    %v4065 = vmul.f32 %v4033, %v3777
    %v4066 = vmul.f32 %v4034, %v3778
    %v4067 = vmul.f32 %v4035, %v3779
    %v4068 = vmul.f32 %v4036, %v3780
    %v4069 = vsub.f32 0.0, %v3653
    %v4070 = vsub.f32 0.0, %v3654
    %v4071 = vsub.f32 0.0, %v3655
    %v4072 = vsub.f32 0.0, %v3656
    %v4073 = vsub.f32 0.0, %v3657
    %v4074 = vsub.f32 0.0, %v3658
    %v4075 = vsub.f32 0.0, %v3659
    %v4076 = vsub.f32 0.0, %v3660
    %v4077 = vsub.f32 0.0, %v3661
    %v4078 = vsub.f32 0.0, %v3662
    %v4079 = vsub.f32 0.0, %v3663
    %v4080 = vsub.f32 0.0, %v3664
    %v4081 = vsub.f32 0.0, %v3665
    %v4082 = vsub.f32 0.0, %v3666
    %v4083 = vsub.f32 0.0, %v3667
    %v4084 = vsub.f32 0.0, %v3668
    %v4085 = vsub.f32 0.0, %v3669
    %v4086 = vsub.f32 0.0, %v3670
    %v4087 = vsub.f32 0.0, %v3671
    %v4088 = vsub.f32 0.0, %v3672
    %v4089 = vsub.f32 0.0, %v3673
    %v4090 = vsub.f32 0.0, %v3674
    %v4091 = vsub.f32 0.0, %v3675
    %v4092 = vsub.f32 0.0, %v3676
    %v4093 = vsub.f32 0.0, %v3677
    %v4094 = vsub.f32 0.0, %v3678
    %v4095 = vsub.f32 0.0, %v3679
    %v4096 = vsub.f32 0.0, %v3680
    %v4097 = vsub.f32 0.0, %v3681
    %v4098 = vsub.f32 0.0, %v3682
    %v4099 = vsub.f32 0.0, %v3683
    %v4100 = vsub.f32 0.0, %v3684
    %v4101 = vmul.f32 %v4069, %v3653
    %v4102 = vmul.f32 %v4070, %v3654
    %v4103 = vmul.f32 %v4071, %v3655
    %v4104 = vmul.f32 %v4072, %v3656
    %v4105 = vmul.f32 %v4073, %v3657
    %v4106 = vmul.f32 %v4074, %v3658
    %v4107 = vmul.f32 %v4075, %v3659
    %v4108 = vmul.f32 %v4076, %v3660
    %v4109 = vmul.f32 %v4077, %v3661
    %v4110 = vmul.f32 %v4078, %v3662
    %v4111 = vmul.f32 %v4079, %v3663
    %v4112 = vmul.f32 %v4080, %v3664
    %v4113 = vmul.f32 %v4081, %v3665
    %v4114 = vmul.f32 %v4082, %v3666
    %v4115 = vmul.f32 %v4083, %v3667
    %v4116 = vmul.f32 %v4084, %v3668
    %v4117 = vmul.f32 %v4085, %v3669
    %v4118 = vmul.f32 %v4086, %v3670
    %v4119 = vmul.f32 %v4087, %v3671
    %v4120 = vmul.f32 %v4088, %v3672
    %v4121 = vmul.f32 %v4089, %v3673
    %v4122 = vmul.f32 %v4090, %v3674
    %v4123 = vmul.f32 %v4091, %v3675
    %v4124 = vmul.f32 %v4092, %v3676
    %v4125 = vmul.f32 %v4093, %v3677
    %v4126 = vmul.f32 %v4094, %v3678
    %v4127 = vmul.f32 %v4095, %v3679
    %v4128 = vmul.f32 %v4096, %v3680
    %v4129 = vmul.f32 %v4097, %v3681
    %v4130 = vmul.f32 %v4098, %v3682
    %v4131 = vmul.f32 %v4099, %v3683
    %v4132 = vmul.f32 %v4100, %v3684
    %v4133 = vmul.f32 %v4101, 1.442695
    %v4134 = vpow.pop %v4133
    %v4135 = vmul.f32 %v4102, 1.442695
    %v4136 = vpow.pop %v4135
    %v4137 = vmul.f32 %v4103, 1.442695
    %v4138 = vpow.pop %v4137
    %v4139 = vmul.f32 %v4104, 1.442695
    %v4140 = vpow.pop %v4139
    %v4141 = vmul.f32 %v4105, 1.442695
    %v4142 = vpow.pop %v4141
    %v4143 = vmul.f32 %v4106, 1.442695
    %v4144 = vpow.pop %v4143
    %v4145 = vmul.f32 %v4107, 1.442695
    %v4146 = vpow.pop %v4145
    %v4147 = vmul.f32 %v4108, 1.442695
    %v4148 = vpow.pop %v4147
    %v4149 = vmul.f32 %v4109, 1.442695
    %v4150 = vpow.pop %v4149
    %v4151 = vmul.f32 %v4110, 1.442695
    %v4152 = vpow.pop %v4151
    %v4153 = vmul.f32 %v4111, 1.442695
    %v4154 = vpow.pop %v4153
    %v4155 = vmul.f32 %v4112, 1.442695
    %v4156 = vpow.pop %v4155
    %v4157 = vmul.f32 %v4113, 1.442695
    %v4158 = vpow.pop %v4157
    %v4159 = vmul.f32 %v4114, 1.442695
    %v4160 = vpow.pop %v4159
    %v4161 = vmul.f32 %v4115, 1.442695
    %v4162 = vpow.pop %v4161
    %v4163 = vmul.f32 %v4116, 1.442695
    %v4164 = vpow.pop %v4163
    %v4165 = vmul.f32 %v4117, 1.442695
    %v4166 = vpow.pop %v4165
    %v4167 = vmul.f32 %v4118, 1.442695
    %v4168 = vpow.pop %v4167
    %v4169 = vmul.f32 %v4119, 1.442695
    %v4170 = vpow.pop %v4169
    %v4171 = vmul.f32 %v4120, 1.442695
    %v4172 = vpow.pop %v4171
    %v4173 = vmul.f32 %v4121, 1.442695
    %v4174 = vpow.pop %v4173
    %v4175 = vmul.f32 %v4122, 1.442695
    %v4176 = vpow.pop %v4175
    %v4177 = vmul.f32 %v4123, 1.442695
    %v4178 = vpow.pop %v4177
    %v4179 = vmul.f32 %v4124, 1.442695
    %v4180 = vpow.pop %v4179
    %v4181 = vmul.f32 %v4125, 1.442695
    %v4182 = vpow.pop %v4181
    %v4183 = vmul.f32 %v4126, 1.442695
    %v4184 = vpow.pop %v4183
    %v4185 = vmul.f32 %v4127, 1.442695
    %v4186 = vpow.pop %v4185
    %v4187 = vmul.f32 %v4128, 1.442695
    %v4188 = vpow.pop %v4187
    %v4189 = vmul.f32 %v4129, 1.442695
    %v4190 = vpow.pop %v4189
    %v4191 = vmul.f32 %v4130, 1.442695
    %v4192 = vpow.pop %v4191
    %v4193 = vmul.f32 %v4131, 1.442695
    %v4194 = vpow.pop %v4193
    %v4195 = vmul.f32 %v4132, 1.442695
    %v4196 = vpow.pop %v4195
    %v4197 = vmul.f32 %v4037, %v4134
    %v4198 = vmul.f32 %v4038, %v4136
    %v4199 = vmul.f32 %v4039, %v4138
    %v4200 = vmul.f32 %v4040, %v4140
    %v4201 = vmul.f32 %v4041, %v4142
    %v4202 = vmul.f32 %v4042, %v4144
    %v4203 = vmul.f32 %v4043, %v4146
    %v4204 = vmul.f32 %v4044, %v4148
    %v4205 = vmul.f32 %v4045, %v4150
    %v4206 = vmul.f32 %v4046, %v4152
    %v4207 = vmul.f32 %v4047, %v4154
    %v4208 = vmul.f32 %v4048, %v4156
    %v4209 = vmul.f32 %v4049, %v4158
    %v4210 = vmul.f32 %v4050, %v4160
    %v4211 = vmul.f32 %v4051, %v4162
    %v4212 = vmul.f32 %v4052, %v4164
    %v4213 = vmul.f32 %v4053, %v4166
    %v4214 = vmul.f32 %v4054, %v4168
    %v4215 = vmul.f32 %v4055, %v4170
    %v4216 = vmul.f32 %v4056, %v4172
    %v4217 = vmul.f32 %v4057, %v4174
    %v4218 = vmul.f32 %v4058, %v4176
    %v4219 = vmul.f32 %v4059, %v4178
    %v4220 = vmul.f32 %v4060, %v4180
    %v4221 = vmul.f32 %v4061, %v4182
    %v4222 = vmul.f32 %v4062, %v4184
    %v4223 = vmul.f32 %v4063, %v4186
    %v4224 = vmul.f32 %v4064, %v4188
    %v4225 = vmul.f32 %v4065, %v4190
    %v4226 = vmul.f32 %v4066, %v4192
    %v4227 = vmul.f32 %v4067, %v4194
    %v4228 = vmul.f32 %v4068, %v4196
    %v4229 = vsub.f32 1.0, %v4197
    %v4230 = vsub.f32 1.0, %v4198
    %v4231 = vsub.f32 1.0, %v4199
    %v4232 = vsub.f32 1.0, %v4200
    %v4233 = vsub.f32 1.0, %v4201
    %v4234 = vsub.f32 1.0, %v4202
    %v4235 = vsub.f32 1.0, %v4203
    %v4236 = vsub.f32 1.0, %v4204
    %v4237 = vsub.f32 1.0, %v4205
    %v4238 = vsub.f32 1.0, %v4206
    %v4239 = vsub.f32 1.0, %v4207
    %v4240 = vsub.f32 1.0, %v4208
    %v4241 = vsub.f32 1.0, %v4209
    %v4242 = vsub.f32 1.0, %v4210
    %v4243 = vsub.f32 1.0, %v4211
    %v4244 = vsub.f32 1.0, %v4212
    %v4245 = vsub.f32 1.0, %v4213
    %v4246 = vsub.f32 1.0, %v4214
    %v4247 = vsub.f32 1.0, %v4215
    %v4248 = vsub.f32 1.0, %v4216
    %v4249 = vsub.f32 1.0, %v4217
    %v4250 = vsub.f32 1.0, %v4218
    %v4251 = vsub.f32 1.0, %v4219
    %v4252 = vsub.f32 1.0, %v4220
    %v4253 = vsub.f32 1.0, %v4221
    %v4254 = vsub.f32 1.0, %v4222
    %v4255 = vsub.f32 1.0, %v4223
    %v4256 = vsub.f32 1.0, %v4224
    %v4257 = vsub.f32 1.0, %v4225
    %v4258 = vsub.f32 1.0, %v4226
    %v4259 = vsub.f32 1.0, %v4227
    %v4260 = vsub.f32 1.0, %v4228
    %vm4261 = vcmp.ge.f32.partialorder %v3621, 0.0
    %vm4262 = vcmp.ge.f32.partialorder %v3622, 0.0
    %vm4263 = vcmp.ge.f32.partialorder %v3623, 0.0
    %vm4264 = vcmp.ge.f32.partialorder %v3624, 0.0
    %vm4265 = vcmp.ge.f32.partialorder %v3625, 0.0
    %vm4266 = vcmp.ge.f32.partialorder %v3626, 0.0
    %vm4267 = vcmp.ge.f32.partialorder %v3627, 0.0
    %vm4268 = vcmp.ge.f32.partialorder %v3628, 0.0
    %vm4269 = vcmp.ge.f32.partialorder %v3629, 0.0
    %vm4270 = vcmp.ge.f32.partialorder %v3630, 0.0
    %vm4271 = vcmp.ge.f32.partialorder %v3631, 0.0
    %vm4272 = vcmp.ge.f32.partialorder %v3632, 0.0
    %vm4273 = vcmp.ge.f32.partialorder %v3633, 0.0
    %vm4274 = vcmp.ge.f32.partialorder %v3634, 0.0
    %vm4275 = vcmp.ge.f32.partialorder %v3635, 0.0
    %vm4276 = vcmp.ge.f32.partialorder %v3636, 0.0
    %vm4277 = vcmp.ge.f32.partialorder %v3637, 0.0
    %vm4278 = vcmp.ge.f32.partialorder %v3638, 0.0
    %vm4279 = vcmp.ge.f32.partialorder %v3639, 0.0
    %vm4280 = vcmp.ge.f32.partialorder %v3640, 0.0
    %vm4281 = vcmp.ge.f32.partialorder %v3641, 0.0
    %vm4282 = vcmp.ge.f32.partialorder %v3642, 0.0
    %vm4283 = vcmp.ge.f32.partialorder %v3643, 0.0
    %vm4284 = vcmp.ge.f32.partialorder %v3644, 0.0
    %vm4285 = vcmp.ge.f32.partialorder %v3645, 0.0
    %vm4286 = vcmp.ge.f32.partialorder %v3646, 0.0
    %vm4287 = vcmp.ge.f32.partialorder %v3647, 0.0
    %vm4288 = vcmp.ge.f32.partialorder %v3648, 0.0
    %vm4289 = vcmp.ge.f32.partialorder %v3649, 0.0
    %vm4290 = vcmp.ge.f32.partialorder %v3650, 0.0
    %vm4291 = vcmp.ge.f32.partialorder %v3651, 0.0
    %vm4292 = vcmp.ge.f32.partialorder %v3652, 0.0
    %v4293 = vsub.f32 0.0, %v4229
    %v4294 = vsub.f32 0.0, %v4230
    %v4295 = vsub.f32 0.0, %v4231
    %v4296 = vsub.f32 0.0, %v4232
    %v4297 = vsub.f32 0.0, %v4233
    %v4298 = vsub.f32 0.0, %v4234
    %v4299 = vsub.f32 0.0, %v4235
    %v4300 = vsub.f32 0.0, %v4236
    %v4301 = vsub.f32 0.0, %v4237
    %v4302 = vsub.f32 0.0, %v4238
    %v4303 = vsub.f32 0.0, %v4239
    %v4304 = vsub.f32 0.0, %v4240
    %v4305 = vsub.f32 0.0, %v4241
    %v4306 = vsub.f32 0.0, %v4242
    %v4307 = vsub.f32 0.0, %v4243
    %v4308 = vsub.f32 0.0, %v4244
    %v4309 = vsub.f32 0.0, %v4245
    %v4310 = vsub.f32 0.0, %v4246
    %v4311 = vsub.f32 0.0, %v4247
    %v4312 = vsub.f32 0.0, %v4248
    %v4313 = vsub.f32 0.0, %v4249
    %v4314 = vsub.f32 0.0, %v4250
    %v4315 = vsub.f32 0.0, %v4251
    %v4316 = vsub.f32 0.0, %v4252
    %v4317 = vsub.f32 0.0, %v4253
    %v4318 = vsub.f32 0.0, %v4254
    %v4319 = vsub.f32 0.0, %v4255
    %v4320 = vsub.f32 0.0, %v4256
    %v4321 = vsub.f32 0.0, %v4257
    %v4322 = vsub.f32 0.0, %v4258
    %v4323 = vsub.f32 0.0, %v4259
    %v4324 = vsub.f32 0.0, %v4260
    %v4325 = vsel %vm4261, %v4229, %v4293
    %v4326 = vsel %vm4262, %v4230, %v4294
    %v4327 = vsel %vm4263, %v4231, %v4295
    %v4328 = vsel %vm4264, %v4232, %v4296
    %v4329 = vsel %vm4265, %v4233, %v4297
    %v4330 = vsel %vm4266, %v4234, %v4298
    %v4331 = vsel %vm4267, %v4235, %v4299
    %v4332 = vsel %vm4268, %v4236, %v4300
    %v4333 = vsel %vm4269, %v4237, %v4301
    %v4334 = vsel %vm4270, %v4238, %v4302
    %v4335 = vsel %vm4271, %v4239, %v4303
    %v4336 = vsel %vm4272, %v4240, %v4304
    %v4337 = vsel %vm4273, %v4241, %v4305
    %v4338 = vsel %vm4274, %v4242, %v4306
    %v4339 = vsel %vm4275, %v4243, %v4307
    %v4340 = vsel %vm4276, %v4244, %v4308
    %v4341 = vsel %vm4277, %v4245, %v4309
    %v4342 = vsel %vm4278, %v4246, %v4310
    %v4343 = vsel %vm4279, %v4247, %v4311
    %v4344 = vsel %vm4280, %v4248, %v4312
    %v4345 = vsel %vm4281, %v4249, %v4313
    %v4346 = vsel %vm4282, %v4250, %v4314
    %v4347 = vsel %vm4283, %v4251, %v4315
    %v4348 = vsel %vm4284, %v4252, %v4316
    %v4349 = vsel %vm4285, %v4253, %v4317
    %v4350 = vsel %vm4286, %v4254, %v4318
    %v4351 = vsel %vm4287, %v4255, %v4319
    %v4352 = vsel %vm4288, %v4256, %v4320
    %v4353 = vsel %vm4289, %v4257, %v4321
    %v4354 = vsel %vm4290, %v4258, %v4322
    %v4355 = vsel %vm4291, %v4259, %v4323
    %v4356 = vsel %vm4292, %v4260, %v4324
    %v4357 = vadd.f32 %v4325, 1.0
    %v4358 = vadd.f32 %v4326, 1.0
    %v4359 = vadd.f32 %v4327, 1.0
    %v4360 = vadd.f32 %v4328, 1.0
    %v4361 = vadd.f32 %v4329, 1.0
    %v4362 = vadd.f32 %v4330, 1.0
    %v4363 = vadd.f32 %v4331, 1.0
    %v4364 = vadd.f32 %v4332, 1.0
    %v4365 = vadd.f32 %v4333, 1.0
    %v4366 = vadd.f32 %v4334, 1.0
    %v4367 = vadd.f32 %v4335, 1.0
    %v4368 = vadd.f32 %v4336, 1.0
    %v4369 = vadd.f32 %v4337, 1.0
    %v4370 = vadd.f32 %v4338, 1.0
    %v4371 = vadd.f32 %v4339, 1.0
    %v4372 = vadd.f32 %v4340, 1.0
    %v4373 = vadd.f32 %v4341, 1.0
    %v4374 = vadd.f32 %v4342, 1.0
    %v4375 = vadd.f32 %v4343, 1.0
    %v4376 = vadd.f32 %v4344, 1.0
    %v4377 = vadd.f32 %v4345, 1.0
    %v4378 = vadd.f32 %v4346, 1.0
    %v4379 = vadd.f32 %v4347, 1.0
    %v4380 = vadd.f32 %v4348, 1.0
    %v4381 = vadd.f32 %v4349, 1.0
    %v4382 = vadd.f32 %v4350, 1.0
    %v4383 = vadd.f32 %v4351, 1.0
    %v4384 = vadd.f32 %v4352, 1.0
    %v4385 = vadd.f32 %v4353, 1.0
    %v4386 = vadd.f32 %v4354, 1.0
    %v4387 = vadd.f32 %v4355, 1.0
    %v4388 = vadd.f32 %v4356, 1.0
    %v4389 = vmul.f32 %v3589, %v4357
    %v4390 = vmul.f32 %v3590, %v4358
    %v4391 = vmul.f32 %v3591, %v4359
    %v4392 = vmul.f32 %v3592, %v4360
    %v4393 = vmul.f32 %v3593, %v4361
    %v4394 = vmul.f32 %v3594, %v4362
    %v4395 = vmul.f32 %v3595, %v4363
    %v4396 = vmul.f32 %v3596, %v4364
    %v4397 = vmul.f32 %v3597, %v4365
    %v4398 = vmul.f32 %v3598, %v4366
    %v4399 = vmul.f32 %v3599, %v4367
    %v4400 = vmul.f32 %v3600, %v4368
    %v4401 = vmul.f32 %v3601, %v4369
    %v4402 = vmul.f32 %v3602, %v4370
    %v4403 = vmul.f32 %v3603, %v4371
    %v4404 = vmul.f32 %v3604, %v4372
    %v4405 = vmul.f32 %v3605, %v4373
    %v4406 = vmul.f32 %v3606, %v4374
    %v4407 = vmul.f32 %v3607, %v4375
    %v4408 = vmul.f32 %v3608, %v4376
    %v4409 = vmul.f32 %v3609, %v4377
    %v4410 = vmul.f32 %v3610, %v4378
    %v4411 = vmul.f32 %v3611, %v4379
    %v4412 = vmul.f32 %v3612, %v4380
    %v4413 = vmul.f32 %v3613, %v4381
    %v4414 = vmul.f32 %v3614, %v4382
    %v4415 = vmul.f32 %v3615, %v4383
    %v4416 = vmul.f32 %v3616, %v4384
    %v4417 = vmul.f32 %v3617, %v4385
    %v4418 = vmul.f32 %v3618, %v4386
    %v4419 = vmul.f32 %v3619, %v4387
    %v4420 = vmul.f32 %v3620, %v4388
    %vm4421 = vcmask 523264
    %v4423 = vsel %vm4421, %v4389, 0
    %v4426 = vsel %vm4421, %v4390, 0
    %v4429 = vsel %vm4421, %v4391, 0
    %v4432 = vsel %vm4421, %v4392, 0
    %v4435 = vsel %vm4421, %v4393, 0
    %v4438 = vsel %vm4421, %v4394, 0
    %v4441 = vsel %vm4421, %v4395, 0
    %v4444 = vsel %vm4421, %v4396, 0
    %v4447 = vsel %vm4421, %v4397, 0
    %v4450 = vsel %vm4421, %v4398, 0
    %v4453 = vsel %vm4421, %v4399, 0
    %v4456 = vsel %vm4421, %v4400, 0
    %v4459 = vsel %vm4421, %v4401, 0
    %v4462 = vsel %vm4421, %v4402, 0
    %v4465 = vsel %vm4421, %v4403, 0
    %v4468 = vsel %vm4421, %v4404, 0
    %v4471 = vsel %vm4421, %v4405, 0
    %v4474 = vsel %vm4421, %v4406, 0
    %v4477 = vsel %vm4421, %v4407, 0
    %v4480 = vsel %vm4421, %v4408, 0
    %v4483 = vsel %vm4421, %v4409, 0
    %v4486 = vsel %vm4421, %v4410, 0
    %v4489 = vsel %vm4421, %v4411, 0
    %v4492 = vsel %vm4421, %v4412, 0
    %v4495 = vsel %vm4421, %v4413, 0
    %v4498 = vsel %vm4421, %v4414, 0
    %v4501 = vsel %vm4421, %v4415, 0
    %v4504 = vsel %vm4421, %v4416, 0
    %v4507 = vsel %vm4421, %v4417, 0
    %v4510 = vsel %vm4421, %v4418, 0
    %v4513 = vsel %vm4421, %v4419, 0
    %v4516 = vsel %vm4421, %v4420, 0
    %4518 = vmatpush.msra.mxu0 0.0
    %4519 = vmatpush.msra.mxu0 0.0
    %4520 = vmatpush.msra.mxu0 0.0
    %4521 = vmatpush.msra.mxu0 0.0
    %4522 = vmatpush.msra.mxu0 0.0
    %4523 = vmatpush.msra.mxu0 0.0
    %4524 = vmatpush.msra.mxu0 0.0
    %4525 = vmatpush.msra.mxu0 0.0
    %4526 = vmatpush.msra.mxu0 %v68
    %4527 = vmatpush.msra.mxu0 %v67
    %4528 = vmatpush.msra.mxu0 %v66
    %4529 = vmatpush.msra.mxu0 %v65
    %4530 = vmatpush.msra.mxu0 %v64
    %4531 = vmatpush.msra.mxu0 %v63
    %4532 = vmatpush.msra.mxu0 %v62
    %4533 = vmatpush.msra.mxu0 %v61
    %4534 = vmatmul.f32.gmra.mxu0 %v4423
    %v4535 = vpop.f32.mrf.mxu0
    %v4536 = vadd.f32 0.0, %v4535
    %4537 = vmatmul.f32.gmra.mxu0 %v4426
    %v4538 = vpop.f32.mrf.mxu0
    %4539 = vmatmul.f32.gmra.mxu0 %v4429
    %v4540 = vpop.f32.mrf.mxu0
    %4541 = vmatmul.f32.gmra.mxu0 %v4432
    %v4542 = vpop.f32.mrf.mxu0
    %4543 = vmatmul.f32.gmra.mxu0 %v4435
    %v4544 = vpop.f32.mrf.mxu0
    %4545 = vmatmul.f32.gmra.mxu0 %v4438
    %v4546 = vpop.f32.mrf.mxu0
    %4547 = vmatmul.f32.gmra.mxu0 %v4441
    %v4548 = vpop.f32.mrf.mxu0
    %4549 = vmatmul.f32.gmra.mxu0 %v4444
    %v4550 = vpop.f32.mrf.mxu0
    %4551 = vmatmul.f32.gmra.mxu0 %v4447
    %v4552 = vpop.f32.mrf.mxu0
    %4553 = vmatmul.f32.gmra.mxu0 %v4450
    %v4554 = vpop.f32.mrf.mxu0
    %4555 = vmatmul.f32.gmra.mxu0 %v4453
    %v4556 = vpop.f32.mrf.mxu0
    %4557 = vmatmul.f32.gmra.mxu0 %v4456
    %v4558 = vpop.f32.mrf.mxu0
    %4559 = vmatmul.f32.gmra.mxu0 %v4459
    %v4560 = vpop.f32.mrf.mxu0
    %4561 = vmatmul.f32.gmra.mxu0 %v4462
    %v4562 = vpop.f32.mrf.mxu0
    %4563 = vmatmul.f32.gmra.mxu0 %v4465
    %v4564 = vpop.f32.mrf.mxu0
    %4565 = vmatmul.f32.gmra.mxu0 %v4468
    %v4566 = vpop.f32.mrf.mxu0
    %4567 = vmatmul.f32.gmra.mxu0 %v4471
    %v4568 = vpop.f32.mrf.mxu0
    %v4569 = vadd.f32 0.0, %v4568
    %4570 = vmatmul.f32.gmra.mxu0 %v4474
    %v4571 = vpop.f32.mrf.mxu0
    %4572 = vmatmul.f32.gmra.mxu0 %v4477
    %v4573 = vpop.f32.mrf.mxu0
    %4574 = vmatmul.f32.gmra.mxu0 %v4480
    %v4575 = vpop.f32.mrf.mxu0
    %4576 = vmatmul.f32.gmra.mxu0 %v4483
    %v4577 = vpop.f32.mrf.mxu0
    %4578 = vmatmul.f32.gmra.mxu0 %v4486
    %v4579 = vpop.f32.mrf.mxu0
    %4580 = vmatmul.f32.gmra.mxu0 %v4489
    %v4581 = vpop.f32.mrf.mxu0
    %4582 = vmatmul.f32.gmra.mxu0 %v4492
    %v4583 = vpop.f32.mrf.mxu0
    %4584 = vmatmul.f32.gmra.mxu0 %v4495
    %v4585 = vpop.f32.mrf.mxu0
    %4586 = vmatmul.f32.gmra.mxu0 %v4498
    %v4587 = vpop.f32.mrf.mxu0
    %4588 = vmatmul.f32.gmra.mxu0 %v4501
    %v4589 = vpop.f32.mrf.mxu0
    %4590 = vmatmul.f32.gmra.mxu0 %v4504
    %v4591 = vpop.f32.mrf.mxu0
    %4592 = vmatmul.f32.gmra.mxu0 %v4507
    %v4593 = vpop.f32.mrf.mxu0
    %4594 = vmatmul.f32.gmra.mxu0 %v4510
    %v4595 = vpop.f32.mrf.mxu0
    %4596 = vmatmul.f32.gmra.mxu0 %v4513
    %v4597 = vpop.f32.mrf.mxu0
    %4598 = vmatmul.f32.gmra.mxu0 %v4516
    %v4599 = vpop.f32.mrf.mxu0
    %4600 = vdwg.mxu0
    %v4601 = vadd.f32 %v2577, %v4536
    %v4602 = vadd.f32 %v2593, %v4569
    %v4603 = vperm.slane %v82, 0
    %v4604 = vadd.f32 %v4601, %v4603
    %v4605 = vadd.f32 %v4602, %v4603
    %vm4606 = vcmask 253952
    %v4607 = vsel %vm4606, %v4604, 0.0
    %4608 = vadd.xlane.f32.xlu0 %v4607
    %v4609 = vpop.xlane.xlu0 %4608
    %v4610 = vmul.f32 %v4609, %v434
    %v4611 = vsub.f32 %v4604, %v4610
    %v4612 = vmul.f32 %v4611, %v4611
    %v4613 = vsel %vm4606, %v4612, 0.0
    %4614 = vadd.xlane.f32.xlu0 %v4613
    %v4615 = vpop.xlane.xlu0 %4614
    %v4616 = vmul.f32 %v4615, %v434
    %v4617 = vadd.f32 %v4616, 1e-05
    %v4618 = vrsqrt.pop %v4617
    %v4619 = vmul.f32 %v4618, %v4617
    %v4620 = vmul.f32 %v4619, %v4618
    %v4621 = vmul.f32 0.5, %v4620
    %v4622 = vsub.f32 1.5, %v4621
    %v4623 = vmul.f32 %v4618, %v4622
    %vm4624 = vweird.f32 %v4617
    %vm4625 = vweird.f32 %v4618
    %vm4626 = vmor %vm4624, %vm4625
    %v4627 = vsel %vm4626, %v4618, %v4623
    %v4628 = vmul.f32 %v4611, %v4627
    %v4629 = vmul.f32 %v4628, %v83
    %v4630 = vadd.f32 %v4629, %v84
    %v4632 = vsel %vm259, %v4630, 0
    %4634 = vmatpush.msra.mxu0 0.0
    %4635 = vmatpush.msra.mxu0 0.0
    %4636 = vmatpush.msra.mxu0 0.0
    %4637 = vmatpush.msra.mxu0 0.0
    %4638 = vmatpush.msra.mxu0 0.0
    %4639 = vmatpush.msra.mxu0 0.0
    %4640 = vmatpush.msra.mxu0 0.0
    %4641 = vmatpush.msra.mxu0 0.0
    %4642 = vmatpush.msra.mxu0 0.0
    %4643 = vmatpush.msra.mxu0 0.0
    %4644 = vmatpush.msra.mxu0 0.0
    %4645 = vmatpush.msra.mxu0 0.0
    %4646 = vmatpush.msra.mxu0 %v72
    %4647 = vmatpush.msra.mxu0 %v71
    %4648 = vmatpush.msra.mxu0 %v70
    %4649 = vmatpush.msra.mxu0 %v69
    %4650 = vmatmul.f32.gmra.mxu0 %v4632
    %v4651 = vpop.f32.mrf.mxu0
    %v4652 = vadd.f32 %v85, %v4651
    %4653 = vdwg.mxu0
    %4654 = vst [vmem:[#allocation7] sm:$0x1] %v4652
    %v4655 = vsel %vm4606, %v4605, 0.0
    %4656 = vadd.xlane.f32.xlu0 %v4655
    %v4657 = vpop.xlane.xlu0 %4656
    %v4658 = vmul.f32 %v4657, %v434
    %v4659 = vsub.f32 %v4605, %v4658
    %v4660 = vmul.f32 %v4659, %v4659
    %v4661 = vsel %vm4606, %v4660, 0.0
    %4662 = vadd.xlane.f32.xlu0 %v4661
    %v4663 = vpop.xlane.xlu0 %4662
    %v4664 = vmul.f32 %v4663, %v434
    %v4665 = vadd.f32 %v4664, 1e-05
    %v4666 = vrsqrt.pop %v4665
    %v4667 = vmul.f32 %v4666, %v4665
    %v4668 = vmul.f32 %v4667, %v4666
    %v4669 = vmul.f32 0.5, %v4668
    %v4670 = vsub.f32 1.5, %v4669
    %v4671 = vmul.f32 %v4666, %v4670
    %vm4672 = vweird.f32 %v4665
    %vm4673 = vweird.f32 %v4666
    %vm4674 = vmor %vm4672, %vm4673
    %v4675 = vsel %vm4674, %v4666, %v4671
    %v4676 = vmul.f32 %v4659, %v4675
    %v4677 = vmul.f32 %v4676, %v83
    %v4678 = vadd.f32 %v4677, %v84
    %v4680 = vsel %vm259, %v4678, 0
    %4682 = vmatpush.msra.mxu0 0.0
    %4683 = vmatpush.msra.mxu0 0.0
    %4684 = vmatpush.msra.mxu0 0.0
    %4685 = vmatpush.msra.mxu0 0.0
    %4686 = vmatpush.msra.mxu0 0.0
    %4687 = vmatpush.msra.mxu0 0.0
    %4688 = vmatpush.msra.mxu0 0.0
    %4689 = vmatpush.msra.mxu0 0.0
    %4690 = vmatpush.msra.mxu0 0.0
    %4691 = vmatpush.msra.mxu0 0.0
    %4692 = vmatpush.msra.mxu0 0.0
    %4693 = vmatpush.msra.mxu0 0.0
    %4694 = vmatpush.msra.mxu0 %v72
    %4695 = vmatpush.msra.mxu0 %v71
    %4696 = vmatpush.msra.mxu0 %v70
    %4697 = vmatpush.msra.mxu0 %v69
    %4698 = vmatmul.f32.gmra.mxu0 %v4680
    %v4699 = vpop.f32.mrf.mxu0
    %v4700 = vadd.f32 %v85, %v4699
    %4701 = vdwg.mxu0
    %4702 = vst [vmem:[#allocation7 + $0x1] sm:$0x1] %v4700
    // Predicated region
    $region18: #{tpu_custom_call.1} parent=1 // pred_check
      _
    $region19: #{tpu_custom_call.1} parent=1 // pred_check_branch
      %4704 = sbr.rel (0) target = $region21
    $region20: #{tpu_custom_call.1} parent=1 // pred_region
      %4706 = vsyncadd [#allocation6], 0
      %s4708 = sshll.u32 [#allocation7], 4
      %s4709 = int_to_ptr.vmem [resolvable:$true] %s4708
      %s4710 = sshll.u32 %s3, 4
      %s4711 = int_to_ptr.hbm [resolvable:$true] %s4710
      %4713 = dma.vmem_to_hbm [thread:$0]  %s4709, 32, %s4711, [#allocation6]
    $region21: #{tpu_custom_call.1} parent=1 // pred_fallthru
      _
    // Predicated region
    $region22: #{tpu_custom_call.1} parent=1 // pred_check
      _
    $region23: #{tpu_custom_call.1} parent=1 // pred_check_branch
      %4715 = sbr.rel (0) target = $region25
    $region24: #{tpu_custom_call.1} parent=1 // pred_region
      %4717 = dma.done [#allocation6], 32
    $region25: #{tpu_custom_call.1} parent=1 // pred_fallthru
      _
    %4718 = vsyncpa [#allocation5], 1
    %4719 = vsyncpa [#allocation6], 1

</llo_original>
